<compile_context>
chip_gen: v7x
topology: tpu7x:2x2x1
jax: 0.10.0
libtpu: 0.0.40
codegen_flags: <defaults>
</compile_context>

<pallas_src>
import functools

import numpy as np
import jax
import jax.numpy as jnp
from jax import lax
from jax.experimental import pallas as pl
from jax.experimental.pallas import tpu as pltpu


_WEIGHT_NAMES = ("m1", "b1r", "s1e", "s1o",
                 "m2", "b2r", "s2e", "s2o",
                 "wfc1", "bfc1", "wfc2", "bfc2", "wfc3", "bfc3")


# ----------------------------------------------------------------------------
# Fused Pallas kernel: one grid step == one block of B images, end-to-end.
# ----------------------------------------------------------------------------
def _lenet_fused_kernel(x_ref,
                        m1_ref, b1_ref, s1e_ref, s1o_ref,
                        m2_ref, b2_ref, s2e_ref, s2o_ref,
                        wfc1_ref, bfc1_ref, wfc2_ref, bfc2_ref,
                        wfc3_ref, bfc3_ref,
                        out_ref, pool1_ref, pool2_ref):
    f32, bf16 = jnp.float32, jnp.bfloat16
    dot = functools.partial(jnp.dot, preferred_element_type=f32)

    r1 = x_ref.shape[0]          # B * 32 stacked rows (32-row slot per image)
    b = r1 // 32                 # images per grid step
    r2 = b * 16                  # slot = 16 rows per image after pool1

    # ---- conv1 (5x5, 3->6): 5 banded matmuls on the stacked batch slab -----
    # Band di needs row r+di; pad the slab by 8 junk rows so every band is a
    # plain static sublane slice (junk only feeds junk output rows >= 28/slot).
    xs = x_ref[...]                                            # (B*32, 96) f32
    xs_pad = jnp.concatenate([xs, xs[:8, :]], axis=0)
    acc1 = dot(xs.astype(bf16), m1_ref[0])
    for di in range(1, 5):
        acc1 = acc1 + dot(xs_pad[di:di + r1, :].astype(bf16), m1_ref[di])
    y1 = jnp.maximum(acc1 + b1_ref[...], 0.0)                  # (B*32, 168)

    # ---- pool1, W direction: two exact 0/1 selection matmuls + VPU max -----
    y1b = y1.astype(bf16)
    yw1 = jnp.maximum(dot(y1b, s1e_ref[...]), dot(y1b, s1o_ref[...]))  # (B*32, 84)

    # ---- pool1, H direction: VPU max of even/odd rows (stride-2 loads) -----
    pool1_ref[...] = yw1
    z1 = jnp.maximum(pool1_ref[pl.ds(0, r2, stride=2), :],
                     pool1_ref[pl.ds(1, r2, stride=2), :])     # (B*16, 84)

    # ---- conv2 (5x5, 6->16) -------------------------------------------------
    z1_pad = jnp.concatenate([z1, z1[:8, :]], axis=0)
    acc2 = dot(z1.astype(bf16), m2_ref[0])
    for di in range(1, 5):
        acc2 = acc2 + dot(z1_pad[di:di + r2, :].astype(bf16), m2_ref[di])
    y2 = jnp.maximum(acc2 + b2_ref[...], 0.0)                  # (B*16, 160)

    # ---- pool2, W direction --------------------------------------------------
    y2b = y2.astype(bf16)
    yw2 = jnp.maximum(dot(y2b, s2e_ref[...]), dot(y2b, s2o_ref[...]))  # (B*16, 80)
    pool2_ref[...] = yw2

    # ---- fc1 (400->120): pool2's H-max is fused into the batch gather.
    # Pooled row h of every image lives at scratch rows {b*16 + 2h, b*16+2h+1};
    # stride-16 row loads give an (B, 80) operand -> batch fills M.
    def pooled_rows(h):
        return jnp.maximum(pool2_ref[pl.ds(2 * h, b, stride=16), :],
                           pool2_ref[pl.ds(2 * h + 1, b, stride=16), :])

    f1 = dot(pooled_rows(0).astype(bf16), wfc1_ref[0])
    for h in range(1, 5):
        f1 = f1 + dot(pooled_rows(h).astype(bf16), wfc1_ref[h])
    f1 = jnp.maximum(f1 + bfc1_ref[...], 0.0)                  # (B, 120)

    # ---- fc2 (120->84) + ReLU, fc3 (84->10, zero-padded to 128 lanes) -------
    f2 = jnp.maximum(dot(f1.astype(bf16), wfc2_ref[...]) + bfc2_ref[...], 0.0)
    f3 = dot(f2.astype(bf16), wfc3_ref[...]) + bfc3_ref[...]   # (B, 128)

    out_ref[...] = f3.astype(out_ref.dtype)                    # lane-dense store


# ----------------------------------------------------------------------------
# One-time weight preparation (outside the jitted hot path).
# ----------------------------------------------------------------------------
def prepare_params(params):
    w1 = np.asarray(params["conv1_w"], np.float32)    # (6, 3, 5, 5)
    b1 = np.asarray(params["conv1_b"], np.float32)
    w2 = np.asarray(params["conv2_w"], np.float32)    # (16, 6, 5, 5)
    b2 = np.asarray(params["conv2_b"], np.float32)
    fc1_w = np.asarray(params["fc1_w"], np.float32)   # (120, 400)
    fc1_b = np.asarray(params["fc1_b"], np.float32)
    fc2_w = np.asarray(params["fc2_w"], np.float32)   # (84, 120)
    fc2_b = np.asarray(params["fc2_b"], np.float32)
    fc3_w = np.asarray(params["fc3_w"], np.float32)   # (10, 84)
    fc3_b = np.asarray(params["fc3_b"], np.float32)

    # Banded conv matrices for the (H, W*C) activation layout:
    #   m[di, (w+dj)*Cin + c, w*Cout + o] = W[o, c, di, dj]
    def banded(w_oihw, w_in, w_out):
        o_c, i_c, kh, kw = w_oihw.shape
        m = np.zeros((kh, w_in * i_c, w_out * o_c), np.float32)
        for di in range(kh):
            for w in range(w_out):
                for dj in range(kw):
                    m[di, (w + dj) * i_c:(w + dj + 1) * i_c,
                          w * o_c:(w + 1) * o_c] = w_oihw[:, :, di, dj].T
        return m

    m1 = banded(w1, 32, 28)      # (5, 96, 168)
    m2 = banded(w2, 14, 10)      # (5, 84, 160)

    # 0/1 lane-selection matrices (pick even / odd W positions, per channel).
    # Exact in bf16.
    def lane_pool_mats(w_out, c):
        se = np.zeros((2 * w_out * c, w_out * c), np.float32)
        so = np.zeros((2 * w_out * c, w_out * c), np.float32)
        for w in range(w_out):
            for cc in range(c):
                se[(2 * w) * c + cc, w * c + cc] = 1.0
                so[(2 * w + 1) * c + cc, w * c + cc] = 1.0
        return se, so

    s1e, s1o = lane_pool_mats(14, 6)     # (168, 84)
    s2e, s2o = lane_pool_mats(5, 16)     # (160, 80)

    # fc1: fold PyTorch's (C, H, W) flatten order into the weight so the kernel
    # consumes the pooled (H, W*C) rows directly:  wfc1[h, w*16+c, n]
    wfc1 = np.zeros((5, 80, 120), np.float32)
    for h in range(5):
        for w in range(5):
            for c in range(16):
                wfc1[h, w * 16 + c, :] = fc1_w[:, c * 25 + h * 5 + w]

    # fc3 padded to a lane-dense 128-wide output block (extra columns zero).
    wfc3 = np.zeros((84, 128), np.float32)
    wfc3[:, :10] = fc3_w.T
    bfc3 = np.zeros((1, 128), np.float32)
    bfc3[0, :10] = fc3_b

    bf16_w = {"m1": m1, "s1e": s1e, "s1o": s1o,
              "m2": m2, "s2e": s2e, "s2o": s2o,
              "wfc1": wfc1, "wfc2": fc2_w.T.copy(), "wfc3": wfc3}
    f32_w = {"b1r": np.tile(b1, 28)[None, :], "b2r": np.tile(b2, 10)[None, :],
             "bfc1": fc1_b[None, :], "bfc2": fc2_b[None, :], "bfc3": bfc3}

    prepped = {k: jnp.asarray(v, jnp.bfloat16) for k, v in bf16_w.items()}
    prepped.update({k: jnp.asarray(v, jnp.float32) for k, v in f32_w.items()})
    return prepped


# ----------------------------------------------------------------------------
# Forward pass: one pallas_call, grid over blocks of images.
# ----------------------------------------------------------------------------
def net_forward(prepped, x_nchw, *, block_b=32):
    n = x_nchw.shape[0]
    block_b = max(8, min(block_b, n))
    block_b = ((block_b + 7) // 8) * 8          # sublane-aligned output block
    n_blocks = -(-n // block_b)
    n_pad = n_blocks * block_b
    if n_pad != n:
        x_nchw = jnp.pad(x_nchw, ((0, n_pad - n), (0, 0), (0, 0), (0, 0)))

    # NCHW -> stacked (N*H, W*C) rows: image b occupies rows [b*32, b*32+32).
    x = jnp.transpose(x_nchw, (0, 2, 3, 1)).reshape(n_pad * 32, 32 * 3)

    weights = [prepped[k] for k in _WEIGHT_NAMES]

    def resident_spec(arr):
        # Whole-array block, constant index map -> fetched once, VMEM-resident.
        if arr.ndim == 2:
            return pl.BlockSpec(arr.shape, lambda i: (0, 0))
        return pl.BlockSpec(arr.shape, lambda i: (0, 0, 0))

    in_specs = [pl.BlockSpec((block_b * 32, 96), lambda i: (i, 0))]
    in_specs += [resident_spec(w) for w in weights]

    out = pl.pallas_call(
        _lenet_fused_kernel,
        out_shape=jax.ShapeDtypeStruct((n_pad, 128), jnp.float32),
        grid=(n_blocks,),
        in_specs=in_specs,
        out_specs=pl.BlockSpec((block_b, 128), lambda i: (i, 0)),
        scratch_shapes=[
            pltpu.VMEM((block_b * 32, 84), jnp.float32),   # pool1 staging
            pltpu.VMEM((block_b * 16, 80), jnp.float32),   # pool2 staging
        ],
        compiler_params=pltpu.CompilerParams(
            dimension_semantics=("parallel",),
            vmem_limit_bytes=32 * 1024 * 1024),
    )(x, *weights)

    return out[:n, :10]


# ----------------------------------------------------------------------------
# Pure-JAX f32 reference (for the in-script correctness check).
# ----------------------------------------------------------------------------
def _maxpool_ref(y):
    return jnp.maximum(
        jnp.maximum(y[:, 0::2, 0::2, :], y[:, 0::2, 1::2, :]),
        jnp.maximum(y[:, 1::2, 0::2, :], y[:, 1::2, 1::2, :]))


def net_forward_ref(params, x_nchw):
    n = x_nchw.shape[0]
    x = jnp.transpose(x_nchw, (0, 2, 3, 1))
    y = lax.conv_general_dilated(
        x, jnp.transpose(params["conv1_w"], (2, 3, 1, 0)), (1, 1), "VALID",
        dimension_numbers=("NHWC", "HWIO", "NHWC"))
    y = _maxpool_ref(jnp.maximum(y + params["conv1_b"], 0.0))
    y = lax.conv_general_dilated(
        y, jnp.transpose(params["conv2_w"], (2, 3, 1, 0)), (1, 1), "VALID",
        dimension_numbers=("NHWC", "HWIO", "NHWC"))
    y = _maxpool_ref(jnp.maximum(y + params["conv2_b"], 0.0))
    y = jnp.transpose(y, (0, 3, 1, 2)).reshape(n, 16 * 5 * 5)   # PyTorch flatten
    y = jnp.maximum(y @ params["fc1_w"].T + params["fc1_b"], 0.0)
    y = jnp.maximum(y @ params["fc2_w"].T + params["fc2_b"], 0.0)
    return y @ params["fc3_w"].T + params["fc3_b"]


def init_params(key):
    # PyTorch-style U(-1/sqrt(fan_in), +1/sqrt(fan_in)) init.
    def uinit(k, shape, fan_in):
        bound = 1.0 / jnp.sqrt(float(fan_in))
        return jax.random.uniform(k, shape, jnp.float32, -bound, bound)

    ks = jax.random.split(key, 10)
    return {
        "conv1_w": uinit(ks[0], (6, 3, 5, 5), 3 * 5 * 5),
        "conv1_b": uinit(ks[1], (6,), 3 * 5 * 5),
        "conv2_w": uinit(ks[2], (16, 6, 5, 5), 6 * 5 * 5),
        "conv2_b": uinit(ks[3], (16,), 6 * 5 * 5),
        "fc1_w": uinit(ks[4], (120, 400), 400),
        "fc1_b": uinit(ks[5], (120,), 400),
        "fc2_w": uinit(ks[6], (84, 120), 120),
        "fc2_b": uinit(ks[7], (84,), 120),
        "fc3_w": uinit(ks[8], (10, 84), 84),
        "fc3_b": uinit(ks[9], (10,), 84),
    }


if __name__ == "__main__":
    key = jax.random.PRNGKey(0)
    pkey, xkey = jax.random.split(key)
    params = init_params(pkey)
    prepped = prepare_params(params)

    # Input must be 32x32 so the flatten is 16*5*5 = 400 (as in the spec).
    # 16 images, 8 per grid step -> grid of 2 (even, so both v7x TCs get work).
    x = jax.random.normal(xkey, (16, 3, 32, 32), dtype=jnp.float32)

    fwd = jax.jit(functools.partial(net_forward, block_b=8))
    out = jax.block_until_ready(fwd(prepped, x))
    assert out.shape == (16, 10), out.shape

    ref = jax.block_until_ready(jax.jit(net_forward_ref)(params, x))
    max_err = float(jnp.max(jnp.abs(out - ref)))
    # bf16 matmul operands (f32 accumulation) -> relaxed tolerance vs f32 ref.
    assert max_err < 4e-2, f"max |pallas - ref| = {max_err}"

    print("KERNEL_OK")
</pallas_src>

<mosaic_0001>
module attributes {stable_mosaic.version = 11 : i64} {
  func.func @_lenet_fused_kernel(%arg0: i32, %arg1: memref<256x96xf32, #tpu.memory_space<vmem>>, %arg2: memref<5x96x168xbf16, #tpu.memory_space<vmem>>, %arg3: memref<1x168xf32, #tpu.memory_space<vmem>>, %arg4: memref<168x84xbf16, #tpu.memory_space<vmem>>, %arg5: memref<168x84xbf16, #tpu.memory_space<vmem>>, %arg6: memref<5x84x160xbf16, #tpu.memory_space<vmem>>, %arg7: memref<1x160xf32, #tpu.memory_space<vmem>>, %arg8: memref<160x80xbf16, #tpu.memory_space<vmem>>, %arg9: memref<160x80xbf16, #tpu.memory_space<vmem>>, %arg10: memref<5x80x120xbf16, #tpu.memory_space<vmem>>, %arg11: memref<1x120xf32, #tpu.memory_space<vmem>>, %arg12: memref<120x84xbf16, #tpu.memory_space<vmem>>, %arg13: memref<1x84xf32, #tpu.memory_space<vmem>>, %arg14: memref<84x128xbf16, #tpu.memory_space<vmem>>, %arg15: memref<1x128xf32, #tpu.memory_space<vmem>>, %arg16: memref<8x128xf32, #tpu.memory_space<vmem>>, %arg17: memref<256x84xf32, #tpu.memory_space<vmem>>, %arg18: memref<128x80xf32, #tpu.memory_space<vmem>>) attributes {dimension_semantics = [#tpu.dimension_semantics<parallel>], iteration_bounds = array<i64: 2>, scalar_prefetch = 0 : i64, scratch_operands = 2 : i64, tpu.core_type = #tpu.core_type<tc>, window_params = [{transform_indices = @transform_0, window_bounds = array<i64: 256, 96>}, {pipeline_mode = #tpu.pipeline_mode<synchronous>, transform_indices = @transform_1, window_bounds = array<i64: 5, 96, 168>}, {pipeline_mode = #tpu.pipeline_mode<synchronous>, transform_indices = @transform_2, window_bounds = array<i64: 1, 168>}, {pipeline_mode = #tpu.pipeline_mode<synchronous>, transform_indices = @transform_3, window_bounds = array<i64: 168, 84>}, {pipeline_mode = #tpu.pipeline_mode<synchronous>, transform_indices = @transform_4, window_bounds = array<i64: 168, 84>}, {pipeline_mode = #tpu.pipeline_mode<synchronous>, transform_indices = @transform_5, window_bounds = array<i64: 5, 84, 160>}, {pipeline_mode = #tpu.pipeline_mode<synchronous>, transform_indices = @transform_6, window_bounds = array<i64: 1, 160>}, {pipeline_mode = #tpu.pipeline_mode<synchronous>, transform_indices = @transform_7, window_bounds = array<i64: 160, 80>}, {pipeline_mode = #tpu.pipeline_mode<synchronous>, transform_indices = @transform_8, window_bounds = array<i64: 160, 80>}, {pipeline_mode = #tpu.pipeline_mode<synchronous>, transform_indices = @transform_9, window_bounds = array<i64: 5, 80, 120>}, {pipeline_mode = #tpu.pipeline_mode<synchronous>, transform_indices = @transform_10, window_bounds = array<i64: 1, 120>}, {pipeline_mode = #tpu.pipeline_mode<synchronous>, transform_indices = @transform_11, window_bounds = array<i64: 120, 84>}, {pipeline_mode = #tpu.pipeline_mode<synchronous>, transform_indices = @transform_12, window_bounds = array<i64: 1, 84>}, {pipeline_mode = #tpu.pipeline_mode<synchronous>, transform_indices = @transform_13, window_bounds = array<i64: 84, 128>}, {pipeline_mode = #tpu.pipeline_mode<synchronous>, transform_indices = @transform_14, window_bounds = array<i64: 1, 128>}, {transform_indices = @transform_15, window_bounds = array<i64: 8, 128>}]} {
    %c0 = arith.constant 0 : index
    %c0_0 = arith.constant 0 : index
    %0 = vector.load %arg1[%c0, %c0_0] : memref<256x96xf32, #tpu.memory_space<vmem>>, vector<256x96xf32>
    %1 = vector.extract_strided_slice %0 {offsets = [0, 0], sizes = [8, 96], strides = [1, 1]} : vector<256x96xf32> to vector<8x96xf32>
    %2 = tpu.concatenate %0, %1 in 0 : vector<256x96xf32>, vector<8x96xf32> -> vector<264x96xf32>
    %3 = arith.truncf %0 : vector<256x96xf32> to vector<256x96xbf16>
    %c0_1 = arith.constant 0 : index
    %c0_2 = arith.constant 0 : index
    %c0_3 = arith.constant 0 : index
    %4 = vector.load %arg2[%c0_1, %c0_2, %c0_3] : memref<5x96x168xbf16, #tpu.memory_space<vmem>>, vector<1x96x168xbf16>
    %5 = vector.shape_cast %4 : vector<1x96x168xbf16> to vector<96x168xbf16>
    %cst = arith.constant dense<0.000000e+00> : vector<256x168xf32>
    %6 = tpu.matmul %3, %5, %cst {dimension_numbers = #tpu.dot_dimension_numbers<[1], [0], [0], [1], [0, 0, 1, 1], [], []>} : vector<256x96xbf16>, vector<96x168xbf16>, vector<256x168xf32> -> vector<256x168xf32>
    %7 = vector.extract_strided_slice %2 {offsets = [1, 0], sizes = [256, 96], strides = [1, 1]} : vector<264x96xf32> to vector<256x96xf32>
    %8 = arith.truncf %7 : vector<256x96xf32> to vector<256x96xbf16>
    %c1 = arith.constant 1 : index
    %c0_4 = arith.constant 0 : index
    %c0_5 = arith.constant 0 : index
    %9 = vector.load %arg2[%c1, %c0_4, %c0_5] : memref<5x96x168xbf16, #tpu.memory_space<vmem>>, vector<1x96x168xbf16>
    %10 = vector.shape_cast %9 : vector<1x96x168xbf16> to vector<96x168xbf16>
    %cst_6 = arith.constant dense<0.000000e+00> : vector<256x168xf32>
    %11 = tpu.matmul %8, %10, %cst_6 {dimension_numbers = #tpu.dot_dimension_numbers<[1], [0], [0], [1], [0, 0, 1, 1], [], []>} : vector<256x96xbf16>, vector<96x168xbf16>, vector<256x168xf32> -> vector<256x168xf32>
    %12 = arith.addf %6, %11 : vector<256x168xf32>
    %13 = vector.extract_strided_slice %2 {offsets = [2, 0], sizes = [256, 96], strides = [1, 1]} : vector<264x96xf32> to vector<256x96xf32>
    %14 = arith.truncf %13 : vector<256x96xf32> to vector<256x96xbf16>
    %c2 = arith.constant 2 : index
    %c0_7 = arith.constant 0 : index
    %c0_8 = arith.constant 0 : index
    %15 = vector.load %arg2[%c2, %c0_7, %c0_8] : memref<5x96x168xbf16, #tpu.memory_space<vmem>>, vector<1x96x168xbf16>
    %16 = vector.shape_cast %15 : vector<1x96x168xbf16> to vector<96x168xbf16>
    %cst_9 = arith.constant dense<0.000000e+00> : vector<256x168xf32>
    %17 = tpu.matmul %14, %16, %cst_9 {dimension_numbers = #tpu.dot_dimension_numbers<[1], [0], [0], [1], [0, 0, 1, 1], [], []>} : vector<256x96xbf16>, vector<96x168xbf16>, vector<256x168xf32> -> vector<256x168xf32>
    %18 = arith.addf %12, %17 : vector<256x168xf32>
    %19 = vector.extract_strided_slice %2 {offsets = [3, 0], sizes = [256, 96], strides = [1, 1]} : vector<264x96xf32> to vector<256x96xf32>
    %20 = arith.truncf %19 : vector<256x96xf32> to vector<256x96xbf16>
    %c3 = arith.constant 3 : index
    %c0_10 = arith.constant 0 : index
    %c0_11 = arith.constant 0 : index
    %21 = vector.load %arg2[%c3, %c0_10, %c0_11] : memref<5x96x168xbf16, #tpu.memory_space<vmem>>, vector<1x96x168xbf16>
    %22 = vector.shape_cast %21 : vector<1x96x168xbf16> to vector<96x168xbf16>
    %cst_12 = arith.constant dense<0.000000e+00> : vector<256x168xf32>
    %23 = tpu.matmul %20, %22, %cst_12 {dimension_numbers = #tpu.dot_dimension_numbers<[1], [0], [0], [1], [0, 0, 1, 1], [], []>} : vector<256x96xbf16>, vector<96x168xbf16>, vector<256x168xf32> -> vector<256x168xf32>
    %24 = arith.addf %18, %23 : vector<256x168xf32>
    %25 = vector.extract_strided_slice %2 {offsets = [4, 0], sizes = [256, 96], strides = [1, 1]} : vector<264x96xf32> to vector<256x96xf32>
    %26 = arith.truncf %25 : vector<256x96xf32> to vector<256x96xbf16>
    %c4 = arith.constant 4 : index
    %c0_13 = arith.constant 0 : index
    %c0_14 = arith.constant 0 : index
    %27 = vector.load %arg2[%c4, %c0_13, %c0_14] : memref<5x96x168xbf16, #tpu.memory_space<vmem>>, vector<1x96x168xbf16>
    %28 = vector.shape_cast %27 : vector<1x96x168xbf16> to vector<96x168xbf16>
    %cst_15 = arith.constant dense<0.000000e+00> : vector<256x168xf32>
    %29 = tpu.matmul %26, %28, %cst_15 {dimension_numbers = #tpu.dot_dimension_numbers<[1], [0], [0], [1], [0, 0, 1, 1], [], []>} : vector<256x96xbf16>, vector<96x168xbf16>, vector<256x168xf32> -> vector<256x168xf32>
    %30 = arith.addf %24, %29 : vector<256x168xf32>
    %c0_16 = arith.constant 0 : index
    %c0_17 = arith.constant 0 : index
    %31 = vector.load %arg3[%c0_16, %c0_17] : memref<1x168xf32, #tpu.memory_space<vmem>>, vector<1x168xf32>
    %32 = vector.broadcast %31 : vector<1x168xf32> to vector<256x168xf32>
    %33 = arith.addf %30, %32 : vector<256x168xf32>
    %cst_18 = arith.constant 0.000000e+00 : f32
    %34 = vector.broadcast %cst_18 : f32 to vector<256x168xf32>
    %35 = arith.maximumf %33, %34 : vector<256x168xf32>
    %36 = arith.truncf %35 : vector<256x168xf32> to vector<256x168xbf16>
    %c0_19 = arith.constant 0 : index
    %c0_20 = arith.constant 0 : index
    %37 = vector.load %arg4[%c0_19, %c0_20] : memref<168x84xbf16, #tpu.memory_space<vmem>>, vector<168x84xbf16>
    %cst_21 = arith.constant dense<0.000000e+00> : vector<256x84xf32>
    %38 = tpu.matmul %36, %37, %cst_21 {dimension_numbers = #tpu.dot_dimension_numbers<[1], [0], [0], [1], [0, 0, 1, 1], [], []>} : vector<256x168xbf16>, vector<168x84xbf16>, vector<256x84xf32> -> vector<256x84xf32>
    %c0_22 = arith.constant 0 : index
    %c0_23 = arith.constant 0 : index
    %39 = vector.load %arg5[%c0_22, %c0_23] : memref<168x84xbf16, #tpu.memory_space<vmem>>, vector<168x84xbf16>
    %cst_24 = arith.constant dense<0.000000e+00> : vector<256x84xf32>
    %40 = tpu.matmul %36, %39, %cst_24 {dimension_numbers = #tpu.dot_dimension_numbers<[1], [0], [0], [1], [0, 0, 1, 1], [], []>} : vector<256x168xbf16>, vector<168x84xbf16>, vector<256x84xf32> -> vector<256x84xf32>
    %41 = arith.maximumf %38, %40 : vector<256x84xf32>
    %c0_25 = arith.constant 0 : index
    %c0_26 = arith.constant 0 : index
    %42 = vector.load %arg17[%c0_25, %c0_26] : memref<256x84xf32, #tpu.memory_space<vmem>>, vector<256x84xf32>
    tpu.vector_store %arg17[%c0_25, %c0_26], %41 {strides = array<i32>} : memref<256x84xf32, #tpu.memory_space<vmem>>, vector<256x84xf32>,
    %c0_27 = arith.constant 0 : index
    %c0_28 = arith.constant 0 : index
    %43 = tpu.strided_load %arg17[%c0_27, %c0_28] {strides = array<i32: 2, 1>} : memref<256x84xf32, #tpu.memory_space<vmem>>, vector<128x84xf32>
    %c1_29 = arith.constant 1 : index
    %c0_30 = arith.constant 0 : index
    %44 = tpu.strided_load %arg17[%c1_29, %c0_30] {strides = array<i32: 2, 1>} : memref<256x84xf32, #tpu.memory_space<vmem>>, vector<128x84xf32>
    %45 = arith.maximumf %43, %44 : vector<128x84xf32>
    %46 = vector.extract_strided_slice %45 {offsets = [0, 0], sizes = [8, 84], strides = [1, 1]} : vector<128x84xf32> to vector<8x84xf32>
    %47 = tpu.concatenate %45, %46 in 0 : vector<128x84xf32>, vector<8x84xf32> -> vector<136x84xf32>
    %48 = arith.truncf %45 : vector<128x84xf32> to vector<128x84xbf16>
    %c0_31 = arith.constant 0 : index
    %c0_32 = arith.constant 0 : index
    %c0_33 = arith.constant 0 : index
    %49 = vector.load %arg6[%c0_31, %c0_32, %c0_33] : memref<5x84x160xbf16, #tpu.memory_space<vmem>>, vector<1x84x160xbf16>
    %50 = vector.shape_cast %49 : vector<1x84x160xbf16> to vector<84x160xbf16>
    %cst_34 = arith.constant dense<0.000000e+00> : vector<128x160xf32>
    %51 = tpu.matmul %48, %50, %cst_34 {dimension_numbers = #tpu.dot_dimension_numbers<[1], [0], [0], [1], [0, 0, 1, 1], [], []>} : vector<128x84xbf16>, vector<84x160xbf16>, vector<128x160xf32> -> vector<128x160xf32>
    %52 = vector.extract_strided_slice %47 {offsets = [1, 0], sizes = [128, 84], strides = [1, 1]} : vector<136x84xf32> to vector<128x84xf32>
    %53 = arith.truncf %52 : vector<128x84xf32> to vector<128x84xbf16>
    %c1_35 = arith.constant 1 : index
    %c0_36 = arith.constant 0 : index
    %c0_37 = arith.constant 0 : index
    %54 = vector.load %arg6[%c1_35, %c0_36, %c0_37] : memref<5x84x160xbf16, #tpu.memory_space<vmem>>, vector<1x84x160xbf16>
    %55 = vector.shape_cast %54 : vector<1x84x160xbf16> to vector<84x160xbf16>
    %cst_38 = arith.constant dense<0.000000e+00> : vector<128x160xf32>
    %56 = tpu.matmul %53, %55, %cst_38 {dimension_numbers = #tpu.dot_dimension_numbers<[1], [0], [0], [1], [0, 0, 1, 1], [], []>} : vector<128x84xbf16>, vector<84x160xbf16>, vector<128x160xf32> -> vector<128x160xf32>
    %57 = arith.addf %51, %56 : vector<128x160xf32>
    %58 = vector.extract_strided_slice %47 {offsets = [2, 0], sizes = [128, 84], strides = [1, 1]} : vector<136x84xf32> to vector<128x84xf32>
    %59 = arith.truncf %58 : vector<128x84xf32> to vector<128x84xbf16>
    %c2_39 = arith.constant 2 : index
    %c0_40 = arith.constant 0 : index
    %c0_41 = arith.constant 0 : index
    %60 = vector.load %arg6[%c2_39, %c0_40, %c0_41] : memref<5x84x160xbf16, #tpu.memory_space<vmem>>, vector<1x84x160xbf16>
    %61 = vector.shape_cast %60 : vector<1x84x160xbf16> to vector<84x160xbf16>
    %cst_42 = arith.constant dense<0.000000e+00> : vector<128x160xf32>
    %62 = tpu.matmul %59, %61, %cst_42 {dimension_numbers = #tpu.dot_dimension_numbers<[1], [0], [0], [1], [0, 0, 1, 1], [], []>} : vector<128x84xbf16>, vector<84x160xbf16>, vector<128x160xf32> -> vector<128x160xf32>
    %63 = arith.addf %57, %62 : vector<128x160xf32>
    %64 = vector.extract_strided_slice %47 {offsets = [3, 0], sizes = [128, 84], strides = [1, 1]} : vector<136x84xf32> to vector<128x84xf32>
    %65 = arith.truncf %64 : vector<128x84xf32> to vector<128x84xbf16>
    %c3_43 = arith.constant 3 : index
    %c0_44 = arith.constant 0 : index
    %c0_45 = arith.constant 0 : index
    %66 = vector.load %arg6[%c3_43, %c0_44, %c0_45] : memref<5x84x160xbf16, #tpu.memory_space<vmem>>, vector<1x84x160xbf16>
    %67 = vector.shape_cast %66 : vector<1x84x160xbf16> to vector<84x160xbf16>
    %cst_46 = arith.constant dense<0.000000e+00> : vector<128x160xf32>
    %68 = tpu.matmul %65, %67, %cst_46 {dimension_numbers = #tpu.dot_dimension_numbers<[1], [0], [0], [1], [0, 0, 1, 1], [], []>} : vector<128x84xbf16>, vector<84x160xbf16>, vector<128x160xf32> -> vector<128x160xf32>
    %69 = arith.addf %63, %68 : vector<128x160xf32>
    %70 = vector.extract_strided_slice %47 {offsets = [4, 0], sizes = [128, 84], strides = [1, 1]} : vector<136x84xf32> to vector<128x84xf32>
    %71 = arith.truncf %70 : vector<128x84xf32> to vector<128x84xbf16>
    %c4_47 = arith.constant 4 : index
    %c0_48 = arith.constant 0 : index
    %c0_49 = arith.constant 0 : index
    %72 = vector.load %arg6[%c4_47, %c0_48, %c0_49] : memref<5x84x160xbf16, #tpu.memory_space<vmem>>, vector<1x84x160xbf16>
    %73 = vector.shape_cast %72 : vector<1x84x160xbf16> to vector<84x160xbf16>
    %cst_50 = arith.constant dense<0.000000e+00> : vector<128x160xf32>
    %74 = tpu.matmul %71, %73, %cst_50 {dimension_numbers = #tpu.dot_dimension_numbers<[1], [0], [0], [1], [0, 0, 1, 1], [], []>} : vector<128x84xbf16>, vector<84x160xbf16>, vector<128x160xf32> -> vector<128x160xf32>
    %75 = arith.addf %69, %74 : vector<128x160xf32>
    %c0_51 = arith.constant 0 : index
    %c0_52 = arith.constant 0 : index
    %76 = vector.load %arg7[%c0_51, %c0_52] : memref<1x160xf32, #tpu.memory_space<vmem>>, vector<1x160xf32>
    %77 = vector.broadcast %76 : vector<1x160xf32> to vector<128x160xf32>
    %78 = arith.addf %75, %77 : vector<128x160xf32>
    %cst_53 = arith.constant 0.000000e+00 : f32
    %79 = vector.broadcast %cst_53 : f32 to vector<128x160xf32>
    %80 = arith.maximumf %78, %79 : vector<128x160xf32>
    %81 = arith.truncf %80 : vector<128x160xf32> to vector<128x160xbf16>
    %c0_54 = arith.constant 0 : index
    %c0_55 = arith.constant 0 : index
    %82 = vector.load %arg8[%c0_54, %c0_55] : memref<160x80xbf16, #tpu.memory_space<vmem>>, vector<160x80xbf16>
    %cst_56 = arith.constant dense<0.000000e+00> : vector<128x80xf32>
    %83 = tpu.matmul %81, %82, %cst_56 {dimension_numbers = #tpu.dot_dimension_numbers<[1], [0], [0], [1], [0, 0, 1, 1], [], []>} : vector<128x160xbf16>, vector<160x80xbf16>, vector<128x80xf32> -> vector<128x80xf32>
    %c0_57 = arith.constant 0 : index
    %c0_58 = arith.constant 0 : index
    %84 = vector.load %arg9[%c0_57, %c0_58] : memref<160x80xbf16, #tpu.memory_space<vmem>>, vector<160x80xbf16>
    %cst_59 = arith.constant dense<0.000000e+00> : vector<128x80xf32>
    %85 = tpu.matmul %81, %84, %cst_59 {dimension_numbers = #tpu.dot_dimension_numbers<[1], [0], [0], [1], [0, 0, 1, 1], [], []>} : vector<128x160xbf16>, vector<160x80xbf16>, vector<128x80xf32> -> vector<128x80xf32>
    %86 = arith.maximumf %83, %85 : vector<128x80xf32>
    %c0_60 = arith.constant 0 : index
    %c0_61 = arith.constant 0 : index
    %87 = vector.load %arg18[%c0_60, %c0_61] : memref<128x80xf32, #tpu.memory_space<vmem>>, vector<128x80xf32>
    tpu.vector_store %arg18[%c0_60, %c0_61], %86 {strides = array<i32>} : memref<128x80xf32, #tpu.memory_space<vmem>>, vector<128x80xf32>,
    %c0_62 = arith.constant 0 : index
    %c0_63 = arith.constant 0 : index
    %88 = tpu.strided_load %arg18[%c0_62, %c0_63] {strides = array<i32: 16, 1>} : memref<128x80xf32, #tpu.memory_space<vmem>>, vector<8x80xf32>
    %c1_64 = arith.constant 1 : index
    %c0_65 = arith.constant 0 : index
    %89 = tpu.strided_load %arg18[%c1_64, %c0_65] {strides = array<i32: 16, 1>} : memref<128x80xf32, #tpu.memory_space<vmem>>, vector<8x80xf32>
    %90 = arith.maximumf %88, %89 : vector<8x80xf32>
    %91 = arith.truncf %90 : vector<8x80xf32> to vector<8x80xbf16>
    %c0_66 = arith.constant 0 : index
    %c0_67 = arith.constant 0 : index
    %c0_68 = arith.constant 0 : index
    %92 = vector.load %arg10[%c0_66, %c0_67, %c0_68] : memref<5x80x120xbf16, #tpu.memory_space<vmem>>, vector<1x80x120xbf16>
    %93 = vector.shape_cast %92 : vector<1x80x120xbf16> to vector<80x120xbf16>
    %cst_69 = arith.constant dense<0.000000e+00> : vector<8x120xf32>
    %94 = tpu.matmul %91, %93, %cst_69 {dimension_numbers = #tpu.dot_dimension_numbers<[1], [0], [0], [1], [0, 0, 1, 1], [], []>} : vector<8x80xbf16>, vector<80x120xbf16>, vector<8x120xf32> -> vector<8x120xf32>
    %c2_70 = arith.constant 2 : index
    %c0_71 = arith.constant 0 : index
    %95 = tpu.strided_load %arg18[%c2_70, %c0_71] {strides = array<i32: 16, 1>} : memref<128x80xf32, #tpu.memory_space<vmem>>, vector<8x80xf32>
    %c3_72 = arith.constant 3 : index
    %c0_73 = arith.constant 0 : index
    %96 = tpu.strided_load %arg18[%c3_72, %c0_73] {strides = array<i32: 16, 1>} : memref<128x80xf32, #tpu.memory_space<vmem>>, vector<8x80xf32>
    %97 = arith.maximumf %95, %96 : vector<8x80xf32>
    %98 = arith.truncf %97 : vector<8x80xf32> to vector<8x80xbf16>
    %c1_74 = arith.constant 1 : index
    %c0_75 = arith.constant 0 : index
    %c0_76 = arith.constant 0 : index
    %99 = vector.load %arg10[%c1_74, %c0_75, %c0_76] : memref<5x80x120xbf16, #tpu.memory_space<vmem>>, vector<1x80x120xbf16>
    %100 = vector.shape_cast %99 : vector<1x80x120xbf16> to vector<80x120xbf16>
    %cst_77 = arith.constant dense<0.000000e+00> : vector<8x120xf32>
    %101 = tpu.matmul %98, %100, %cst_77 {dimension_numbers = #tpu.dot_dimension_numbers<[1], [0], [0], [1], [0, 0, 1, 1], [], []>} : vector<8x80xbf16>, vector<80x120xbf16>, vector<8x120xf32> -> vector<8x120xf32>
    %102 = arith.addf %94, %101 : vector<8x120xf32>
    %c4_78 = arith.constant 4 : index
    %c0_79 = arith.constant 0 : index
    %103 = tpu.strided_load %arg18[%c4_78, %c0_79] {strides = array<i32: 16, 1>} : memref<128x80xf32, #tpu.memory_space<vmem>>, vector<8x80xf32>
    %c5 = arith.constant 5 : index
    %c0_80 = arith.constant 0 : index
    %104 = tpu.strided_load %arg18[%c5, %c0_80] {strides = array<i32: 16, 1>} : memref<128x80xf32, #tpu.memory_space<vmem>>, vector<8x80xf32>
    %105 = arith.maximumf %103, %104 : vector<8x80xf32>
    %106 = arith.truncf %105 : vector<8x80xf32> to vector<8x80xbf16>
    %c2_81 = arith.constant 2 : index
    %c0_82 = arith.constant 0 : index
    %c0_83 = arith.constant 0 : index
    %107 = vector.load %arg10[%c2_81, %c0_82, %c0_83] : memref<5x80x120xbf16, #tpu.memory_space<vmem>>, vector<1x80x120xbf16>
    %108 = vector.shape_cast %107 : vector<1x80x120xbf16> to vector<80x120xbf16>
    %cst_84 = arith.constant dense<0.000000e+00> : vector<8x120xf32>
    %109 = tpu.matmul %106, %108, %cst_84 {dimension_numbers = #tpu.dot_dimension_numbers<[1], [0], [0], [1], [0, 0, 1, 1], [], []>} : vector<8x80xbf16>, vector<80x120xbf16>, vector<8x120xf32> -> vector<8x120xf32>
    %110 = arith.addf %102, %109 : vector<8x120xf32>
    %c6 = arith.constant 6 : index
    %c0_85 = arith.constant 0 : index
    %111 = tpu.strided_load %arg18[%c6, %c0_85] {strides = array<i32: 16, 1>} : memref<128x80xf32, #tpu.memory_space<vmem>>, vector<8x80xf32>
    %c7 = arith.constant 7 : index
    %c0_86 = arith.constant 0 : index
    %112 = tpu.strided_load %arg18[%c7, %c0_86] {strides = array<i32: 16, 1>} : memref<128x80xf32, #tpu.memory_space<vmem>>, vector<8x80xf32>
    %113 = arith.maximumf %111, %112 : vector<8x80xf32>
    %114 = arith.truncf %113 : vector<8x80xf32> to vector<8x80xbf16>
    %c3_87 = arith.constant 3 : index
    %c0_88 = arith.constant 0 : index
    %c0_89 = arith.constant 0 : index
    %115 = vector.load %arg10[%c3_87, %c0_88, %c0_89] : memref<5x80x120xbf16, #tpu.memory_space<vmem>>, vector<1x80x120xbf16>
    %116 = vector.shape_cast %115 : vector<1x80x120xbf16> to vector<80x120xbf16>
    %cst_90 = arith.constant dense<0.000000e+00> : vector<8x120xf32>
    %117 = tpu.matmul %114, %116, %cst_90 {dimension_numbers = #tpu.dot_dimension_numbers<[1], [0], [0], [1], [0, 0, 1, 1], [], []>} : vector<8x80xbf16>, vector<80x120xbf16>, vector<8x120xf32> -> vector<8x120xf32>
    %118 = arith.addf %110, %117 : vector<8x120xf32>
    %c8 = arith.constant 8 : index
    %c0_91 = arith.constant 0 : index
    %119 = tpu.strided_load %arg18[%c8, %c0_91] {strides = array<i32: 16, 1>} : memref<128x80xf32, #tpu.memory_space<vmem>>, vector<8x80xf32>
    %c9 = arith.constant 9 : index
    %c0_92 = arith.constant 0 : index
    %120 = tpu.strided_load %arg18[%c9, %c0_92] {strides = array<i32: 16, 1>} : memref<128x80xf32, #tpu.memory_space<vmem>>, vector<8x80xf32>
    %121 = arith.maximumf %119, %120 : vector<8x80xf32>
    %122 = arith.truncf %121 : vector<8x80xf32> to vector<8x80xbf16>
    %c4_93 = arith.constant 4 : index
    %c0_94 = arith.constant 0 : index
    %c0_95 = arith.constant 0 : index
    %123 = vector.load %arg10[%c4_93, %c0_94, %c0_95] : memref<5x80x120xbf16, #tpu.memory_space<vmem>>, vector<1x80x120xbf16>
    %124 = vector.shape_cast %123 : vector<1x80x120xbf16> to vector<80x120xbf16>
    %cst_96 = arith.constant dense<0.000000e+00> : vector<8x120xf32>
    %125 = tpu.matmul %122, %124, %cst_96 {dimension_numbers = #tpu.dot_dimension_numbers<[1], [0], [0], [1], [0, 0, 1, 1], [], []>} : vector<8x80xbf16>, vector<80x120xbf16>, vector<8x120xf32> -> vector<8x120xf32>
    %126 = arith.addf %118, %125 : vector<8x120xf32>
    %c0_97 = arith.constant 0 : index
    %c0_98 = arith.constant 0 : index
    %127 = vector.load %arg11[%c0_97, %c0_98] : memref<1x120xf32, #tpu.memory_space<vmem>>, vector<1x120xf32>
    %128 = vector.broadcast %127 : vector<1x120xf32> to vector<8x120xf32>
    %129 = arith.addf %126, %128 : vector<8x120xf32>
    %cst_99 = arith.constant 0.000000e+00 : f32
    %130 = vector.broadcast %cst_99 : f32 to vector<8x120xf32>
    %131 = arith.maximumf %129, %130 : vector<8x120xf32>
    %132 = arith.truncf %131 : vector<8x120xf32> to vector<8x120xbf16>
    %c0_100 = arith.constant 0 : index
    %c0_101 = arith.constant 0 : index
    %133 = vector.load %arg12[%c0_100, %c0_101] : memref<120x84xbf16, #tpu.memory_space<vmem>>, vector<120x84xbf16>
    %cst_102 = arith.constant dense<0.000000e+00> : vector<8x84xf32>
    %134 = tpu.matmul %132, %133, %cst_102 {dimension_numbers = #tpu.dot_dimension_numbers<[1], [0], [0], [1], [0, 0, 1, 1], [], []>} : vector<8x120xbf16>, vector<120x84xbf16>, vector<8x84xf32> -> vector<8x84xf32>
    %c0_103 = arith.constant 0 : index
    %c0_104 = arith.constant 0 : index
    %135 = vector.load %arg13[%c0_103, %c0_104] : memref<1x84xf32, #tpu.memory_space<vmem>>, vector<1x84xf32>
    %136 = vector.broadcast %135 : vector<1x84xf32> to vector<8x84xf32>
    %137 = arith.addf %134, %136 : vector<8x84xf32>
    %cst_105 = arith.constant 0.000000e+00 : f32
    %138 = vector.broadcast %cst_105 : f32 to vector<8x84xf32>
    %139 = arith.maximumf %137, %138 : vector<8x84xf32>
    %140 = arith.truncf %139 : vector<8x84xf32> to vector<8x84xbf16>
    %c0_106 = arith.constant 0 : index
    %c0_107 = arith.constant 0 : index
    %141 = vector.load %arg14[%c0_106, %c0_107] : memref<84x128xbf16, #tpu.memory_space<vmem>>, vector<84x128xbf16>
    %cst_108 = arith.constant dense<0.000000e+00> : vector<8x128xf32>
    %142 = tpu.matmul %140, %141, %cst_108 {dimension_numbers = #tpu.dot_dimension_numbers<[1], [0], [0], [1], [0, 0, 1, 1], [], []>} : vector<8x84xbf16>, vector<84x128xbf16>, vector<8x128xf32> -> vector<8x128xf32>
    %c0_109 = arith.constant 0 : index
    %c0_110 = arith.constant 0 : index
    %143 = vector.load %arg15[%c0_109, %c0_110] : memref<1x128xf32, #tpu.memory_space<vmem>>, vector<1x128xf32>
    %144 = vector.broadcast %143 : vector<1x128xf32> to vector<8x128xf32>
    %145 = arith.addf %142, %144 : vector<8x128xf32>
    %c0_111 = arith.constant 0 : index
    %c0_112 = arith.constant 0 : index
    %146 = vector.load %arg16[%c0_111, %c0_112] : memref<8x128xf32, #tpu.memory_space<vmem>>, vector<8x128xf32>
    tpu.vector_store %arg16[%c0_111, %c0_112], %145 {strides = array<i32>} : memref<8x128xf32, #tpu.memory_space<vmem>>, vector<8x128xf32>,
    return
  }
  func.func @transform_0(%arg0: i32) -> (i32, i32) {
    %c0_i32 = arith.constant 0 : i32
    %c0_i32_0 = arith.constant 0 : i32
    return %arg0, %c0_i32 : i32, i32
  }
  func.func @transform_1(%arg0: i32) -> (i32, i32, i32) {
    %c0_i32 = arith.constant 0 : i32
    %c0_i32_0 = arith.constant 0 : i32
    %c0_i32_1 = arith.constant 0 : i32
    %c0_i32_2 = arith.constant 0 : i32
    return %c0_i32, %c0_i32_0, %c0_i32_1 : i32, i32, i32
  }
  func.func @transform_2(%arg0: i32) -> (i32, i32) {
    %c0_i32 = arith.constant 0 : i32
    %c0_i32_0 = arith.constant 0 : i32
    %c0_i32_1 = arith.constant 0 : i32
    return %c0_i32, %c0_i32_0 : i32, i32
  }
  func.func @transform_3(%arg0: i32) -> (i32, i32) {
    %c0_i32 = arith.constant 0 : i32
    %c0_i32_0 = arith.constant 0 : i32
    %c0_i32_1 = arith.constant 0 : i32
    return %c0_i32, %c0_i32_0 : i32, i32
  }
  func.func @transform_4(%arg0: i32) -> (i32, i32) {
    %c0_i32 = arith.constant 0 : i32
    %c0_i32_0 = arith.constant 0 : i32
    %c0_i32_1 = arith.constant 0 : i32
    return %c0_i32, %c0_i32_0 : i32, i32
  }
  func.func @transform_5(%arg0: i32) -> (i32, i32, i32) {
    %c0_i32 = arith.constant 0 : i32
    %c0_i32_0 = arith.constant 0 : i32
    %c0_i32_1 = arith.constant 0 : i32
    %c0_i32_2 = arith.constant 0 : i32
    return %c0_i32, %c0_i32_0, %c0_i32_1 : i32, i32, i32
  }
  func.func @transform_6(%arg0: i32) -> (i32, i32) {
    %c0_i32 = arith.constant 0 : i32
    %c0_i32_0 = arith.constant 0 : i32
    %c0_i32_1 = arith.constant 0 : i32
    return %c0_i32, %c0_i32_0 : i32, i32
  }
  func.func @transform_7(%arg0: i32) -> (i32, i32) {
    %c0_i32 = arith.constant 0 : i32
    %c0_i32_0 = arith.constant 0 : i32
    %c0_i32_1 = arith.constant 0 : i32
    return %c0_i32, %c0_i32_0 : i32, i32
  }
  func.func @transform_8(%arg0: i32) -> (i32, i32) {
    %c0_i32 = arith.constant 0 : i32
    %c0_i32_0 = arith.constant 0 : i32
    %c0_i32_1 = arith.constant 0 : i32
    return %c0_i32, %c0_i32_0 : i32, i32
  }
  func.func @transform_9(%arg0: i32) -> (i32, i32, i32) {
    %c0_i32 = arith.constant 0 : i32
    %c0_i32_0 = arith.constant 0 : i32
    %c0_i32_1 = arith.constant 0 : i32
    %c0_i32_2 = arith.constant 0 : i32
    return %c0_i32, %c0_i32_0, %c0_i32_1 : i32, i32, i32
  }
  func.func @transform_10(%arg0: i32) -> (i32, i32) {
    %c0_i32 = arith.constant 0 : i32
    %c0_i32_0 = arith.constant 0 : i32
    %c0_i32_1 = arith.constant 0 : i32
    return %c0_i32, %c0_i32_0 : i32, i32
  }
  func.func @transform_11(%arg0: i32) -> (i32, i32) {
    %c0_i32 = arith.constant 0 : i32
    %c0_i32_0 = arith.constant 0 : i32
    %c0_i32_1 = arith.constant 0 : i32
    return %c0_i32, %c0_i32_0 : i32, i32
  }
  func.func @transform_12(%arg0: i32) -> (i32, i32) {
    %c0_i32 = arith.constant 0 : i32
    %c0_i32_0 = arith.constant 0 : i32
    %c0_i32_1 = arith.constant 0 : i32
    return %c0_i32, %c0_i32_0 : i32, i32
  }
  func.func @transform_13(%arg0: i32) -> (i32, i32) {
    %c0_i32 = arith.constant 0 : i32
    %c0_i32_0 = arith.constant 0 : i32
    %c0_i32_1 = arith.constant 0 : i32
    return %c0_i32, %c0_i32_0 : i32, i32
  }
  func.func @transform_14(%arg0: i32) -> (i32, i32) {
    %c0_i32 = arith.constant 0 : i32
    %c0_i32_0 = arith.constant 0 : i32
    %c0_i32_1 = arith.constant 0 : i32
    return %c0_i32, %c0_i32_0 : i32, i32
  }
  func.func @transform_15(%arg0: i32) -> (i32, i32) {
    %c0_i32 = arith.constant 0 : i32
    %c0_i32_0 = arith.constant 0 : i32
    return %arg0, %c0_i32 : i32, i32
  }
}

</mosaic_0001>

<llo_original>
// kernel: net_forward.1
$region0: #{net_forward.1}
  #allocation0 [shape = 'u32[]', space=smem, size = 0x4, offset = 0x4, fixed_abs, tag = 'smem constant byte address 0x4 - core index']
  #allocation1 [shape = 'u32[144,128]{1,0:T(1,128)}', space=vmem, size = 0x12000, scoped, tag = 'internal scratch']
  #allocation2 [shape = 'f32[256,84]{1,0:T(8,128)}', space=vmem, size = 0x20000, scoped, tag = 'scratch operand']
  #allocation3 [shape = 'f32[128,80]{1,0:T(8,128)}', space=vmem, size = 0x10000, scoped, tag = 'scratch operand']
  %s0 = inlined_call_operand.vmem [shape: f32[512,96], index: 0, kind: input, shape index: {}]
  %s1 = inlined_call_operand.vmem [shape: bf16[5,96,168], index: 1, kind: input, shape index: {}]
  %s2 = inlined_call_operand.vmem [shape: f32[1,168], index: 2, kind: input, shape index: {}]
  %s3 = inlined_call_operand.vmem [shape: bf16[168,84], index: 3, kind: input, shape index: {}]
  %s4 = inlined_call_operand.vmem [shape: bf16[168,84], index: 4, kind: input, shape index: {}]
  %s5 = inlined_call_operand.vmem [shape: bf16[5,84,160], index: 5, kind: input, shape index: {}]
  %s6 = inlined_call_operand.vmem [shape: f32[1,160], index: 6, kind: input, shape index: {}]
  %s7 = inlined_call_operand.vmem [shape: bf16[160,80], index: 7, kind: input, shape index: {}]
  %s8 = inlined_call_operand.vmem [shape: bf16[160,80], index: 8, kind: input, shape index: {}]
  %s9 = inlined_call_operand.vmem [shape: bf16[5,80,120], index: 9, kind: input, shape index: {}]
  %s10 = inlined_call_operand.vmem [shape: f32[1,120], index: 10, kind: input, shape index: {}]
  %s11 = inlined_call_operand.vmem [shape: bf16[120,84], index: 11, kind: input, shape index: {}]
  %s12 = inlined_call_operand.vmem [shape: f32[1,84], index: 12, kind: input, shape index: {}]
  %s13 = inlined_call_operand.vmem [shape: bf16[84,128], index: 13, kind: input, shape index: {}]
  %s14 = inlined_call_operand.vmem [shape: f32[1,128], index: 14, kind: input, shape index: {}]
  %s15 = inlined_call_operand.hbm [shape: f32[16,128], index: 15, kind: output, shape index: {}]
  %s16 = sld [smem:[#allocation0]]
  $region93: #{net_forward.1} parent=0
    _
  %s18 = ssub.s32 1, %s16
  %s19 = scalar_select 0, %s18, %s16
  $region1: #{net_forward.1} parent=0
    #allocation4 [shape = 'u8[8192]{0}', space=vmem, size = 0x2000, scoped, tag = 'output window, operand 0']
    #allocation5 [shape = 's32[2]{0}', space=sflag, size = 0x8, scoped, tag = 'scoped memory for net_forward.1']
    %20 = vsyncpa [#allocation5], 0
    %s21 = scalar_lea.sflag [#allocation5], 1
    %22 = vsyncpa %s21, 0
    loop: start=0, step=1, limit=4
    $region2: #{net_forward.1} parent=1 // loop_pre_header
      _
    $region3: #{net_forward.1} parent=1 // loop_header
      %s24 = sphi 0, %s28
      %p25 = scmp.ge.s32.totalorder %s24, 4
      %s34 = sphi 0, %s36
      %s37 = sphi 0, %s34
      %s38 = sphi 0, %s37
      %s54 = sphi 0, %s38
      %s58 = sphi 0, %s58
      %s60 = sphi 0, %s58
      %s61 = sphi 0, %s60
      %s75 = sphi 0, %s61
      %s79 = sphi 0, %s79
      %s81 = sphi 0, %s79
      %s82 = sphi 0, %s81
      %s96 = sphi 0, %s82
      %s100 = sphi 0, %s100
      %s102 = sphi 0, %s100
      %s103 = sphi 0, %s102
      %s117 = sphi 0, %s103
      %s121 = sphi 0, %s121
      %s123 = sphi 0, %s121
      %s124 = sphi 0, %s123
      %s138 = sphi 0, %s124
      %s142 = sphi 0, %s142
      %s144 = sphi 0, %s142
      %s145 = sphi 0, %s144
      %s159 = sphi 0, %s145
      %s163 = sphi 0, %s163
      %s165 = sphi 0, %s163
      %s166 = sphi 0, %s165
      %s180 = sphi 0, %s166
      %s184 = sphi 0, %s184
      %s186 = sphi 0, %s184
      %s187 = sphi 0, %s186
      %s201 = sphi 0, %s187
      %s205 = sphi 0, %s205
      %s207 = sphi 0, %s205
      %s208 = sphi 0, %s207
      %s222 = sphi 0, %s208
      %s226 = sphi 0, %s226
      %s228 = sphi 0, %s226
      %s229 = sphi 0, %s228
      %s243 = sphi 0, %s229
      %s247 = sphi 0, %s247
      %s249 = sphi 0, %s247
      %s250 = sphi 0, %s249
      %s264 = sphi 0, %s250
      %s268 = sphi 0, %s268
      %s270 = sphi 0, %s268
      %s271 = sphi 0, %s270
      %s285 = sphi 0, %s271
      %s289 = sphi 0, %s289
      %s291 = sphi 0, %s289
      %s292 = sphi 0, %s291
      %s306 = sphi 0, %s292
      %s310 = sphi 0, %s310
      %s312 = sphi 0, %s310
      %s313 = sphi 0, %s312
      %s327 = sphi 0, %s313
      %s331 = sphi 0, %s331
      %s333 = sphi 0, %s331
      %s334 = sphi 0, %s333
      %s348 = sphi 0, %s334
      %s354 = sphi 0, %s356
      %s357 = sphi 0, %s354
      %s358 = sphi 0, %s357
      %s374 = sphi 0, %s358
    $region4: #{net_forward.1} parent=1 // loop_header_branch
      %27 = sbr.rel (%p25) target = $region8
    $region5: #{net_forward.1} parent=1 // loop_body
      %s29 = ssub.s32 %s24, 1
      %s30 = ssub.s32 %s24, 2
      %s31 = sadd.s32 %s24, 1
      %s32 = ssub.s32 %s24, %s31
      %p33 = scmp.eq.s32.totalorder %s32, 0
      %s35 = sadd.s32 %s34, 1
      %s36 = scalar_select %p33, %s34, %s35
      %p39 = pneg %p33
      %p40 = scmp.eq.s32.totalorder %s24, 1
      %p41 = por %p39, %p40
      %p42 = scmp.ne.s32.totalorder %s34, %s37
      %p43 = scmp.eq.s32.totalorder %s24, 0
      %p44 = por %p42, %p43
      %p45 = scmp.ne.s32.totalorder %s34, %s37
      %p46 = scmp.eq.s32.totalorder %s29, 1
      %p47 = por %p45, %p46
      %p48 = scmp.ne.s32.totalorder %s37, %s38
      %p49 = scmp.eq.s32.totalorder %s29, 0
      %p50 = por %p48, %p49
      %p51 = scmp.ne.s32.totalorder %s37, %s38
      %p52 = scmp.eq.s32.totalorder %s30, 1
      %p53 = por %p51, %p52
      %p55 = scmp.ne.s32.totalorder %s38, %s54
      %p56 = scmp.eq.s32.totalorder %s30, 0
      %p57 = por %p55, %p56
      %s59 = sadd.s32 %s58, 1
      %p62 = scmp.eq.s32.totalorder %s24, 1
      %p63 = scmp.ne.s32.totalorder %s58, %s60
      %p64 = scmp.eq.s32.totalorder %s24, 0
      %p65 = por %p63, %p64
      %p66 = scmp.ne.s32.totalorder %s58, %s60
      %p67 = scmp.eq.s32.totalorder %s29, 1
      %p68 = por %p66, %p67
      %p69 = scmp.ne.s32.totalorder %s60, %s61
      %p70 = scmp.eq.s32.totalorder %s29, 0
      %p71 = por %p69, %p70
      %p72 = scmp.ne.s32.totalorder %s60, %s61
      %p73 = scmp.eq.s32.totalorder %s30, 1
      %p74 = por %p72, %p73
      %p76 = scmp.ne.s32.totalorder %s61, %s75
      %p77 = scmp.eq.s32.totalorder %s30, 0
      %p78 = por %p76, %p77
      %s80 = sadd.s32 %s79, 1
      %p83 = scmp.eq.s32.totalorder %s24, 1
      %p84 = scmp.ne.s32.totalorder %s79, %s81
      %p85 = scmp.eq.s32.totalorder %s24, 0
      %p86 = por %p84, %p85
      %p87 = scmp.ne.s32.totalorder %s79, %s81
      %p88 = scmp.eq.s32.totalorder %s29, 1
      %p89 = por %p87, %p88
      %p90 = scmp.ne.s32.totalorder %s81, %s82
      %p91 = scmp.eq.s32.totalorder %s29, 0
      %p92 = por %p90, %p91
      %p93 = scmp.ne.s32.totalorder %s81, %s82
      %p94 = scmp.eq.s32.totalorder %s30, 1
      %p95 = por %p93, %p94
      %p97 = scmp.ne.s32.totalorder %s82, %s96
      %p98 = scmp.eq.s32.totalorder %s30, 0
      %p99 = por %p97, %p98
      %s101 = sadd.s32 %s100, 1
      %p104 = scmp.eq.s32.totalorder %s24, 1
      %p105 = scmp.ne.s32.totalorder %s100, %s102
      %p106 = scmp.eq.s32.totalorder %s24, 0
      %p107 = por %p105, %p106
      %p108 = scmp.ne.s32.totalorder %s100, %s102
      %p109 = scmp.eq.s32.totalorder %s29, 1
      %p110 = por %p108, %p109
      %p111 = scmp.ne.s32.totalorder %s102, %s103
      %p112 = scmp.eq.s32.totalorder %s29, 0
      %p113 = por %p111, %p112
      %p114 = scmp.ne.s32.totalorder %s102, %s103
      %p115 = scmp.eq.s32.totalorder %s30, 1
      %p116 = por %p114, %p115
      %p118 = scmp.ne.s32.totalorder %s103, %s117
      %p119 = scmp.eq.s32.totalorder %s30, 0
      %p120 = por %p118, %p119
      %s122 = sadd.s32 %s121, 1
      %p125 = scmp.eq.s32.totalorder %s24, 1
      %p126 = scmp.ne.s32.totalorder %s121, %s123
      %p127 = scmp.eq.s32.totalorder %s24, 0
      %p128 = por %p126, %p127
      %p129 = scmp.ne.s32.totalorder %s121, %s123
      %p130 = scmp.eq.s32.totalorder %s29, 1
      %p131 = por %p129, %p130
      %p132 = scmp.ne.s32.totalorder %s123, %s124
      %p133 = scmp.eq.s32.totalorder %s29, 0
      %p134 = por %p132, %p133
      %p135 = scmp.ne.s32.totalorder %s123, %s124
      %p136 = scmp.eq.s32.totalorder %s30, 1
      %p137 = por %p135, %p136
      %p139 = scmp.ne.s32.totalorder %s124, %s138
      %p140 = scmp.eq.s32.totalorder %s30, 0
      %p141 = por %p139, %p140
      %s143 = sadd.s32 %s142, 1
      %p146 = scmp.eq.s32.totalorder %s24, 1
      %p147 = scmp.ne.s32.totalorder %s142, %s144
      %p148 = scmp.eq.s32.totalorder %s24, 0
      %p149 = por %p147, %p148
      %p150 = scmp.ne.s32.totalorder %s142, %s144
      %p151 = scmp.eq.s32.totalorder %s29, 1
      %p152 = por %p150, %p151
      %p153 = scmp.ne.s32.totalorder %s144, %s145
      %p154 = scmp.eq.s32.totalorder %s29, 0
      %p155 = por %p153, %p154
      %p156 = scmp.ne.s32.totalorder %s144, %s145
      %p157 = scmp.eq.s32.totalorder %s30, 1
      %p158 = por %p156, %p157
      %p160 = scmp.ne.s32.totalorder %s145, %s159
      %p161 = scmp.eq.s32.totalorder %s30, 0
      %p162 = por %p160, %p161
      %s164 = sadd.s32 %s163, 1
      %p167 = scmp.eq.s32.totalorder %s24, 1
      %p168 = scmp.ne.s32.totalorder %s163, %s165
      %p169 = scmp.eq.s32.totalorder %s24, 0
      %p170 = por %p168, %p169
      %p171 = scmp.ne.s32.totalorder %s163, %s165
      %p172 = scmp.eq.s32.totalorder %s29, 1
      %p173 = por %p171, %p172
      %p174 = scmp.ne.s32.totalorder %s165, %s166
      %p175 = scmp.eq.s32.totalorder %s29, 0
      %p176 = por %p174, %p175
      %p177 = scmp.ne.s32.totalorder %s165, %s166
      %p178 = scmp.eq.s32.totalorder %s30, 1
      %p179 = por %p177, %p178
      %p181 = scmp.ne.s32.totalorder %s166, %s180
      %p182 = scmp.eq.s32.totalorder %s30, 0
      %p183 = por %p181, %p182
      %s185 = sadd.s32 %s184, 1
      %p188 = scmp.eq.s32.totalorder %s24, 1
      %p189 = scmp.ne.s32.totalorder %s184, %s186
      %p190 = scmp.eq.s32.totalorder %s24, 0
      %p191 = por %p189, %p190
      %p192 = scmp.ne.s32.totalorder %s184, %s186
      %p193 = scmp.eq.s32.totalorder %s29, 1
      %p194 = por %p192, %p193
      %p195 = scmp.ne.s32.totalorder %s186, %s187
      %p196 = scmp.eq.s32.totalorder %s29, 0
      %p197 = por %p195, %p196
      %p198 = scmp.ne.s32.totalorder %s186, %s187
      %p199 = scmp.eq.s32.totalorder %s30, 1
      %p200 = por %p198, %p199
      %p202 = scmp.ne.s32.totalorder %s187, %s201
      %p203 = scmp.eq.s32.totalorder %s30, 0
      %p204 = por %p202, %p203
      %s206 = sadd.s32 %s205, 1
      %p209 = scmp.eq.s32.totalorder %s24, 1
      %p210 = scmp.ne.s32.totalorder %s205, %s207
      %p211 = scmp.eq.s32.totalorder %s24, 0
      %p212 = por %p210, %p211
      %p213 = scmp.ne.s32.totalorder %s205, %s207
      %p214 = scmp.eq.s32.totalorder %s29, 1
      %p215 = por %p213, %p214
      %p216 = scmp.ne.s32.totalorder %s207, %s208
      %p217 = scmp.eq.s32.totalorder %s29, 0
      %p218 = por %p216, %p217
      %p219 = scmp.ne.s32.totalorder %s207, %s208
      %p220 = scmp.eq.s32.totalorder %s30, 1
      %p221 = por %p219, %p220
      %p223 = scmp.ne.s32.totalorder %s208, %s222
      %p224 = scmp.eq.s32.totalorder %s30, 0
      %p225 = por %p223, %p224
      %s227 = sadd.s32 %s226, 1
      %p230 = scmp.eq.s32.totalorder %s24, 1
      %p231 = scmp.ne.s32.totalorder %s226, %s228
      %p232 = scmp.eq.s32.totalorder %s24, 0
      %p233 = por %p231, %p232
      %p234 = scmp.ne.s32.totalorder %s226, %s228
      %p235 = scmp.eq.s32.totalorder %s29, 1
      %p236 = por %p234, %p235
      %p237 = scmp.ne.s32.totalorder %s228, %s229
      %p238 = scmp.eq.s32.totalorder %s29, 0
      %p239 = por %p237, %p238
      %p240 = scmp.ne.s32.totalorder %s228, %s229
      %p241 = scmp.eq.s32.totalorder %s30, 1
      %p242 = por %p240, %p241
      %p244 = scmp.ne.s32.totalorder %s229, %s243
      %p245 = scmp.eq.s32.totalorder %s30, 0
      %p246 = por %p244, %p245
      %s248 = sadd.s32 %s247, 1
      %p251 = scmp.eq.s32.totalorder %s24, 1
      %p252 = scmp.ne.s32.totalorder %s247, %s249
      %p253 = scmp.eq.s32.totalorder %s24, 0
      %p254 = por %p252, %p253
      %p255 = scmp.ne.s32.totalorder %s247, %s249
      %p256 = scmp.eq.s32.totalorder %s29, 1
      %p257 = por %p255, %p256
      %p258 = scmp.ne.s32.totalorder %s249, %s250
      %p259 = scmp.eq.s32.totalorder %s29, 0
      %p260 = por %p258, %p259
      %p261 = scmp.ne.s32.totalorder %s249, %s250
      %p262 = scmp.eq.s32.totalorder %s30, 1
      %p263 = por %p261, %p262
      %p265 = scmp.ne.s32.totalorder %s250, %s264
      %p266 = scmp.eq.s32.totalorder %s30, 0
      %p267 = por %p265, %p266
      %s269 = sadd.s32 %s268, 1
      %p272 = scmp.eq.s32.totalorder %s24, 1
      %p273 = scmp.ne.s32.totalorder %s268, %s270
      %p274 = scmp.eq.s32.totalorder %s24, 0
      %p275 = por %p273, %p274
      %p276 = scmp.ne.s32.totalorder %s268, %s270
      %p277 = scmp.eq.s32.totalorder %s29, 1
      %p278 = por %p276, %p277
      %p279 = scmp.ne.s32.totalorder %s270, %s271
      %p280 = scmp.eq.s32.totalorder %s29, 0
      %p281 = por %p279, %p280
      %p282 = scmp.ne.s32.totalorder %s270, %s271
      %p283 = scmp.eq.s32.totalorder %s30, 1
      %p284 = por %p282, %p283
      %p286 = scmp.ne.s32.totalorder %s271, %s285
      %p287 = scmp.eq.s32.totalorder %s30, 0
      %p288 = por %p286, %p287
      %s290 = sadd.s32 %s289, 1
      %p293 = scmp.eq.s32.totalorder %s24, 1
      %p294 = scmp.ne.s32.totalorder %s289, %s291
      %p295 = scmp.eq.s32.totalorder %s24, 0
      %p296 = por %p294, %p295
      %p297 = scmp.ne.s32.totalorder %s289, %s291
      %p298 = scmp.eq.s32.totalorder %s29, 1
      %p299 = por %p297, %p298
      %p300 = scmp.ne.s32.totalorder %s291, %s292
      %p301 = scmp.eq.s32.totalorder %s29, 0
      %p302 = por %p300, %p301
      %p303 = scmp.ne.s32.totalorder %s291, %s292
      %p304 = scmp.eq.s32.totalorder %s30, 1
      %p305 = por %p303, %p304
      %p307 = scmp.ne.s32.totalorder %s292, %s306
      %p308 = scmp.eq.s32.totalorder %s30, 0
      %p309 = por %p307, %p308
      %s311 = sadd.s32 %s310, 1
      %p314 = scmp.eq.s32.totalorder %s24, 1
      %p315 = scmp.ne.s32.totalorder %s310, %s312
      %p316 = scmp.eq.s32.totalorder %s24, 0
      %p317 = por %p315, %p316
      %p318 = scmp.ne.s32.totalorder %s310, %s312
      %p319 = scmp.eq.s32.totalorder %s29, 1
      %p320 = por %p318, %p319
      %p321 = scmp.ne.s32.totalorder %s312, %s313
      %p322 = scmp.eq.s32.totalorder %s29, 0
      %p323 = por %p321, %p322
      %p324 = scmp.ne.s32.totalorder %s312, %s313
      %p325 = scmp.eq.s32.totalorder %s30, 1
      %p326 = por %p324, %p325
      %p328 = scmp.ne.s32.totalorder %s313, %s327
      %p329 = scmp.eq.s32.totalorder %s30, 0
      %p330 = por %p328, %p329
      %s332 = sadd.s32 %s331, 1
      %p335 = scmp.eq.s32.totalorder %s24, 1
      %p336 = scmp.ne.s32.totalorder %s331, %s333
      %p337 = scmp.eq.s32.totalorder %s24, 0
      %p338 = por %p336, %p337
      %p339 = scmp.ne.s32.totalorder %s331, %s333
      %p340 = scmp.eq.s32.totalorder %s29, 1
      %p341 = por %p339, %p340
      %p342 = scmp.ne.s32.totalorder %s333, %s334
      %p343 = scmp.eq.s32.totalorder %s29, 0
      %p344 = por %p342, %p343
      %p345 = scmp.ne.s32.totalorder %s333, %s334
      %p346 = scmp.eq.s32.totalorder %s30, 1
      %p347 = por %p345, %p346
      %p349 = scmp.ne.s32.totalorder %s334, %s348
      %p350 = scmp.eq.s32.totalorder %s30, 0
      %p351 = por %p349, %p350
      %s352 = ssub.s32 %s24, %s31
      %p353 = scmp.eq.s32.totalorder %s352, 0
      %s355 = sadd.s32 %s354, 1
      %s356 = scalar_select %p353, %s354, %s355
      %p359 = pneg %p353
      %p360 = scmp.eq.s32.totalorder %s24, 1
      %p361 = por %p359, %p360
      %p362 = scmp.ne.s32.totalorder %s354, %s357
      %p363 = scmp.eq.s32.totalorder %s24, 0
      %p364 = por %p362, %p363
      %p365 = scmp.ne.s32.totalorder %s354, %s357
      %p366 = scmp.eq.s32.totalorder %s29, 1
      %p367 = por %p365, %p366
      %p368 = scmp.ne.s32.totalorder %s357, %s358
      %p369 = scmp.eq.s32.totalorder %s29, 0
      %p370 = por %p368, %p369
      %p371 = scmp.ne.s32.totalorder %s357, %s358
      %p372 = scmp.eq.s32.totalorder %s30, 1
      %p373 = por %p371, %p372
      %p375 = scmp.ne.s32.totalorder %s358, %s374
      %p376 = scmp.eq.s32.totalorder %s30, 0
      %p377 = por %p375, %p376
      %p378 = scmp.le.s32.totalorder 1, %s24
      %p379 = scmp.lt.s32.totalorder %s24, 3
      %p380 = pnand %p378, %p379
      %p381 = pneg %p380
      // Predicated region
      $region9: #{net_forward.1} parent=5 // pred_check
        _
      $region10: #{net_forward.1} parent=5 // pred_check_branch
        %383 = sbr.rel (%p380) target = $region12
      $region11: #{net_forward.1} parent=5 // pred_region
        %s384 = ssub.s32 %s24, 1
        // Predicated region
        $region13: #{net_forward.1} parent=11 // pred_check
          %p385 = pneg %p71
        $region14: #{net_forward.1} parent=11 // pred_check_branch
          %387 = sbr.rel (%p385) target = $region16
        $region15: #{net_forward.1} parent=11 // pred_region
          _
        $region16: #{net_forward.1} parent=11 // pred_fallthru
          _
        // Predicated region
        $region17: #{net_forward.1} parent=11 // pred_check
          %p388 = pneg %p92
        $region18: #{net_forward.1} parent=11 // pred_check_branch
          %390 = sbr.rel (%p388) target = $region20
        $region19: #{net_forward.1} parent=11 // pred_region
          _
        $region20: #{net_forward.1} parent=11 // pred_fallthru
          _
        // Predicated region
        $region21: #{net_forward.1} parent=11 // pred_check
          %p391 = pneg %p113
        $region22: #{net_forward.1} parent=11 // pred_check_branch
          %393 = sbr.rel (%p391) target = $region24
        $region23: #{net_forward.1} parent=11 // pred_region
          _
        $region24: #{net_forward.1} parent=11 // pred_fallthru
          _
        // Predicated region
        $region25: #{net_forward.1} parent=11 // pred_check
          %p394 = pneg %p134
        $region26: #{net_forward.1} parent=11 // pred_check_branch
          %396 = sbr.rel (%p394) target = $region28
        $region27: #{net_forward.1} parent=11 // pred_region
          _
        $region28: #{net_forward.1} parent=11 // pred_fallthru
          _
        // Predicated region
        $region29: #{net_forward.1} parent=11 // pred_check
          %p397 = pneg %p155
        $region30: #{net_forward.1} parent=11 // pred_check_branch
          %399 = sbr.rel (%p397) target = $region32
        $region31: #{net_forward.1} parent=11 // pred_region
          _
        $region32: #{net_forward.1} parent=11 // pred_fallthru
          _
        // Predicated region
        $region33: #{net_forward.1} parent=11 // pred_check
          %p400 = pneg %p176
        $region34: #{net_forward.1} parent=11 // pred_check_branch
          %402 = sbr.rel (%p400) target = $region36
        $region35: #{net_forward.1} parent=11 // pred_region
          _
        $region36: #{net_forward.1} parent=11 // pred_fallthru
          _
        // Predicated region
        $region37: #{net_forward.1} parent=11 // pred_check
          %p403 = pneg %p197
        $region38: #{net_forward.1} parent=11 // pred_check_branch
          %405 = sbr.rel (%p403) target = $region40
        $region39: #{net_forward.1} parent=11 // pred_region
          _
        $region40: #{net_forward.1} parent=11 // pred_fallthru
          _
        // Predicated region
        $region41: #{net_forward.1} parent=11 // pred_check
          %p406 = pneg %p218
        $region42: #{net_forward.1} parent=11 // pred_check_branch
          %408 = sbr.rel (%p406) target = $region44
        $region43: #{net_forward.1} parent=11 // pred_region
          _
        $region44: #{net_forward.1} parent=11 // pred_fallthru
          _
        // Predicated region
        $region45: #{net_forward.1} parent=11 // pred_check
          %p409 = pneg %p239
        $region46: #{net_forward.1} parent=11 // pred_check_branch
          %411 = sbr.rel (%p409) target = $region48
        $region47: #{net_forward.1} parent=11 // pred_region
          _
        $region48: #{net_forward.1} parent=11 // pred_fallthru
          _
        // Predicated region
        $region49: #{net_forward.1} parent=11 // pred_check
          %p412 = pneg %p260
        $region50: #{net_forward.1} parent=11 // pred_check_branch
          %414 = sbr.rel (%p412) target = $region52
        $region51: #{net_forward.1} parent=11 // pred_region
          _
        $region52: #{net_forward.1} parent=11 // pred_fallthru
          _
        // Predicated region
        $region53: #{net_forward.1} parent=11 // pred_check
          %p415 = pneg %p281
        $region54: #{net_forward.1} parent=11 // pred_check_branch
          %417 = sbr.rel (%p415) target = $region56
        $region55: #{net_forward.1} parent=11 // pred_region
          _
        $region56: #{net_forward.1} parent=11 // pred_fallthru
          _
        // Predicated region
        $region57: #{net_forward.1} parent=11 // pred_check
          %p418 = pneg %p302
        $region58: #{net_forward.1} parent=11 // pred_check_branch
          %420 = sbr.rel (%p418) target = $region60
        $region59: #{net_forward.1} parent=11 // pred_region
          _
        $region60: #{net_forward.1} parent=11 // pred_fallthru
          _
        // Predicated region
        $region61: #{net_forward.1} parent=11 // pred_check
          %p421 = pneg %p323
        $region62: #{net_forward.1} parent=11 // pred_check_branch
          %423 = sbr.rel (%p421) target = $region64
        $region63: #{net_forward.1} parent=11 // pred_region
          _
        $region64: #{net_forward.1} parent=11 // pred_fallthru
          _
        // Predicated region
        $region65: #{net_forward.1} parent=11 // pred_check
          %p424 = pneg %p344
        $region66: #{net_forward.1} parent=11 // pred_check_branch
          %426 = sbr.rel (%p424) target = $region68
        $region67: #{net_forward.1} parent=11 // pred_region
          _
        $region68: #{net_forward.1} parent=11 // pred_fallthru
          _
      $region12: #{net_forward.1} parent=5 // pred_fallthru
        _
      %p427 = scmp.lt.s32.totalorder %s24, 2
      // Predicated region
      $region69: #{net_forward.1} parent=5 // pred_check
        %p428 = pneg %p427
      $region70: #{net_forward.1} parent=5 // pred_check_branch
        %430 = sbr.rel (%p428) target = $region72
      $region71: #{net_forward.1} parent=5 // pred_region
        // Predicated region
        $region73: #{net_forward.1} parent=71 // pred_check
          %p431 = pneg %p44
        $region74: #{net_forward.1} parent=71 // pred_check_branch
          %433 = sbr.rel (%p431) target = $region76
        $region75: #{net_forward.1} parent=71 // pred_region
          %s434 = smul.u32 32, %s24
          %p435 = scmp.lt.s32.totalorder %s434, 63
          %s436 = scalar_select %p435, %s434, 63
          %s437 = smul.addr %s436, 8
          %s438 = scalar_lea.vmem %s0, %s437
          %s439 = smul.u32 32, %s24
        $region76: #{net_forward.1} parent=71 // pred_fallthru
          _
      $region72: #{net_forward.1} parent=5 // pred_fallthru
        _
      %p440 = scmp.le.s32.totalorder 1, %s24
      %p441 = scmp.lt.s32.totalorder %s24, 3
      %p442 = pnand %p440, %p441
      %p443 = pneg %p442
      // Predicated region
      $region77: #{net_forward.1} parent=5 // pred_check
        _
      $region78: #{net_forward.1} parent=5 // pred_check_branch
        %445 = sbr.rel (%p442) target = $region80
      $region79: #{net_forward.1} parent=5 // pred_region
        %s446 = ssub.s32 %s24, 1
        %s447 = smul.u32 32, %s29
        %p448 = scmp.lt.s32.totalorder %s447, 63
        %s449 = scalar_select %p448, %s447, 63
        %s450 = smul.addr %s449, 8
        %s451 = scalar_lea.vmem %s0, %s450
        %p452 = pneg %p50
        %p453 = pneg %p47
        %p454 = pneg %p71
        %p455 = pneg %p68
        %p456 = pneg %p92
        %p457 = pneg %p89
        %p458 = pneg %p113
        %p459 = pneg %p110
        %p460 = pneg %p134
        %p461 = pneg %p131
        %p462 = pneg %p155
        %p463 = pneg %p152
        %p464 = pneg %p176
        %p465 = pneg %p173
        %p466 = pneg %p197
        %p467 = pneg %p194
        %p468 = pneg %p218
        %p469 = pneg %p215
        %p470 = pneg %p239
        %p471 = pneg %p236
        %p472 = pneg %p260
        %p473 = pneg %p257
        %p474 = pneg %p281
        %p475 = pneg %p278
        %p476 = pneg %p302
        %p477 = pneg %p299
        %p478 = pneg %p323
        %p479 = pneg %p320
        %p480 = pneg %p344
        %p481 = pneg %p341
        %p482 = pneg %p370
        %p483 = pneg %p367
        %s484 = sand.u32 %s357, 1
        %s485 = scalar_lea.sflag [#allocation5], %s484
        %s486 = sand.u32 %s357, 1
        %s487 = smul.addr %s486, 8
        %s488 = scalar_lea.vmem [#allocation4], %s487
        %s489 = smul.u32 32, %s29
        %p490 = scmp.lt.s32.totalorder %s489, 63
        %s491 = scalar_select %p490, %s489, 63
        %s492 = smul.addr %s491, 8
        %s493 = scalar_lea.vmem %s0, %s492
        %s494 = smul.u32 32, %s29
        %v496 = vld [vmem:[%s493] sm:$0xff]
        %v497 = vld [vmem:[%s493 + $0x8] sm:$0xff]
        %v498 = vld [vmem:[%s493 + $0x10] sm:$0xff]
        %v499 = vld [vmem:[%s493 + $0x18] sm:$0xff]
        %v500 = vld [vmem:[%s493 + $0x20] sm:$0xff]
        %v501 = vld [vmem:[%s493 + $0x28] sm:$0xff]
        %v502 = vld [vmem:[%s493 + $0x30] sm:$0xff]
        %v503 = vld [vmem:[%s493 + $0x38] sm:$0xff]
        %v504 = vld [vmem:[%s493 + $0x40] sm:$0xff]
        %v505 = vld [vmem:[%s493 + $0x48] sm:$0xff]
        %v506 = vld [vmem:[%s493 + $0x50] sm:$0xff]
        %v507 = vld [vmem:[%s493 + $0x58] sm:$0xff]
        %v508 = vld [vmem:[%s493 + $0x60] sm:$0xff]
        %v509 = vld [vmem:[%s493 + $0x68] sm:$0xff]
        %v510 = vld [vmem:[%s493 + $0x70] sm:$0xff]
        %v511 = vld [vmem:[%s493 + $0x78] sm:$0xff]
        %v512 = vld [vmem:[%s493 + $0x80] sm:$0xff]
        %v513 = vld [vmem:[%s493 + $0x88] sm:$0xff]
        %v514 = vld [vmem:[%s493 + $0x90] sm:$0xff]
        %v515 = vld [vmem:[%s493 + $0x98] sm:$0xff]
        %v516 = vld [vmem:[%s493 + $0xa0] sm:$0xff]
        %v517 = vld [vmem:[%s493 + $0xa8] sm:$0xff]
        %v518 = vld [vmem:[%s493 + $0xb0] sm:$0xff]
        %v519 = vld [vmem:[%s493 + $0xb8] sm:$0xff]
        %v520 = vld [vmem:[%s493 + $0xc0] sm:$0xff]
        %v521 = vld [vmem:[%s493 + $0xc8] sm:$0xff]
        %v522 = vld [vmem:[%s493 + $0xd0] sm:$0xff]
        %v523 = vld [vmem:[%s493 + $0xd8] sm:$0xff]
        %v524 = vld [vmem:[%s493 + $0xe0] sm:$0xff]
        %v525 = vld [vmem:[%s493 + $0xe8] sm:$0xff]
        %v526 = vld [vmem:[%s493 + $0xf0] sm:$0xff]
        %v527 = vld [vmem:[%s493 + $0xf8] sm:$0xff]
        %v528 = vpack.c.bf16 %v497, %v496
        %v529 = vpack.c.bf16 %v499, %v498
        %v530 = vpack.c.bf16 %v501, %v500
        %v531 = vpack.c.bf16 %v503, %v502
        %v532 = vpack.c.bf16 %v505, %v504
        %v533 = vpack.c.bf16 %v507, %v506
        %v534 = vpack.c.bf16 %v509, %v508
        %v535 = vpack.c.bf16 %v511, %v510
        %v536 = vpack.c.bf16 %v513, %v512
        %v537 = vpack.c.bf16 %v515, %v514
        %v538 = vpack.c.bf16 %v517, %v516
        %v539 = vpack.c.bf16 %v519, %v518
        %v540 = vpack.c.bf16 %v521, %v520
        %v541 = vpack.c.bf16 %v523, %v522
        %v542 = vpack.c.bf16 %v525, %v524
        %v543 = vpack.c.bf16 %v527, %v526
        %v544 = vld [vmem:[%s1] sm:$0xff]
        %v545 = vld [vmem:[%s1 + $0x8] sm:$0xff]
        %v546 = vld [vmem:[%s1 + $0x10] sm:$0xff]
        %v547 = vld [vmem:[%s1 + $0x18] sm:$0xff]
        %v548 = vld [vmem:[%s1 + $0x20] sm:$0xff]
        %v549 = vld [vmem:[%s1 + $0x28] sm:$0xff]
        %v550 = vld [vmem:[%s1 + $0x30] sm:$0xff]
        %v551 = vld [vmem:[%s1 + $0x38] sm:$0xff]
        %v552 = vld [vmem:[%s1 + $0x40] sm:$0xff]
        %v553 = vld [vmem:[%s1 + $0x48] sm:$0xff]
        %v554 = vld [vmem:[%s1 + $0x50] sm:$0xff]
        %v555 = vld [vmem:[%s1 + $0x58] sm:$0xff]
        %v556 = vpack.c.bf16 %v496, %v496
        %s557 = scalar_lea.vmem %s1, 96
        %v558 = vld [vmem:[%s557] sm:$0xff]
        %v559 = vld [vmem:[%s557 + $0x8] sm:$0xff]
        %v560 = vld [vmem:[%s557 + $0x10] sm:$0xff]
        %v561 = vld [vmem:[%s557 + $0x18] sm:$0xff]
        %v562 = vld [vmem:[%s557 + $0x20] sm:$0xff]
        %v563 = vld [vmem:[%s557 + $0x28] sm:$0xff]
        %v564 = vld [vmem:[%s557 + $0x30] sm:$0xff]
        %v565 = vld [vmem:[%s557 + $0x38] sm:$0xff]
        %v566 = vld [vmem:[%s557 + $0x40] sm:$0xff]
        %v567 = vld [vmem:[%s557 + $0x48] sm:$0xff]
        %v568 = vld [vmem:[%s557 + $0x50] sm:$0xff]
        %v569 = vld [vmem:[%s557 + $0x58] sm:$0xff]
        %vm570 = vsmask.f32 7424
        %v572 = vshrl.u32 %v528, 16
        %v574 = vshll.u32 %v528, 16
        %v576 = vrot.slane %v574, 1
        %v577 = vor.u32 %v572, %v576
        %v579 = vshll.u32 %v529, 16
        %v581 = vrot.slane %v579, 1
        %v582 = vsel %vm570, %v577, %v581
        %v583 = vshrl.u32 %v529, 16
        %v585 = vor.u32 %v583, %v581
        %v587 = vshll.u32 %v530, 16
        %v589 = vrot.slane %v587, 1
        %v590 = vsel %vm570, %v585, %v589
        %v591 = vshrl.u32 %v530, 16
        %v593 = vor.u32 %v591, %v589
        %v595 = vshll.u32 %v531, 16
        %v597 = vrot.slane %v595, 1
        %v598 = vsel %vm570, %v593, %v597
        %v599 = vshrl.u32 %v531, 16
        %v601 = vor.u32 %v599, %v597
        %v603 = vshll.u32 %v532, 16
        %v605 = vrot.slane %v603, 1
        %v606 = vsel %vm570, %v601, %v605
        %v607 = vshrl.u32 %v532, 16
        %v609 = vor.u32 %v607, %v605
        %v611 = vshll.u32 %v533, 16
        %v613 = vrot.slane %v611, 1
        %v614 = vsel %vm570, %v609, %v613
        %v615 = vshrl.u32 %v533, 16
        %v617 = vor.u32 %v615, %v613
        %v619 = vshll.u32 %v534, 16
        %v621 = vrot.slane %v619, 1
        %v622 = vsel %vm570, %v617, %v621
        %v623 = vshrl.u32 %v534, 16
        %v625 = vor.u32 %v623, %v621
        %v627 = vshll.u32 %v535, 16
        %v629 = vrot.slane %v627, 1
        %v630 = vsel %vm570, %v625, %v629
        %v631 = vshrl.u32 %v535, 16
        %v633 = vor.u32 %v631, %v629
        %v635 = vshll.u32 %v536, 16
        %v637 = vrot.slane %v635, 1
        %v638 = vsel %vm570, %v633, %v637
        %v639 = vshrl.u32 %v536, 16
        %v641 = vor.u32 %v639, %v637
        %v643 = vshll.u32 %v537, 16
        %v645 = vrot.slane %v643, 1
        %v646 = vsel %vm570, %v641, %v645
        %v647 = vshrl.u32 %v537, 16
        %v649 = vor.u32 %v647, %v645
        %v651 = vshll.u32 %v538, 16
        %v653 = vrot.slane %v651, 1
        %v654 = vsel %vm570, %v649, %v653
        %v655 = vshrl.u32 %v538, 16
        %v657 = vor.u32 %v655, %v653
        %v659 = vshll.u32 %v539, 16
        %v661 = vrot.slane %v659, 1
        %v662 = vsel %vm570, %v657, %v661
        %v663 = vshrl.u32 %v539, 16
        %v665 = vor.u32 %v663, %v661
        %v667 = vshll.u32 %v540, 16
        %v669 = vrot.slane %v667, 1
        %v670 = vsel %vm570, %v665, %v669
        %v671 = vshrl.u32 %v540, 16
        %v673 = vor.u32 %v671, %v669
        %v675 = vshll.u32 %v541, 16
        %v677 = vrot.slane %v675, 1
        %v678 = vsel %vm570, %v673, %v677
        %v679 = vshrl.u32 %v541, 16
        %v681 = vor.u32 %v679, %v677
        %v683 = vshll.u32 %v542, 16
        %v685 = vrot.slane %v683, 1
        %v686 = vsel %vm570, %v681, %v685
        %v687 = vshrl.u32 %v542, 16
        %v689 = vor.u32 %v687, %v685
        %v691 = vshll.u32 %v543, 16
        %v693 = vrot.slane %v691, 1
        %v694 = vsel %vm570, %v689, %v693
        %v695 = vshrl.u32 %v543, 16
        %v697 = vor.u32 %v695, %v693
        %v699 = vshll.u32 %v556, 16
        %v701 = vrot.slane %v699, 1
        %v702 = vsel %vm570, %v697, %v701
        %v715 = vunpack.c.l.b16 %v558
        %v716 = vunpack.c.h.b16 %v558
        %v717 = vunpack.c.l.b16 %v559
        %v718 = vunpack.c.h.b16 %v559
        %v719 = vunpack.c.l.b16 %v560
        %v720 = vunpack.c.h.b16 %v560
        %v721 = vunpack.c.l.b16 %v561
        %v722 = vunpack.c.h.b16 %v561
        %v723 = vunpack.c.l.b16 %v562
        %v724 = vunpack.c.h.b16 %v562
        %v725 = vunpack.c.l.b16 %v563
        %v726 = vunpack.c.h.b16 %v563
        %v727 = vunpack.c.l.b16 %v564
        %v728 = vunpack.c.h.b16 %v564
        %v729 = vunpack.c.l.b16 %v565
        %v730 = vunpack.c.h.b16 %v565
        %v731 = vunpack.c.l.b16 %v566
        %v732 = vunpack.c.h.b16 %v566
        %v733 = vunpack.c.l.b16 %v567
        %v734 = vunpack.c.h.b16 %v567
        %v735 = vunpack.c.l.b16 %v568
        %v736 = vunpack.c.h.b16 %v568
        %v737 = vunpack.c.l.b16 %v569
        %v738 = vunpack.c.h.b16 %v569
        %v739 = vpack.c.b16 %v717, %v715
        %v740 = vpack.c.b16 %v718, %v716
        %v741 = vpack.c.b16 %v721, %v719
        %v742 = vpack.c.b16 %v722, %v720
        %v743 = vpack.c.b16 %v725, %v723
        %v744 = vpack.c.b16 %v726, %v724
        %v745 = vpack.c.b16 %v729, %v727
        %v746 = vpack.c.b16 %v730, %v728
        %v747 = vpack.c.b16 %v733, %v731
        %v748 = vpack.c.b16 %v734, %v732
        %v749 = vpack.c.b16 %v737, %v735
        %v750 = vpack.c.b16 %v738, %v736
        %vm763 = vcmask 785408
        %v765 = vsel %vm763, %v582, 0
        %v768 = vsel %vm763, %v590, 0
        %v771 = vsel %vm763, %v598, 0
        %v774 = vsel %vm763, %v606, 0
        %v777 = vsel %vm763, %v614, 0
        %v780 = vsel %vm763, %v622, 0
        %v783 = vsel %vm763, %v630, 0
        %v786 = vsel %vm763, %v638, 0
        %v789 = vsel %vm763, %v646, 0
        %v792 = vsel %vm763, %v654, 0
        %v795 = vsel %vm763, %v662, 0
        %v798 = vsel %vm763, %v670, 0
        %v801 = vsel %vm763, %v678, 0
        %v804 = vsel %vm763, %v686, 0
        %v807 = vsel %vm763, %v694, 0
        %v810 = vsel %vm763, %v702, 0
        %812 = vmatprep.subr.bf16.mxu0 %v740
        %813 = vmatpush1.bf16.msra.mxu0 %v739
        %814 = vmatprep.subr.bf16.mxu0 %v742
        %815 = vmatpush1.bf16.msra.mxu0 %v741
        %816 = vmatprep.subr.bf16.mxu0 %v744
        %817 = vmatpush1.bf16.msra.mxu0 %v743
        %818 = vmatprep.subr.bf16.mxu0 %v746
        %819 = vmatpush1.bf16.msra.mxu0 %v745
        %820 = vmatprep.subr.bf16.mxu0 %v748
        %821 = vmatpush1.bf16.msra.mxu0 %v747
        %822 = vmatprep.subr.bf16.mxu0 %v750
        %823 = vmatpush1.bf16.msra.mxu0 %v749
        %824 = vmatprep.subr.bf16.mxu0 0
        %825 = vmatpush1.bf16.msra.mxu0 0
        %826 = vmatprep.subr.bf16.mxu0 0
        %827 = vmatpush1.bf16.msra.mxu0 0
        %828 = vmatprep.subr.bf16.mxu0 0
        %829 = vmatpush1.bf16.msra.mxu0 0
        %830 = vmatprep.subr.bf16.mxu0 0
        %831 = vmatpush1.bf16.msra.mxu0 0
        %832 = vmatprep.subr.bf16.mxu0 0
        %833 = vmatpush1.bf16.msra.mxu0 0
        %834 = vmatprep.subr.bf16.mxu0 0
        %835 = vmatpush1.bf16.msra.mxu0 0
        %836 = vmatprep.subr.bf16.mxu0 0
        %837 = vmatpush1.bf16.msra.mxu0 0
        %838 = vmatprep.subr.bf16.mxu0 0
        %839 = vmatpush1.bf16.msra.mxu0 0
        %840 = vmatprep.subr.bf16.mxu0 0
        %841 = vmatpush1.bf16.msra.mxu0 0
        %842 = vmatprep.subr.bf16.mxu0 0
        %843 = vmatpush1.bf16.msra.mxu0 0
        %844 = vmatprep.mubr.bf16.mxu0 0
        %845 = vmatmul.mubr.bf16.gmra.mrb[0].mxu0 %v765
        %v846 = vpop.f32.mrb[0].mxu0
        %v847 = vadd.f32 0.0, %v846
        %v848 = vpop.f32.mrb[0].mxu0
        %v849 = vadd.f32 0.0, %v848
        %v850 = vpop.f32.mrb[0].mxu0
        %v851 = vadd.f32 0.0, %v850
        %v852 = vpop.f32.mrb[0].mxu0
        %v853 = vadd.f32 0.0, %v852
        %854 = vmatprep.mubr.bf16.mxu0 0
        %855 = vmatmul.mubr.bf16.gmra.mrb[0].mxu0 %v768
        %v856 = vpop.f32.mrb[0].mxu0
        %v857 = vadd.f32 0.0, %v856
        %v858 = vpop.f32.mrb[0].mxu0
        %v859 = vadd.f32 0.0, %v858
        %v860 = vpop.f32.mrb[0].mxu0
        %v861 = vadd.f32 0.0, %v860
        %v862 = vpop.f32.mrb[0].mxu0
        %v863 = vadd.f32 0.0, %v862
        %864 = vmatprep.mubr.bf16.mxu0 0
        %865 = vmatmul.mubr.bf16.gmra.mrb[0].mxu0 %v771
        %v866 = vpop.f32.mrb[0].mxu0
        %v867 = vadd.f32 0.0, %v866
        %v868 = vpop.f32.mrb[0].mxu0
        %v869 = vadd.f32 0.0, %v868
        %v870 = vpop.f32.mrb[0].mxu0
        %v871 = vadd.f32 0.0, %v870
        %v872 = vpop.f32.mrb[0].mxu0
        %v873 = vadd.f32 0.0, %v872
        %874 = vmatprep.mubr.bf16.mxu0 0
        %875 = vmatmul.mubr.bf16.gmra.mrb[0].mxu0 %v774
        %v876 = vpop.f32.mrb[0].mxu0
        %v877 = vadd.f32 0.0, %v876
        %v878 = vpop.f32.mrb[0].mxu0
        %v879 = vadd.f32 0.0, %v878
        %v880 = vpop.f32.mrb[0].mxu0
        %v881 = vadd.f32 0.0, %v880
        %v882 = vpop.f32.mrb[0].mxu0
        %v883 = vadd.f32 0.0, %v882
        %884 = vmatprep.mubr.bf16.mxu0 0
        %885 = vmatmul.mubr.bf16.gmra.mrb[0].mxu0 %v777
        %v886 = vpop.f32.mrb[0].mxu0
        %v887 = vadd.f32 0.0, %v886
        %v888 = vpop.f32.mrb[0].mxu0
        %v889 = vadd.f32 0.0, %v888
        %v890 = vpop.f32.mrb[0].mxu0
        %v891 = vadd.f32 0.0, %v890
        %v892 = vpop.f32.mrb[0].mxu0
        %v893 = vadd.f32 0.0, %v892
        %894 = vmatprep.mubr.bf16.mxu0 0
        %895 = vmatmul.mubr.bf16.gmra.mrb[0].mxu0 %v780
        %v896 = vpop.f32.mrb[0].mxu0
        %v897 = vadd.f32 0.0, %v896
        %v898 = vpop.f32.mrb[0].mxu0
        %v899 = vadd.f32 0.0, %v898
        %v900 = vpop.f32.mrb[0].mxu0
        %v901 = vadd.f32 0.0, %v900
        %v902 = vpop.f32.mrb[0].mxu0
        %v903 = vadd.f32 0.0, %v902
        %904 = vmatprep.mubr.bf16.mxu0 0
        %905 = vmatmul.mubr.bf16.gmra.mrb[0].mxu0 %v783
        %v906 = vpop.f32.mrb[0].mxu0
        %v907 = vadd.f32 0.0, %v906
        %v908 = vpop.f32.mrb[0].mxu0
        %v909 = vadd.f32 0.0, %v908
        %v910 = vpop.f32.mrb[0].mxu0
        %v911 = vadd.f32 0.0, %v910
        %v912 = vpop.f32.mrb[0].mxu0
        %v913 = vadd.f32 0.0, %v912
        %914 = vmatprep.mubr.bf16.mxu0 0
        %915 = vmatmul.mubr.bf16.gmra.mrb[0].mxu0 %v786
        %v916 = vpop.f32.mrb[0].mxu0
        %v917 = vadd.f32 0.0, %v916
        %v918 = vpop.f32.mrb[0].mxu0
        %v919 = vadd.f32 0.0, %v918
        %v920 = vpop.f32.mrb[0].mxu0
        %v921 = vadd.f32 0.0, %v920
        %v922 = vpop.f32.mrb[0].mxu0
        %v923 = vadd.f32 0.0, %v922
        %924 = vmatprep.mubr.bf16.mxu0 0
        %925 = vmatmul.mubr.bf16.gmra.mrb[0].mxu0 %v789
        %v926 = vpop.f32.mrb[0].mxu0
        %v927 = vadd.f32 0.0, %v926
        %v928 = vpop.f32.mrb[0].mxu0
        %v929 = vadd.f32 0.0, %v928
        %v930 = vpop.f32.mrb[0].mxu0
        %v931 = vadd.f32 0.0, %v930
        %v932 = vpop.f32.mrb[0].mxu0
        %v933 = vadd.f32 0.0, %v932
        %934 = vmatprep.mubr.bf16.mxu0 0
        %935 = vmatmul.mubr.bf16.gmra.mrb[0].mxu0 %v792
        %v936 = vpop.f32.mrb[0].mxu0
        %v937 = vadd.f32 0.0, %v936
        %v938 = vpop.f32.mrb[0].mxu0
        %v939 = vadd.f32 0.0, %v938
        %v940 = vpop.f32.mrb[0].mxu0
        %v941 = vadd.f32 0.0, %v940
        %v942 = vpop.f32.mrb[0].mxu0
        %v943 = vadd.f32 0.0, %v942
        %944 = vmatprep.mubr.bf16.mxu0 0
        %945 = vmatmul.mubr.bf16.gmra.mrb[0].mxu0 %v795
        %v946 = vpop.f32.mrb[0].mxu0
        %v947 = vadd.f32 0.0, %v946
        %v948 = vpop.f32.mrb[0].mxu0
        %v949 = vadd.f32 0.0, %v948
        %v950 = vpop.f32.mrb[0].mxu0
        %v951 = vadd.f32 0.0, %v950
        %v952 = vpop.f32.mrb[0].mxu0
        %v953 = vadd.f32 0.0, %v952
        %954 = vmatprep.mubr.bf16.mxu0 0
        %955 = vmatmul.mubr.bf16.gmra.mrb[0].mxu0 %v798
        %v956 = vpop.f32.mrb[0].mxu0
        %v957 = vadd.f32 0.0, %v956
        %v958 = vpop.f32.mrb[0].mxu0
        %v959 = vadd.f32 0.0, %v958
        %v960 = vpop.f32.mrb[0].mxu0
        %v961 = vadd.f32 0.0, %v960
        %v962 = vpop.f32.mrb[0].mxu0
        %v963 = vadd.f32 0.0, %v962
        %964 = vmatprep.mubr.bf16.mxu0 0
        %965 = vmatmul.mubr.bf16.gmra.mrb[0].mxu0 %v801
        %v966 = vpop.f32.mrb[0].mxu0
        %v967 = vadd.f32 0.0, %v966
        %v968 = vpop.f32.mrb[0].mxu0
        %v969 = vadd.f32 0.0, %v968
        %v970 = vpop.f32.mrb[0].mxu0
        %v971 = vadd.f32 0.0, %v970
        %v972 = vpop.f32.mrb[0].mxu0
        %v973 = vadd.f32 0.0, %v972
        %974 = vmatprep.mubr.bf16.mxu0 0
        %975 = vmatmul.mubr.bf16.gmra.mrb[0].mxu0 %v804
        %v976 = vpop.f32.mrb[0].mxu0
        %v977 = vadd.f32 0.0, %v976
        %v978 = vpop.f32.mrb[0].mxu0
        %v979 = vadd.f32 0.0, %v978
        %v980 = vpop.f32.mrb[0].mxu0
        %v981 = vadd.f32 0.0, %v980
        %v982 = vpop.f32.mrb[0].mxu0
        %v983 = vadd.f32 0.0, %v982
        %984 = vmatprep.mubr.bf16.mxu0 0
        %985 = vmatmul.mubr.bf16.gmra.mrb[0].mxu0 %v807
        %v986 = vpop.f32.mrb[0].mxu0
        %v987 = vadd.f32 0.0, %v986
        %v988 = vpop.f32.mrb[0].mxu0
        %v989 = vadd.f32 0.0, %v988
        %v990 = vpop.f32.mrb[0].mxu0
        %v991 = vadd.f32 0.0, %v990
        %v992 = vpop.f32.mrb[0].mxu0
        %v993 = vadd.f32 0.0, %v992
        %994 = vmatprep.mubr.bf16.mxu0 0
        %995 = vmatmul.mubr.bf16.gmra.mrb[0].mxu0 %v810
        %v996 = vpop.f32.mrb[0].mxu0
        %v997 = vadd.f32 0.0, %v996
        %v998 = vpop.f32.mrb[0].mxu0
        %v999 = vadd.f32 0.0, %v998
        %v1000 = vpop.f32.mrb[0].mxu0
        %v1001 = vadd.f32 0.0, %v1000
        %v1002 = vpop.f32.mrb[0].mxu0
        %v1003 = vadd.f32 0.0, %v1002
        %1004 = vdwg.mxu0
        %v1017 = vunpack.c.l.b16 %v544
        %v1018 = vunpack.c.h.b16 %v544
        %v1019 = vunpack.c.l.b16 %v545
        %v1020 = vunpack.c.h.b16 %v545
        %v1021 = vunpack.c.l.b16 %v546
        %v1022 = vunpack.c.h.b16 %v546
        %v1023 = vunpack.c.l.b16 %v547
        %v1024 = vunpack.c.h.b16 %v547
        %v1025 = vunpack.c.l.b16 %v548
        %v1026 = vunpack.c.h.b16 %v548
        %v1027 = vunpack.c.l.b16 %v549
        %v1028 = vunpack.c.h.b16 %v549
        %v1029 = vunpack.c.l.b16 %v550
        %v1030 = vunpack.c.h.b16 %v550
        %v1031 = vunpack.c.l.b16 %v551
        %v1032 = vunpack.c.h.b16 %v551
        %v1033 = vunpack.c.l.b16 %v552
        %v1034 = vunpack.c.h.b16 %v552
        %v1035 = vunpack.c.l.b16 %v553
        %v1036 = vunpack.c.h.b16 %v553
        %v1037 = vunpack.c.l.b16 %v554
        %v1038 = vunpack.c.h.b16 %v554
        %v1039 = vunpack.c.l.b16 %v555
        %v1040 = vunpack.c.h.b16 %v555
        %v1041 = vpack.c.b16 %v1019, %v1017
        %v1042 = vpack.c.b16 %v1020, %v1018
        %v1043 = vpack.c.b16 %v1023, %v1021
        %v1044 = vpack.c.b16 %v1024, %v1022
        %v1045 = vpack.c.b16 %v1027, %v1025
        %v1046 = vpack.c.b16 %v1028, %v1026
        %v1047 = vpack.c.b16 %v1031, %v1029
        %v1048 = vpack.c.b16 %v1032, %v1030
        %v1049 = vpack.c.b16 %v1035, %v1033
        %v1050 = vpack.c.b16 %v1036, %v1034
        %v1051 = vpack.c.b16 %v1039, %v1037
        %v1052 = vpack.c.b16 %v1040, %v1038
        %v1065 = vsel %vm763, %v528, 0
        %v1067 = vsel %vm763, %v529, 0
        %v1069 = vsel %vm763, %v530, 0
        %v1071 = vsel %vm763, %v531, 0
        %v1073 = vsel %vm763, %v532, 0
        %v1075 = vsel %vm763, %v533, 0
        %v1077 = vsel %vm763, %v534, 0
        %v1079 = vsel %vm763, %v535, 0
        %v1081 = vsel %vm763, %v536, 0
        %v1083 = vsel %vm763, %v537, 0
        %v1085 = vsel %vm763, %v538, 0
        %v1087 = vsel %vm763, %v539, 0
        %v1089 = vsel %vm763, %v540, 0
        %v1091 = vsel %vm763, %v541, 0
        %v1093 = vsel %vm763, %v542, 0
        %v1095 = vsel %vm763, %v543, 0
        %1097 = vmatprep.subr.bf16.mxu0 %v1042
        %1098 = vmatpush1.bf16.msra.mxu0 %v1041
        %1099 = vmatprep.subr.bf16.mxu0 %v1044
        %1100 = vmatpush1.bf16.msra.mxu0 %v1043
        %1101 = vmatprep.subr.bf16.mxu0 %v1046
        %1102 = vmatpush1.bf16.msra.mxu0 %v1045
        %1103 = vmatprep.subr.bf16.mxu0 %v1048
        %1104 = vmatpush1.bf16.msra.mxu0 %v1047
        %1105 = vmatprep.subr.bf16.mxu0 %v1050
        %1106 = vmatpush1.bf16.msra.mxu0 %v1049
        %1107 = vmatprep.subr.bf16.mxu0 %v1052
        %1108 = vmatpush1.bf16.msra.mxu0 %v1051
        %1109 = vmatprep.subr.bf16.mxu0 0
        %1110 = vmatpush1.bf16.msra.mxu0 0
        %1111 = vmatprep.subr.bf16.mxu0 0
        %1112 = vmatpush1.bf16.msra.mxu0 0
        %1113 = vmatprep.subr.bf16.mxu0 0
        %1114 = vmatpush1.bf16.msra.mxu0 0
        %1115 = vmatprep.subr.bf16.mxu0 0
        %1116 = vmatpush1.bf16.msra.mxu0 0
        %1117 = vmatprep.subr.bf16.mxu0 0
        %1118 = vmatpush1.bf16.msra.mxu0 0
        %1119 = vmatprep.subr.bf16.mxu0 0
        %1120 = vmatpush1.bf16.msra.mxu0 0
        %1121 = vmatprep.subr.bf16.mxu0 0
        %1122 = vmatpush1.bf16.msra.mxu0 0
        %1123 = vmatprep.subr.bf16.mxu0 0
        %1124 = vmatpush1.bf16.msra.mxu0 0
        %1125 = vmatprep.subr.bf16.mxu0 0
        %1126 = vmatpush1.bf16.msra.mxu0 0
        %1127 = vmatprep.subr.bf16.mxu0 0
        %1128 = vmatpush1.bf16.msra.mxu0 0
        %1129 = vmatprep.mubr.bf16.mxu0 0
        %1130 = vmatmul.mubr.bf16.gmra.mrb[0].mxu0 %v1065
        %v1131 = vpop.f32.mrb[0].mxu0
        %v1132 = vadd.f32 %v847, %v1131
        %v1133 = vpop.f32.mrb[0].mxu0
        %v1134 = vadd.f32 %v849, %v1133
        %v1135 = vpop.f32.mrb[0].mxu0
        %v1136 = vadd.f32 %v851, %v1135
        %v1137 = vpop.f32.mrb[0].mxu0
        %v1138 = vadd.f32 %v853, %v1137
        %1139 = vmatprep.mubr.bf16.mxu0 0
        %1140 = vmatmul.mubr.bf16.gmra.mrb[0].mxu0 %v1067
        %v1141 = vpop.f32.mrb[0].mxu0
        %v1142 = vadd.f32 %v857, %v1141
        %v1143 = vpop.f32.mrb[0].mxu0
        %v1144 = vadd.f32 %v859, %v1143
        %v1145 = vpop.f32.mrb[0].mxu0
        %v1146 = vadd.f32 %v861, %v1145
        %v1147 = vpop.f32.mrb[0].mxu0
        %v1148 = vadd.f32 %v863, %v1147
        %1149 = vmatprep.mubr.bf16.mxu0 0
        %1150 = vmatmul.mubr.bf16.gmra.mrb[0].mxu0 %v1069
        %v1151 = vpop.f32.mrb[0].mxu0
        %v1152 = vadd.f32 %v867, %v1151
        %v1153 = vpop.f32.mrb[0].mxu0
        %v1154 = vadd.f32 %v869, %v1153
        %v1155 = vpop.f32.mrb[0].mxu0
        %v1156 = vadd.f32 %v871, %v1155
        %v1157 = vpop.f32.mrb[0].mxu0
        %v1158 = vadd.f32 %v873, %v1157
        %1159 = vmatprep.mubr.bf16.mxu0 0
        %1160 = vmatmul.mubr.bf16.gmra.mrb[0].mxu0 %v1071
        %v1161 = vpop.f32.mrb[0].mxu0
        %v1162 = vadd.f32 %v877, %v1161
        %v1163 = vpop.f32.mrb[0].mxu0
        %v1164 = vadd.f32 %v879, %v1163
        %v1165 = vpop.f32.mrb[0].mxu0
        %v1166 = vadd.f32 %v881, %v1165
        %v1167 = vpop.f32.mrb[0].mxu0
        %v1168 = vadd.f32 %v883, %v1167
        %1169 = vmatprep.mubr.bf16.mxu0 0
        %1170 = vmatmul.mubr.bf16.gmra.mrb[0].mxu0 %v1073
        %v1171 = vpop.f32.mrb[0].mxu0
        %v1172 = vadd.f32 %v887, %v1171
        %v1173 = vpop.f32.mrb[0].mxu0
        %v1174 = vadd.f32 %v889, %v1173
        %v1175 = vpop.f32.mrb[0].mxu0
        %v1176 = vadd.f32 %v891, %v1175
        %v1177 = vpop.f32.mrb[0].mxu0
        %v1178 = vadd.f32 %v893, %v1177
        %1179 = vmatprep.mubr.bf16.mxu0 0
        %1180 = vmatmul.mubr.bf16.gmra.mrb[0].mxu0 %v1075
        %v1181 = vpop.f32.mrb[0].mxu0
        %v1182 = vadd.f32 %v897, %v1181
        %v1183 = vpop.f32.mrb[0].mxu0
        %v1184 = vadd.f32 %v899, %v1183
        %v1185 = vpop.f32.mrb[0].mxu0
        %v1186 = vadd.f32 %v901, %v1185
        %v1187 = vpop.f32.mrb[0].mxu0
        %v1188 = vadd.f32 %v903, %v1187
        %1189 = vmatprep.mubr.bf16.mxu0 0
        %1190 = vmatmul.mubr.bf16.gmra.mrb[0].mxu0 %v1077
        %v1191 = vpop.f32.mrb[0].mxu0
        %v1192 = vadd.f32 %v907, %v1191
        %v1193 = vpop.f32.mrb[0].mxu0
        %v1194 = vadd.f32 %v909, %v1193
        %v1195 = vpop.f32.mrb[0].mxu0
        %v1196 = vadd.f32 %v911, %v1195
        %v1197 = vpop.f32.mrb[0].mxu0
        %v1198 = vadd.f32 %v913, %v1197
        %1199 = vmatprep.mubr.bf16.mxu0 0
        %1200 = vmatmul.mubr.bf16.gmra.mrb[0].mxu0 %v1079
        %v1201 = vpop.f32.mrb[0].mxu0
        %v1202 = vadd.f32 %v917, %v1201
        %v1203 = vpop.f32.mrb[0].mxu0
        %v1204 = vadd.f32 %v919, %v1203
        %v1205 = vpop.f32.mrb[0].mxu0
        %v1206 = vadd.f32 %v921, %v1205
        %v1207 = vpop.f32.mrb[0].mxu0
        %v1208 = vadd.f32 %v923, %v1207
        %1209 = vmatprep.mubr.bf16.mxu0 0
        %1210 = vmatmul.mubr.bf16.gmra.mrb[0].mxu0 %v1081
        %v1211 = vpop.f32.mrb[0].mxu0
        %v1212 = vadd.f32 %v927, %v1211
        %v1213 = vpop.f32.mrb[0].mxu0
        %v1214 = vadd.f32 %v929, %v1213
        %v1215 = vpop.f32.mrb[0].mxu0
        %v1216 = vadd.f32 %v931, %v1215
        %v1217 = vpop.f32.mrb[0].mxu0
        %v1218 = vadd.f32 %v933, %v1217
        %1219 = vmatprep.mubr.bf16.mxu0 0
        %1220 = vmatmul.mubr.bf16.gmra.mrb[0].mxu0 %v1083
        %v1221 = vpop.f32.mrb[0].mxu0
        %v1222 = vadd.f32 %v937, %v1221
        %v1223 = vpop.f32.mrb[0].mxu0
        %v1224 = vadd.f32 %v939, %v1223
        %v1225 = vpop.f32.mrb[0].mxu0
        %v1226 = vadd.f32 %v941, %v1225
        %v1227 = vpop.f32.mrb[0].mxu0
        %v1228 = vadd.f32 %v943, %v1227
        %1229 = vmatprep.mubr.bf16.mxu0 0
        %1230 = vmatmul.mubr.bf16.gmra.mrb[0].mxu0 %v1085
        %v1231 = vpop.f32.mrb[0].mxu0
        %v1232 = vadd.f32 %v947, %v1231
        %v1233 = vpop.f32.mrb[0].mxu0
        %v1234 = vadd.f32 %v949, %v1233
        %v1235 = vpop.f32.mrb[0].mxu0
        %v1236 = vadd.f32 %v951, %v1235
        %v1237 = vpop.f32.mrb[0].mxu0
        %v1238 = vadd.f32 %v953, %v1237
        %1239 = vmatprep.mubr.bf16.mxu0 0
        %1240 = vmatmul.mubr.bf16.gmra.mrb[0].mxu0 %v1087
        %v1241 = vpop.f32.mrb[0].mxu0
        %v1242 = vadd.f32 %v957, %v1241
        %v1243 = vpop.f32.mrb[0].mxu0
        %v1244 = vadd.f32 %v959, %v1243
        %v1245 = vpop.f32.mrb[0].mxu0
        %v1246 = vadd.f32 %v961, %v1245
        %v1247 = vpop.f32.mrb[0].mxu0
        %v1248 = vadd.f32 %v963, %v1247
        %1249 = vmatprep.mubr.bf16.mxu0 0
        %1250 = vmatmul.mubr.bf16.gmra.mrb[0].mxu0 %v1089
        %v1251 = vpop.f32.mrb[0].mxu0
        %v1252 = vadd.f32 %v967, %v1251
        %v1253 = vpop.f32.mrb[0].mxu0
        %v1254 = vadd.f32 %v969, %v1253
        %v1255 = vpop.f32.mrb[0].mxu0
        %v1256 = vadd.f32 %v971, %v1255
        %v1257 = vpop.f32.mrb[0].mxu0
        %v1258 = vadd.f32 %v973, %v1257
        %1259 = vmatprep.mubr.bf16.mxu0 0
        %1260 = vmatmul.mubr.bf16.gmra.mrb[0].mxu0 %v1091
        %v1261 = vpop.f32.mrb[0].mxu0
        %v1262 = vadd.f32 %v977, %v1261
        %v1263 = vpop.f32.mrb[0].mxu0
        %v1264 = vadd.f32 %v979, %v1263
        %v1265 = vpop.f32.mrb[0].mxu0
        %v1266 = vadd.f32 %v981, %v1265
        %v1267 = vpop.f32.mrb[0].mxu0
        %v1268 = vadd.f32 %v983, %v1267
        %1269 = vmatprep.mubr.bf16.mxu0 0
        %1270 = vmatmul.mubr.bf16.gmra.mrb[0].mxu0 %v1093
        %v1271 = vpop.f32.mrb[0].mxu0
        %v1272 = vadd.f32 %v987, %v1271
        %v1273 = vpop.f32.mrb[0].mxu0
        %v1274 = vadd.f32 %v989, %v1273
        %v1275 = vpop.f32.mrb[0].mxu0
        %v1276 = vadd.f32 %v991, %v1275
        %v1277 = vpop.f32.mrb[0].mxu0
        %v1278 = vadd.f32 %v993, %v1277
        %1279 = vmatprep.mubr.bf16.mxu0 0
        %1280 = vmatmul.mubr.bf16.gmra.mrb[0].mxu0 %v1095
        %v1281 = vpop.f32.mrb[0].mxu0
        %v1282 = vadd.f32 %v997, %v1281
        %v1283 = vpop.f32.mrb[0].mxu0
        %v1284 = vadd.f32 %v999, %v1283
        %v1285 = vpop.f32.mrb[0].mxu0
        %v1286 = vadd.f32 %v1001, %v1285
        %v1287 = vpop.f32.mrb[0].mxu0
        %v1288 = vadd.f32 %v1003, %v1287
        %1289 = vdwg.mxu0
        %s1290 = scalar_lea.vmem %s1, 192
        %v1291 = vld [vmem:[%s1290] sm:$0xff]
        %v1292 = vld [vmem:[%s1290 + $0x8] sm:$0xff]
        %v1293 = vld [vmem:[%s1290 + $0x10] sm:$0xff]
        %v1294 = vld [vmem:[%s1290 + $0x18] sm:$0xff]
        %v1295 = vld [vmem:[%s1290 + $0x20] sm:$0xff]
        %v1296 = vld [vmem:[%s1290 + $0x28] sm:$0xff]
        %v1297 = vld [vmem:[%s1290 + $0x30] sm:$0xff]
        %v1298 = vld [vmem:[%s1290 + $0x38] sm:$0xff]
        %v1299 = vld [vmem:[%s1290 + $0x40] sm:$0xff]
        %v1300 = vld [vmem:[%s1290 + $0x48] sm:$0xff]
        %v1301 = vld [vmem:[%s1290 + $0x50] sm:$0xff]
        %v1302 = vld [vmem:[%s1290 + $0x58] sm:$0xff]
        %vm1320 = vcmask 1046528
        %v1321 = vrot.slane %v528, 1
        %v1322 = vrot.slane %v529, 1
        %v1323 = vsel %vm1320, %v1321, %v1322
        %v1324 = vrot.slane %v530, 1
        %v1325 = vsel %vm1320, %v1322, %v1324
        %v1326 = vrot.slane %v531, 1
        %v1327 = vsel %vm1320, %v1324, %v1326
        %v1328 = vrot.slane %v532, 1
        %v1329 = vsel %vm1320, %v1326, %v1328
        %v1330 = vrot.slane %v533, 1
        %v1331 = vsel %vm1320, %v1328, %v1330
        %v1332 = vrot.slane %v534, 1
        %v1333 = vsel %vm1320, %v1330, %v1332
        %v1334 = vrot.slane %v535, 1
        %v1335 = vsel %vm1320, %v1332, %v1334
        %v1336 = vrot.slane %v536, 1
        %v1337 = vsel %vm1320, %v1334, %v1336
        %v1338 = vrot.slane %v537, 1
        %v1339 = vsel %vm1320, %v1336, %v1338
        %v1340 = vrot.slane %v538, 1
        %v1341 = vsel %vm1320, %v1338, %v1340
        %v1342 = vrot.slane %v539, 1
        %v1343 = vsel %vm1320, %v1340, %v1342
        %v1344 = vrot.slane %v540, 1
        %v1345 = vsel %vm1320, %v1342, %v1344
        %v1346 = vrot.slane %v541, 1
        %v1347 = vsel %vm1320, %v1344, %v1346
        %v1348 = vrot.slane %v542, 1
        %v1349 = vsel %vm1320, %v1346, %v1348
        %v1350 = vrot.slane %v543, 1
        %v1351 = vsel %vm1320, %v1348, %v1350
        %v1352 = vrot.slane %v556, 1
        %v1353 = vsel %vm1320, %v1350, %v1352
        %v1366 = vunpack.c.l.b16 %v1291
        %v1367 = vunpack.c.h.b16 %v1291
        %v1368 = vunpack.c.l.b16 %v1292
        %v1369 = vunpack.c.h.b16 %v1292
        %v1370 = vunpack.c.l.b16 %v1293
        %v1371 = vunpack.c.h.b16 %v1293
        %v1372 = vunpack.c.l.b16 %v1294
        %v1373 = vunpack.c.h.b16 %v1294
        %v1374 = vunpack.c.l.b16 %v1295
        %v1375 = vunpack.c.h.b16 %v1295
        %v1376 = vunpack.c.l.b16 %v1296
        %v1377 = vunpack.c.h.b16 %v1296
        %v1378 = vunpack.c.l.b16 %v1297
        %v1379 = vunpack.c.h.b16 %v1297
        %v1380 = vunpack.c.l.b16 %v1298
        %v1381 = vunpack.c.h.b16 %v1298
        %v1382 = vunpack.c.l.b16 %v1299
        %v1383 = vunpack.c.h.b16 %v1299
        %v1384 = vunpack.c.l.b16 %v1300
        %v1385 = vunpack.c.h.b16 %v1300
        %v1386 = vunpack.c.l.b16 %v1301
        %v1387 = vunpack.c.h.b16 %v1301
        %v1388 = vunpack.c.l.b16 %v1302
        %v1389 = vunpack.c.h.b16 %v1302
        %v1390 = vpack.c.b16 %v1368, %v1366
        %v1391 = vpack.c.b16 %v1369, %v1367
        %v1392 = vpack.c.b16 %v1372, %v1370
        %v1393 = vpack.c.b16 %v1373, %v1371
        %v1394 = vpack.c.b16 %v1376, %v1374
        %v1395 = vpack.c.b16 %v1377, %v1375
        %v1396 = vpack.c.b16 %v1380, %v1378
        %v1397 = vpack.c.b16 %v1381, %v1379
        %v1398 = vpack.c.b16 %v1384, %v1382
        %v1399 = vpack.c.b16 %v1385, %v1383
        %v1400 = vpack.c.b16 %v1388, %v1386
        %v1401 = vpack.c.b16 %v1389, %v1387
        %v1415 = vsel %vm763, %v1323, 0
        %v1418 = vsel %vm763, %v1325, 0
        %v1421 = vsel %vm763, %v1327, 0
        %v1424 = vsel %vm763, %v1329, 0
        %v1427 = vsel %vm763, %v1331, 0
        %v1430 = vsel %vm763, %v1333, 0
        %v1433 = vsel %vm763, %v1335, 0
        %v1436 = vsel %vm763, %v1337, 0
        %v1439 = vsel %vm763, %v1339, 0
        %v1442 = vsel %vm763, %v1341, 0
        %v1445 = vsel %vm763, %v1343, 0
        %v1448 = vsel %vm763, %v1345, 0
        %v1451 = vsel %vm763, %v1347, 0
        %v1454 = vsel %vm763, %v1349, 0
        %v1457 = vsel %vm763, %v1351, 0
        %v1460 = vsel %vm763, %v1353, 0
        %1462 = vmatprep.subr.bf16.mxu0 %v1391
        %1463 = vmatpush1.bf16.msra.mxu0 %v1390
        %1464 = vmatprep.subr.bf16.mxu0 %v1393
        %1465 = vmatpush1.bf16.msra.mxu0 %v1392
        %1466 = vmatprep.subr.bf16.mxu0 %v1395
        %1467 = vmatpush1.bf16.msra.mxu0 %v1394
        %1468 = vmatprep.subr.bf16.mxu0 %v1397
        %1469 = vmatpush1.bf16.msra.mxu0 %v1396
        %1470 = vmatprep.subr.bf16.mxu0 %v1399
        %1471 = vmatpush1.bf16.msra.mxu0 %v1398
        %1472 = vmatprep.subr.bf16.mxu0 %v1401
        %1473 = vmatpush1.bf16.msra.mxu0 %v1400
        %1474 = vmatprep.subr.bf16.mxu0 0
        %1475 = vmatpush1.bf16.msra.mxu0 0
        %1476 = vmatprep.subr.bf16.mxu0 0
        %1477 = vmatpush1.bf16.msra.mxu0 0
        %1478 = vmatprep.subr.bf16.mxu0 0
        %1479 = vmatpush1.bf16.msra.mxu0 0
        %1480 = vmatprep.subr.bf16.mxu0 0
        %1481 = vmatpush1.bf16.msra.mxu0 0
        %1482 = vmatprep.subr.bf16.mxu0 0
        %1483 = vmatpush1.bf16.msra.mxu0 0
        %1484 = vmatprep.subr.bf16.mxu0 0
        %1485 = vmatpush1.bf16.msra.mxu0 0
        %1486 = vmatprep.subr.bf16.mxu0 0
        %1487 = vmatpush1.bf16.msra.mxu0 0
        %1488 = vmatprep.subr.bf16.mxu0 0
        %1489 = vmatpush1.bf16.msra.mxu0 0
        %1490 = vmatprep.subr.bf16.mxu0 0
        %1491 = vmatpush1.bf16.msra.mxu0 0
        %1492 = vmatprep.subr.bf16.mxu0 0
        %1493 = vmatpush1.bf16.msra.mxu0 0
        %1494 = vmatprep.mubr.bf16.mxu0 0
        %1495 = vmatmul.mubr.bf16.gmra.mrb[0].mxu0 %v1415
        %v1496 = vpop.f32.mrb[0].mxu0
        %v1497 = vadd.f32 0.0, %v1496
        %v1498 = vpop.f32.mrb[0].mxu0
        %v1499 = vadd.f32 0.0, %v1498
        %v1500 = vpop.f32.mrb[0].mxu0
        %v1501 = vadd.f32 0.0, %v1500
        %v1502 = vpop.f32.mrb[0].mxu0
        %v1503 = vadd.f32 0.0, %v1502
        %1504 = vmatprep.mubr.bf16.mxu0 0
        %1505 = vmatmul.mubr.bf16.gmra.mrb[0].mxu0 %v1418
        %v1506 = vpop.f32.mrb[0].mxu0
        %v1507 = vadd.f32 0.0, %v1506
        %v1508 = vpop.f32.mrb[0].mxu0
        %v1509 = vadd.f32 0.0, %v1508
        %v1510 = vpop.f32.mrb[0].mxu0
        %v1511 = vadd.f32 0.0, %v1510
        %v1512 = vpop.f32.mrb[0].mxu0
        %v1513 = vadd.f32 0.0, %v1512
        %1514 = vmatprep.mubr.bf16.mxu0 0
        %1515 = vmatmul.mubr.bf16.gmra.mrb[0].mxu0 %v1421
        %v1516 = vpop.f32.mrb[0].mxu0
        %v1517 = vadd.f32 0.0, %v1516
        %v1518 = vpop.f32.mrb[0].mxu0
        %v1519 = vadd.f32 0.0, %v1518
        %v1520 = vpop.f32.mrb[0].mxu0
        %v1521 = vadd.f32 0.0, %v1520
        %v1522 = vpop.f32.mrb[0].mxu0
        %v1523 = vadd.f32 0.0, %v1522
        %1524 = vmatprep.mubr.bf16.mxu0 0
        %1525 = vmatmul.mubr.bf16.gmra.mrb[0].mxu0 %v1424
        %v1526 = vpop.f32.mrb[0].mxu0
        %v1527 = vadd.f32 0.0, %v1526
        %v1528 = vpop.f32.mrb[0].mxu0
        %v1529 = vadd.f32 0.0, %v1528
        %v1530 = vpop.f32.mrb[0].mxu0
        %v1531 = vadd.f32 0.0, %v1530
        %v1532 = vpop.f32.mrb[0].mxu0
        %v1533 = vadd.f32 0.0, %v1532
        %1534 = vmatprep.mubr.bf16.mxu0 0
        %1535 = vmatmul.mubr.bf16.gmra.mrb[0].mxu0 %v1427
        %v1536 = vpop.f32.mrb[0].mxu0
        %v1537 = vadd.f32 0.0, %v1536
        %v1538 = vpop.f32.mrb[0].mxu0
        %v1539 = vadd.f32 0.0, %v1538
        %v1540 = vpop.f32.mrb[0].mxu0
        %v1541 = vadd.f32 0.0, %v1540
        %v1542 = vpop.f32.mrb[0].mxu0
        %v1543 = vadd.f32 0.0, %v1542
        %1544 = vmatprep.mubr.bf16.mxu0 0
        %1545 = vmatmul.mubr.bf16.gmra.mrb[0].mxu0 %v1430
        %v1546 = vpop.f32.mrb[0].mxu0
        %v1547 = vadd.f32 0.0, %v1546
        %v1548 = vpop.f32.mrb[0].mxu0
        %v1549 = vadd.f32 0.0, %v1548
        %v1550 = vpop.f32.mrb[0].mxu0
        %v1551 = vadd.f32 0.0, %v1550
        %v1552 = vpop.f32.mrb[0].mxu0
        %v1553 = vadd.f32 0.0, %v1552
        %1554 = vmatprep.mubr.bf16.mxu0 0
        %1555 = vmatmul.mubr.bf16.gmra.mrb[0].mxu0 %v1433
        %v1556 = vpop.f32.mrb[0].mxu0
        %v1557 = vadd.f32 0.0, %v1556
        %v1558 = vpop.f32.mrb[0].mxu0
        %v1559 = vadd.f32 0.0, %v1558
        %v1560 = vpop.f32.mrb[0].mxu0
        %v1561 = vadd.f32 0.0, %v1560
        %v1562 = vpop.f32.mrb[0].mxu0
        %v1563 = vadd.f32 0.0, %v1562
        %1564 = vmatprep.mubr.bf16.mxu0 0
        %1565 = vmatmul.mubr.bf16.gmra.mrb[0].mxu0 %v1436
        %v1566 = vpop.f32.mrb[0].mxu0
        %v1567 = vadd.f32 0.0, %v1566
        %v1568 = vpop.f32.mrb[0].mxu0
        %v1569 = vadd.f32 0.0, %v1568
        %v1570 = vpop.f32.mrb[0].mxu0
        %v1571 = vadd.f32 0.0, %v1570
        %v1572 = vpop.f32.mrb[0].mxu0
        %v1573 = vadd.f32 0.0, %v1572
        %1574 = vmatprep.mubr.bf16.mxu0 0
        %1575 = vmatmul.mubr.bf16.gmra.mrb[0].mxu0 %v1439
        %v1576 = vpop.f32.mrb[0].mxu0
        %v1577 = vadd.f32 0.0, %v1576
        %v1578 = vpop.f32.mrb[0].mxu0
        %v1579 = vadd.f32 0.0, %v1578
        %v1580 = vpop.f32.mrb[0].mxu0
        %v1581 = vadd.f32 0.0, %v1580
        %v1582 = vpop.f32.mrb[0].mxu0
        %v1583 = vadd.f32 0.0, %v1582
        %1584 = vmatprep.mubr.bf16.mxu0 0
        %1585 = vmatmul.mubr.bf16.gmra.mrb[0].mxu0 %v1442
        %v1586 = vpop.f32.mrb[0].mxu0
        %v1587 = vadd.f32 0.0, %v1586
        %v1588 = vpop.f32.mrb[0].mxu0
        %v1589 = vadd.f32 0.0, %v1588
        %v1590 = vpop.f32.mrb[0].mxu0
        %v1591 = vadd.f32 0.0, %v1590
        %v1592 = vpop.f32.mrb[0].mxu0
        %v1593 = vadd.f32 0.0, %v1592
        %1594 = vmatprep.mubr.bf16.mxu0 0
        %1595 = vmatmul.mubr.bf16.gmra.mrb[0].mxu0 %v1445
        %v1596 = vpop.f32.mrb[0].mxu0
        %v1597 = vadd.f32 0.0, %v1596
        %v1598 = vpop.f32.mrb[0].mxu0
        %v1599 = vadd.f32 0.0, %v1598
        %v1600 = vpop.f32.mrb[0].mxu0
        %v1601 = vadd.f32 0.0, %v1600
        %v1602 = vpop.f32.mrb[0].mxu0
        %v1603 = vadd.f32 0.0, %v1602
        %1604 = vmatprep.mubr.bf16.mxu0 0
        %1605 = vmatmul.mubr.bf16.gmra.mrb[0].mxu0 %v1448
        %v1606 = vpop.f32.mrb[0].mxu0
        %v1607 = vadd.f32 0.0, %v1606
        %v1608 = vpop.f32.mrb[0].mxu0
        %v1609 = vadd.f32 0.0, %v1608
        %v1610 = vpop.f32.mrb[0].mxu0
        %v1611 = vadd.f32 0.0, %v1610
        %v1612 = vpop.f32.mrb[0].mxu0
        %v1613 = vadd.f32 0.0, %v1612
        %1614 = vmatprep.mubr.bf16.mxu0 0
        %1615 = vmatmul.mubr.bf16.gmra.mrb[0].mxu0 %v1451
        %v1616 = vpop.f32.mrb[0].mxu0
        %v1617 = vadd.f32 0.0, %v1616
        %v1618 = vpop.f32.mrb[0].mxu0
        %v1619 = vadd.f32 0.0, %v1618
        %v1620 = vpop.f32.mrb[0].mxu0
        %v1621 = vadd.f32 0.0, %v1620
        %v1622 = vpop.f32.mrb[0].mxu0
        %v1623 = vadd.f32 0.0, %v1622
        %1624 = vmatprep.mubr.bf16.mxu0 0
        %1625 = vmatmul.mubr.bf16.gmra.mrb[0].mxu0 %v1454
        %v1626 = vpop.f32.mrb[0].mxu0
        %v1627 = vadd.f32 0.0, %v1626
        %v1628 = vpop.f32.mrb[0].mxu0
        %v1629 = vadd.f32 0.0, %v1628
        %v1630 = vpop.f32.mrb[0].mxu0
        %v1631 = vadd.f32 0.0, %v1630
        %v1632 = vpop.f32.mrb[0].mxu0
        %v1633 = vadd.f32 0.0, %v1632
        %1634 = vmatprep.mubr.bf16.mxu0 0
        %1635 = vmatmul.mubr.bf16.gmra.mrb[0].mxu0 %v1457
        %v1636 = vpop.f32.mrb[0].mxu0
        %v1637 = vadd.f32 0.0, %v1636
        %v1638 = vpop.f32.mrb[0].mxu0
        %v1639 = vadd.f32 0.0, %v1638
        %v1640 = vpop.f32.mrb[0].mxu0
        %v1641 = vadd.f32 0.0, %v1640
        %v1642 = vpop.f32.mrb[0].mxu0
        %v1643 = vadd.f32 0.0, %v1642
        %1644 = vmatprep.mubr.bf16.mxu0 0
        %1645 = vmatmul.mubr.bf16.gmra.mrb[0].mxu0 %v1460
        %v1646 = vpop.f32.mrb[0].mxu0
        %v1647 = vadd.f32 0.0, %v1646
        %v1648 = vpop.f32.mrb[0].mxu0
        %v1649 = vadd.f32 0.0, %v1648
        %v1650 = vpop.f32.mrb[0].mxu0
        %v1651 = vadd.f32 0.0, %v1650
        %v1652 = vpop.f32.mrb[0].mxu0
        %v1653 = vadd.f32 0.0, %v1652
        %1654 = vdwg.mxu0
        %v1655 = vadd.f32 %v1132, %v1497
        %v1656 = vadd.f32 %v1134, %v1499
        %v1657 = vadd.f32 %v1136, %v1501
        %v1658 = vadd.f32 %v1138, %v1503
        %v1659 = vadd.f32 %v1142, %v1507
        %v1660 = vadd.f32 %v1144, %v1509
        %v1661 = vadd.f32 %v1146, %v1511
        %v1662 = vadd.f32 %v1148, %v1513
        %v1663 = vadd.f32 %v1152, %v1517
        %v1664 = vadd.f32 %v1154, %v1519
        %v1665 = vadd.f32 %v1156, %v1521
        %v1666 = vadd.f32 %v1158, %v1523
        %v1667 = vadd.f32 %v1162, %v1527
        %v1668 = vadd.f32 %v1164, %v1529
        %v1669 = vadd.f32 %v1166, %v1531
        %v1670 = vadd.f32 %v1168, %v1533
        %v1671 = vadd.f32 %v1172, %v1537
        %v1672 = vadd.f32 %v1174, %v1539
        %v1673 = vadd.f32 %v1176, %v1541
        %v1674 = vadd.f32 %v1178, %v1543
        %v1675 = vadd.f32 %v1182, %v1547
        %v1676 = vadd.f32 %v1184, %v1549
        %v1677 = vadd.f32 %v1186, %v1551
        %v1678 = vadd.f32 %v1188, %v1553
        %v1679 = vadd.f32 %v1192, %v1557
        %v1680 = vadd.f32 %v1194, %v1559
        %v1681 = vadd.f32 %v1196, %v1561
        %v1682 = vadd.f32 %v1198, %v1563
        %v1683 = vadd.f32 %v1202, %v1567
        %v1684 = vadd.f32 %v1204, %v1569
        %v1685 = vadd.f32 %v1206, %v1571
        %v1686 = vadd.f32 %v1208, %v1573
        %v1687 = vadd.f32 %v1212, %v1577
        %v1688 = vadd.f32 %v1214, %v1579
        %v1689 = vadd.f32 %v1216, %v1581
        %v1690 = vadd.f32 %v1218, %v1583
        %v1691 = vadd.f32 %v1222, %v1587
        %v1692 = vadd.f32 %v1224, %v1589
        %v1693 = vadd.f32 %v1226, %v1591
        %v1694 = vadd.f32 %v1228, %v1593
        %v1695 = vadd.f32 %v1232, %v1597
        %v1696 = vadd.f32 %v1234, %v1599
        %v1697 = vadd.f32 %v1236, %v1601
        %v1698 = vadd.f32 %v1238, %v1603
        %v1699 = vadd.f32 %v1242, %v1607
        %v1700 = vadd.f32 %v1244, %v1609
        %v1701 = vadd.f32 %v1246, %v1611
        %v1702 = vadd.f32 %v1248, %v1613
        %v1703 = vadd.f32 %v1252, %v1617
        %v1704 = vadd.f32 %v1254, %v1619
        %v1705 = vadd.f32 %v1256, %v1621
        %v1706 = vadd.f32 %v1258, %v1623
        %v1707 = vadd.f32 %v1262, %v1627
        %v1708 = vadd.f32 %v1264, %v1629
        %v1709 = vadd.f32 %v1266, %v1631
        %v1710 = vadd.f32 %v1268, %v1633
        %v1711 = vadd.f32 %v1272, %v1637
        %v1712 = vadd.f32 %v1274, %v1639
        %v1713 = vadd.f32 %v1276, %v1641
        %v1714 = vadd.f32 %v1278, %v1643
        %v1715 = vadd.f32 %v1282, %v1647
        %v1716 = vadd.f32 %v1284, %v1649
        %v1717 = vadd.f32 %v1286, %v1651
        %v1718 = vadd.f32 %v1288, %v1653
        %s1719 = scalar_lea.vmem %s1, 288
        %v1720 = vld [vmem:[%s1719] sm:$0xff]
        %v1721 = vld [vmem:[%s1719 + $0x8] sm:$0xff]
        %v1722 = vld [vmem:[%s1719 + $0x10] sm:$0xff]
        %v1723 = vld [vmem:[%s1719 + $0x18] sm:$0xff]
        %v1724 = vld [vmem:[%s1719 + $0x20] sm:$0xff]
        %v1725 = vld [vmem:[%s1719 + $0x28] sm:$0xff]
        %v1726 = vld [vmem:[%s1719 + $0x30] sm:$0xff]
        %v1727 = vld [vmem:[%s1719 + $0x38] sm:$0xff]
        %v1728 = vld [vmem:[%s1719 + $0x40] sm:$0xff]
        %v1729 = vld [vmem:[%s1719 + $0x48] sm:$0xff]
        %v1730 = vld [vmem:[%s1719 + $0x50] sm:$0xff]
        %v1731 = vld [vmem:[%s1719 + $0x58] sm:$0xff]
        %vm1732 = vsmask.f32 6400
        %v1733 = vrot.slane %v572, 1
        %v1734 = vrot.slane %v574, 2
        %v1735 = vor.u32 %v1733, %v1734
        %v1736 = vrot.slane %v583, 1
        %v1737 = vrot.slane %v579, 2
        %v1738 = vor.u32 %v1736, %v1737
        %v1739 = vsel %vm1732, %v1735, %v1738
        %v1740 = vrot.slane %v591, 1
        %v1741 = vrot.slane %v587, 2
        %v1742 = vor.u32 %v1740, %v1741
        %v1743 = vsel %vm1732, %v1738, %v1742
        %v1744 = vrot.slane %v599, 1
        %v1745 = vrot.slane %v595, 2
        %v1746 = vor.u32 %v1744, %v1745
        %v1747 = vsel %vm1732, %v1742, %v1746
        %v1748 = vrot.slane %v607, 1
        %v1749 = vrot.slane %v603, 2
        %v1750 = vor.u32 %v1748, %v1749
        %v1751 = vsel %vm1732, %v1746, %v1750
        %v1752 = vrot.slane %v615, 1
        %v1753 = vrot.slane %v611, 2
        %v1754 = vor.u32 %v1752, %v1753
        %v1755 = vsel %vm1732, %v1750, %v1754
        %v1756 = vrot.slane %v623, 1
        %v1757 = vrot.slane %v619, 2
        %v1758 = vor.u32 %v1756, %v1757
        %v1759 = vsel %vm1732, %v1754, %v1758
        %v1760 = vrot.slane %v631, 1
        %v1761 = vrot.slane %v627, 2
        %v1762 = vor.u32 %v1760, %v1761
        %v1763 = vsel %vm1732, %v1758, %v1762
        %v1764 = vrot.slane %v639, 1
        %v1765 = vrot.slane %v635, 2
        %v1766 = vor.u32 %v1764, %v1765
        %v1767 = vsel %vm1732, %v1762, %v1766
        %v1768 = vrot.slane %v647, 1
        %v1769 = vrot.slane %v643, 2
        %v1770 = vor.u32 %v1768, %v1769
        %v1771 = vsel %vm1732, %v1766, %v1770
        %v1772 = vrot.slane %v655, 1
        %v1773 = vrot.slane %v651, 2
        %v1774 = vor.u32 %v1772, %v1773
        %v1775 = vsel %vm1732, %v1770, %v1774
        %v1776 = vrot.slane %v663, 1
        %v1777 = vrot.slane %v659, 2
        %v1778 = vor.u32 %v1776, %v1777
        %v1779 = vsel %vm1732, %v1774, %v1778
        %v1780 = vrot.slane %v671, 1
        %v1781 = vrot.slane %v667, 2
        %v1782 = vor.u32 %v1780, %v1781
        %v1783 = vsel %vm1732, %v1778, %v1782
        %v1784 = vrot.slane %v679, 1
        %v1785 = vrot.slane %v675, 2
        %v1786 = vor.u32 %v1784, %v1785
        %v1787 = vsel %vm1732, %v1782, %v1786
        %v1788 = vrot.slane %v687, 1
        %v1789 = vrot.slane %v683, 2
        %v1790 = vor.u32 %v1788, %v1789
        %v1791 = vsel %vm1732, %v1786, %v1790
        %v1792 = vrot.slane %v695, 1
        %v1793 = vrot.slane %v691, 2
        %v1794 = vor.u32 %v1792, %v1793
        %v1795 = vsel %vm1732, %v1790, %v1794
        %v1796 = vshrl.u32 %v556, 16
        %v1798 = vrot.slane %v1796, 1
        %v1799 = vrot.slane %v699, 2
        %v1800 = vor.u32 %v1798, %v1799
        %v1801 = vsel %vm1732, %v1794, %v1800
        %v1814 = vunpack.c.l.b16 %v1720
        %v1815 = vunpack.c.h.b16 %v1720
        %v1816 = vunpack.c.l.b16 %v1721
        %v1817 = vunpack.c.h.b16 %v1721
        %v1818 = vunpack.c.l.b16 %v1722
        %v1819 = vunpack.c.h.b16 %v1722
        %v1820 = vunpack.c.l.b16 %v1723
        %v1821 = vunpack.c.h.b16 %v1723
        %v1822 = vunpack.c.l.b16 %v1724
        %v1823 = vunpack.c.h.b16 %v1724
        %v1824 = vunpack.c.l.b16 %v1725
        %v1825 = vunpack.c.h.b16 %v1725
        %v1826 = vunpack.c.l.b16 %v1726
        %v1827 = vunpack.c.h.b16 %v1726
        %v1828 = vunpack.c.l.b16 %v1727
        %v1829 = vunpack.c.h.b16 %v1727
        %v1830 = vunpack.c.l.b16 %v1728
        %v1831 = vunpack.c.h.b16 %v1728
        %v1832 = vunpack.c.l.b16 %v1729
        %v1833 = vunpack.c.h.b16 %v1729
        %v1834 = vunpack.c.l.b16 %v1730
        %v1835 = vunpack.c.h.b16 %v1730
        %v1836 = vunpack.c.l.b16 %v1731
        %v1837 = vunpack.c.h.b16 %v1731
        %v1838 = vpack.c.b16 %v1816, %v1814
        %v1839 = vpack.c.b16 %v1817, %v1815
        %v1840 = vpack.c.b16 %v1820, %v1818
        %v1841 = vpack.c.b16 %v1821, %v1819
        %v1842 = vpack.c.b16 %v1824, %v1822
        %v1843 = vpack.c.b16 %v1825, %v1823
        %v1844 = vpack.c.b16 %v1828, %v1826
        %v1845 = vpack.c.b16 %v1829, %v1827
        %v1846 = vpack.c.b16 %v1832, %v1830
        %v1847 = vpack.c.b16 %v1833, %v1831
        %v1848 = vpack.c.b16 %v1836, %v1834
        %v1849 = vpack.c.b16 %v1837, %v1835
        %v1863 = vsel %vm763, %v1739, 0
        %v1866 = vsel %vm763, %v1743, 0
        %v1869 = vsel %vm763, %v1747, 0
        %v1872 = vsel %vm763, %v1751, 0
        %v1875 = vsel %vm763, %v1755, 0
        %v1878 = vsel %vm763, %v1759, 0
        %v1881 = vsel %vm763, %v1763, 0
        %v1884 = vsel %vm763, %v1767, 0
        %v1887 = vsel %vm763, %v1771, 0
        %v1890 = vsel %vm763, %v1775, 0
        %v1893 = vsel %vm763, %v1779, 0
        %v1896 = vsel %vm763, %v1783, 0
        %v1899 = vsel %vm763, %v1787, 0
        %v1902 = vsel %vm763, %v1791, 0
        %v1905 = vsel %vm763, %v1795, 0
        %v1908 = vsel %vm763, %v1801, 0
        %1910 = vmatprep.subr.bf16.mxu0 %v1839
        %1911 = vmatpush1.bf16.msra.mxu0 %v1838
        %1912 = vmatprep.subr.bf16.mxu0 %v1841
        %1913 = vmatpush1.bf16.msra.mxu0 %v1840
        %1914 = vmatprep.subr.bf16.mxu0 %v1843
        %1915 = vmatpush1.bf16.msra.mxu0 %v1842
        %1916 = vmatprep.subr.bf16.mxu0 %v1845
        %1917 = vmatpush1.bf16.msra.mxu0 %v1844
        %1918 = vmatprep.subr.bf16.mxu0 %v1847
        %1919 = vmatpush1.bf16.msra.mxu0 %v1846
        %1920 = vmatprep.subr.bf16.mxu0 %v1849
        %1921 = vmatpush1.bf16.msra.mxu0 %v1848
        %1922 = vmatprep.subr.bf16.mxu0 0
        %1923 = vmatpush1.bf16.msra.mxu0 0
        %1924 = vmatprep.subr.bf16.mxu0 0
        %1925 = vmatpush1.bf16.msra.mxu0 0
        %1926 = vmatprep.subr.bf16.mxu0 0
        %1927 = vmatpush1.bf16.msra.mxu0 0
        %1928 = vmatprep.subr.bf16.mxu0 0
        %1929 = vmatpush1.bf16.msra.mxu0 0
        %1930 = vmatprep.subr.bf16.mxu0 0
        %1931 = vmatpush1.bf16.msra.mxu0 0
        %1932 = vmatprep.subr.bf16.mxu0 0
        %1933 = vmatpush1.bf16.msra.mxu0 0
        %1934 = vmatprep.subr.bf16.mxu0 0
        %1935 = vmatpush1.bf16.msra.mxu0 0
        %1936 = vmatprep.subr.bf16.mxu0 0
        %1937 = vmatpush1.bf16.msra.mxu0 0
        %1938 = vmatprep.subr.bf16.mxu0 0
        %1939 = vmatpush1.bf16.msra.mxu0 0
        %1940 = vmatprep.subr.bf16.mxu0 0
        %1941 = vmatpush1.bf16.msra.mxu0 0
        %1942 = vmatprep.mubr.bf16.mxu0 0
        %1943 = vmatmul.mubr.bf16.gmra.mrb[0].mxu0 %v1863
        %v1944 = vpop.f32.mrb[0].mxu0
        %v1945 = vadd.f32 0.0, %v1944
        %v1946 = vpop.f32.mrb[0].mxu0
        %v1947 = vadd.f32 0.0, %v1946
        %v1948 = vpop.f32.mrb[0].mxu0
        %v1949 = vadd.f32 0.0, %v1948
        %v1950 = vpop.f32.mrb[0].mxu0
        %v1951 = vadd.f32 0.0, %v1950
        %1952 = vmatprep.mubr.bf16.mxu0 0
        %1953 = vmatmul.mubr.bf16.gmra.mrb[0].mxu0 %v1866
        %v1954 = vpop.f32.mrb[0].mxu0
        %v1955 = vadd.f32 0.0, %v1954
        %v1956 = vpop.f32.mrb[0].mxu0
        %v1957 = vadd.f32 0.0, %v1956
        %v1958 = vpop.f32.mrb[0].mxu0
        %v1959 = vadd.f32 0.0, %v1958
        %v1960 = vpop.f32.mrb[0].mxu0
        %v1961 = vadd.f32 0.0, %v1960
        %1962 = vmatprep.mubr.bf16.mxu0 0
        %1963 = vmatmul.mubr.bf16.gmra.mrb[0].mxu0 %v1869
        %v1964 = vpop.f32.mrb[0].mxu0
        %v1965 = vadd.f32 0.0, %v1964
        %v1966 = vpop.f32.mrb[0].mxu0
        %v1967 = vadd.f32 0.0, %v1966
        %v1968 = vpop.f32.mrb[0].mxu0
        %v1969 = vadd.f32 0.0, %v1968
        %v1970 = vpop.f32.mrb[0].mxu0
        %v1971 = vadd.f32 0.0, %v1970
        %1972 = vmatprep.mubr.bf16.mxu0 0
        %1973 = vmatmul.mubr.bf16.gmra.mrb[0].mxu0 %v1872
        %v1974 = vpop.f32.mrb[0].mxu0
        %v1975 = vadd.f32 0.0, %v1974
        %v1976 = vpop.f32.mrb[0].mxu0
        %v1977 = vadd.f32 0.0, %v1976
        %v1978 = vpop.f32.mrb[0].mxu0
        %v1979 = vadd.f32 0.0, %v1978
        %v1980 = vpop.f32.mrb[0].mxu0
        %v1981 = vadd.f32 0.0, %v1980
        %1982 = vmatprep.mubr.bf16.mxu0 0
        %1983 = vmatmul.mubr.bf16.gmra.mrb[0].mxu0 %v1875
        %v1984 = vpop.f32.mrb[0].mxu0
        %v1985 = vadd.f32 0.0, %v1984
        %v1986 = vpop.f32.mrb[0].mxu0
        %v1987 = vadd.f32 0.0, %v1986
        %v1988 = vpop.f32.mrb[0].mxu0
        %v1989 = vadd.f32 0.0, %v1988
        %v1990 = vpop.f32.mrb[0].mxu0
        %v1991 = vadd.f32 0.0, %v1990
        %1992 = vmatprep.mubr.bf16.mxu0 0
        %1993 = vmatmul.mubr.bf16.gmra.mrb[0].mxu0 %v1878
        %v1994 = vpop.f32.mrb[0].mxu0
        %v1995 = vadd.f32 0.0, %v1994
        %v1996 = vpop.f32.mrb[0].mxu0
        %v1997 = vadd.f32 0.0, %v1996
        %v1998 = vpop.f32.mrb[0].mxu0
        %v1999 = vadd.f32 0.0, %v1998
        %v2000 = vpop.f32.mrb[0].mxu0
        %v2001 = vadd.f32 0.0, %v2000
        %2002 = vmatprep.mubr.bf16.mxu0 0
        %2003 = vmatmul.mubr.bf16.gmra.mrb[0].mxu0 %v1881
        %v2004 = vpop.f32.mrb[0].mxu0
        %v2005 = vadd.f32 0.0, %v2004
        %v2006 = vpop.f32.mrb[0].mxu0
        %v2007 = vadd.f32 0.0, %v2006
        %v2008 = vpop.f32.mrb[0].mxu0
        %v2009 = vadd.f32 0.0, %v2008
        %v2010 = vpop.f32.mrb[0].mxu0
        %v2011 = vadd.f32 0.0, %v2010
        %2012 = vmatprep.mubr.bf16.mxu0 0
        %2013 = vmatmul.mubr.bf16.gmra.mrb[0].mxu0 %v1884
        %v2014 = vpop.f32.mrb[0].mxu0
        %v2015 = vadd.f32 0.0, %v2014
        %v2016 = vpop.f32.mrb[0].mxu0
        %v2017 = vadd.f32 0.0, %v2016
        %v2018 = vpop.f32.mrb[0].mxu0
        %v2019 = vadd.f32 0.0, %v2018
        %v2020 = vpop.f32.mrb[0].mxu0
        %v2021 = vadd.f32 0.0, %v2020
        %2022 = vmatprep.mubr.bf16.mxu0 0
        %2023 = vmatmul.mubr.bf16.gmra.mrb[0].mxu0 %v1887
        %v2024 = vpop.f32.mrb[0].mxu0
        %v2025 = vadd.f32 0.0, %v2024
        %v2026 = vpop.f32.mrb[0].mxu0
        %v2027 = vadd.f32 0.0, %v2026
        %v2028 = vpop.f32.mrb[0].mxu0
        %v2029 = vadd.f32 0.0, %v2028
        %v2030 = vpop.f32.mrb[0].mxu0
        %v2031 = vadd.f32 0.0, %v2030
        %2032 = vmatprep.mubr.bf16.mxu0 0
        %2033 = vmatmul.mubr.bf16.gmra.mrb[0].mxu0 %v1890
        %v2034 = vpop.f32.mrb[0].mxu0
        %v2035 = vadd.f32 0.0, %v2034
        %v2036 = vpop.f32.mrb[0].mxu0
        %v2037 = vadd.f32 0.0, %v2036
        %v2038 = vpop.f32.mrb[0].mxu0
        %v2039 = vadd.f32 0.0, %v2038
        %v2040 = vpop.f32.mrb[0].mxu0
        %v2041 = vadd.f32 0.0, %v2040
        %2042 = vmatprep.mubr.bf16.mxu0 0
        %2043 = vmatmul.mubr.bf16.gmra.mrb[0].mxu0 %v1893
        %v2044 = vpop.f32.mrb[0].mxu0
        %v2045 = vadd.f32 0.0, %v2044
        %v2046 = vpop.f32.mrb[0].mxu0
        %v2047 = vadd.f32 0.0, %v2046
        %v2048 = vpop.f32.mrb[0].mxu0
        %v2049 = vadd.f32 0.0, %v2048
        %v2050 = vpop.f32.mrb[0].mxu0
        %v2051 = vadd.f32 0.0, %v2050
        %2052 = vmatprep.mubr.bf16.mxu0 0
        %2053 = vmatmul.mubr.bf16.gmra.mrb[0].mxu0 %v1896
        %v2054 = vpop.f32.mrb[0].mxu0
        %v2055 = vadd.f32 0.0, %v2054
        %v2056 = vpop.f32.mrb[0].mxu0
        %v2057 = vadd.f32 0.0, %v2056
        %v2058 = vpop.f32.mrb[0].mxu0
        %v2059 = vadd.f32 0.0, %v2058
        %v2060 = vpop.f32.mrb[0].mxu0
        %v2061 = vadd.f32 0.0, %v2060
        %2062 = vmatprep.mubr.bf16.mxu0 0
        %2063 = vmatmul.mubr.bf16.gmra.mrb[0].mxu0 %v1899
        %v2064 = vpop.f32.mrb[0].mxu0
        %v2065 = vadd.f32 0.0, %v2064
        %v2066 = vpop.f32.mrb[0].mxu0
        %v2067 = vadd.f32 0.0, %v2066
        %v2068 = vpop.f32.mrb[0].mxu0
        %v2069 = vadd.f32 0.0, %v2068
        %v2070 = vpop.f32.mrb[0].mxu0
        %v2071 = vadd.f32 0.0, %v2070
        %2072 = vmatprep.mubr.bf16.mxu0 0
        %2073 = vmatmul.mubr.bf16.gmra.mrb[0].mxu0 %v1902
        %v2074 = vpop.f32.mrb[0].mxu0
        %v2075 = vadd.f32 0.0, %v2074
        %v2076 = vpop.f32.mrb[0].mxu0
        %v2077 = vadd.f32 0.0, %v2076
        %v2078 = vpop.f32.mrb[0].mxu0
        %v2079 = vadd.f32 0.0, %v2078
        %v2080 = vpop.f32.mrb[0].mxu0
        %v2081 = vadd.f32 0.0, %v2080
        %2082 = vmatprep.mubr.bf16.mxu0 0
        %2083 = vmatmul.mubr.bf16.gmra.mrb[0].mxu0 %v1905
        %v2084 = vpop.f32.mrb[0].mxu0
        %v2085 = vadd.f32 0.0, %v2084
        %v2086 = vpop.f32.mrb[0].mxu0
        %v2087 = vadd.f32 0.0, %v2086
        %v2088 = vpop.f32.mrb[0].mxu0
        %v2089 = vadd.f32 0.0, %v2088
        %v2090 = vpop.f32.mrb[0].mxu0
        %v2091 = vadd.f32 0.0, %v2090
        %2092 = vmatprep.mubr.bf16.mxu0 0
        %2093 = vmatmul.mubr.bf16.gmra.mrb[0].mxu0 %v1908
        %v2094 = vpop.f32.mrb[0].mxu0
        %v2095 = vadd.f32 0.0, %v2094
        %v2096 = vpop.f32.mrb[0].mxu0
        %v2097 = vadd.f32 0.0, %v2096
        %v2098 = vpop.f32.mrb[0].mxu0
        %v2099 = vadd.f32 0.0, %v2098
        %v2100 = vpop.f32.mrb[0].mxu0
        %v2101 = vadd.f32 0.0, %v2100
        %2102 = vdwg.mxu0
        %v2103 = vadd.f32 %v1655, %v1945
        %v2104 = vadd.f32 %v1656, %v1947
        %v2105 = vadd.f32 %v1657, %v1949
        %v2106 = vadd.f32 %v1658, %v1951
        %v2107 = vadd.f32 %v1659, %v1955
        %v2108 = vadd.f32 %v1660, %v1957
        %v2109 = vadd.f32 %v1661, %v1959
        %v2110 = vadd.f32 %v1662, %v1961
        %v2111 = vadd.f32 %v1663, %v1965
        %v2112 = vadd.f32 %v1664, %v1967
        %v2113 = vadd.f32 %v1665, %v1969
        %v2114 = vadd.f32 %v1666, %v1971
        %v2115 = vadd.f32 %v1667, %v1975
        %v2116 = vadd.f32 %v1668, %v1977
        %v2117 = vadd.f32 %v1669, %v1979
        %v2118 = vadd.f32 %v1670, %v1981
        %v2119 = vadd.f32 %v1671, %v1985
        %v2120 = vadd.f32 %v1672, %v1987
        %v2121 = vadd.f32 %v1673, %v1989
        %v2122 = vadd.f32 %v1674, %v1991
        %v2123 = vadd.f32 %v1675, %v1995
        %v2124 = vadd.f32 %v1676, %v1997
        %v2125 = vadd.f32 %v1677, %v1999
        %v2126 = vadd.f32 %v1678, %v2001
        %v2127 = vadd.f32 %v1679, %v2005
        %v2128 = vadd.f32 %v1680, %v2007
        %v2129 = vadd.f32 %v1681, %v2009
        %v2130 = vadd.f32 %v1682, %v2011
        %v2131 = vadd.f32 %v1683, %v2015
        %v2132 = vadd.f32 %v1684, %v2017
        %v2133 = vadd.f32 %v1685, %v2019
        %v2134 = vadd.f32 %v1686, %v2021
        %v2135 = vadd.f32 %v1687, %v2025
        %v2136 = vadd.f32 %v1688, %v2027
        %v2137 = vadd.f32 %v1689, %v2029
        %v2138 = vadd.f32 %v1690, %v2031
        %v2139 = vadd.f32 %v1691, %v2035
        %v2140 = vadd.f32 %v1692, %v2037
        %v2141 = vadd.f32 %v1693, %v2039
        %v2142 = vadd.f32 %v1694, %v2041
        %v2143 = vadd.f32 %v1695, %v2045
        %v2144 = vadd.f32 %v1696, %v2047
        %v2145 = vadd.f32 %v1697, %v2049
        %v2146 = vadd.f32 %v1698, %v2051
        %v2147 = vadd.f32 %v1699, %v2055
        %v2148 = vadd.f32 %v1700, %v2057
        %v2149 = vadd.f32 %v1701, %v2059
        %v2150 = vadd.f32 %v1702, %v2061
        %v2151 = vadd.f32 %v1703, %v2065
        %v2152 = vadd.f32 %v1704, %v2067
        %v2153 = vadd.f32 %v1705, %v2069
        %v2154 = vadd.f32 %v1706, %v2071
        %v2155 = vadd.f32 %v1707, %v2075
        %v2156 = vadd.f32 %v1708, %v2077
        %v2157 = vadd.f32 %v1709, %v2079
        %v2158 = vadd.f32 %v1710, %v2081
        %v2159 = vadd.f32 %v1711, %v2085
        %v2160 = vadd.f32 %v1712, %v2087
        %v2161 = vadd.f32 %v1713, %v2089
        %v2162 = vadd.f32 %v1714, %v2091
        %v2163 = vadd.f32 %v1715, %v2095
        %v2164 = vadd.f32 %v1716, %v2097
        %v2165 = vadd.f32 %v1717, %v2099
        %v2166 = vadd.f32 %v1718, %v2101
        %s2167 = scalar_lea.vmem %s1, 384
        %v2168 = vld [vmem:[%s2167] sm:$0xff]
        %v2169 = vld [vmem:[%s2167 + $0x8] sm:$0xff]
        %v2170 = vld [vmem:[%s2167 + $0x10] sm:$0xff]
        %v2171 = vld [vmem:[%s2167 + $0x18] sm:$0xff]
        %v2172 = vld [vmem:[%s2167 + $0x20] sm:$0xff]
        %v2173 = vld [vmem:[%s2167 + $0x28] sm:$0xff]
        %v2174 = vld [vmem:[%s2167 + $0x30] sm:$0xff]
        %v2175 = vld [vmem:[%s2167 + $0x38] sm:$0xff]
        %v2176 = vld [vmem:[%s2167 + $0x40] sm:$0xff]
        %v2177 = vld [vmem:[%s2167 + $0x48] sm:$0xff]
        %v2178 = vld [vmem:[%s2167 + $0x50] sm:$0xff]
        %v2179 = vld [vmem:[%s2167 + $0x58] sm:$0xff]
        %vm2180 = vcmask 1045504
        %v2181 = vrot.slane %v528, 2
        %v2182 = vrot.slane %v529, 2
        %v2183 = vsel %vm2180, %v2181, %v2182
        %v2184 = vrot.slane %v530, 2
        %v2185 = vsel %vm2180, %v2182, %v2184
        %v2186 = vrot.slane %v531, 2
        %v2187 = vsel %vm2180, %v2184, %v2186
        %v2188 = vrot.slane %v532, 2
        %v2189 = vsel %vm2180, %v2186, %v2188
        %v2190 = vrot.slane %v533, 2
        %v2191 = vsel %vm2180, %v2188, %v2190
        %v2192 = vrot.slane %v534, 2
        %v2193 = vsel %vm2180, %v2190, %v2192
        %v2194 = vrot.slane %v535, 2
        %v2195 = vsel %vm2180, %v2192, %v2194
        %v2196 = vrot.slane %v536, 2
        %v2197 = vsel %vm2180, %v2194, %v2196
        %v2198 = vrot.slane %v537, 2
        %v2199 = vsel %vm2180, %v2196, %v2198
        %v2200 = vrot.slane %v538, 2
        %v2201 = vsel %vm2180, %v2198, %v2200
        %v2202 = vrot.slane %v539, 2
        %v2203 = vsel %vm2180, %v2200, %v2202
        %v2204 = vrot.slane %v540, 2
        %v2205 = vsel %vm2180, %v2202, %v2204
        %v2206 = vrot.slane %v541, 2
        %v2207 = vsel %vm2180, %v2204, %v2206
        %v2208 = vrot.slane %v542, 2
        %v2209 = vsel %vm2180, %v2206, %v2208
        %v2210 = vrot.slane %v543, 2
        %v2211 = vsel %vm2180, %v2208, %v2210
        %v2212 = vrot.slane %v556, 2
        %v2213 = vsel %vm2180, %v2210, %v2212
        %v2226 = vunpack.c.l.b16 %v2168
        %v2227 = vunpack.c.h.b16 %v2168
        %v2228 = vunpack.c.l.b16 %v2169
        %v2229 = vunpack.c.h.b16 %v2169
        %v2230 = vunpack.c.l.b16 %v2170
        %v2231 = vunpack.c.h.b16 %v2170
        %v2232 = vunpack.c.l.b16 %v2171
        %v2233 = vunpack.c.h.b16 %v2171
        %v2234 = vunpack.c.l.b16 %v2172
        %v2235 = vunpack.c.h.b16 %v2172
        %v2236 = vunpack.c.l.b16 %v2173
        %v2237 = vunpack.c.h.b16 %v2173
        %v2238 = vunpack.c.l.b16 %v2174
        %v2239 = vunpack.c.h.b16 %v2174
        %v2240 = vunpack.c.l.b16 %v2175
        %v2241 = vunpack.c.h.b16 %v2175
        %v2242 = vunpack.c.l.b16 %v2176
        %v2243 = vunpack.c.h.b16 %v2176
        %v2244 = vunpack.c.l.b16 %v2177
        %v2245 = vunpack.c.h.b16 %v2177
        %v2246 = vunpack.c.l.b16 %v2178
        %v2247 = vunpack.c.h.b16 %v2178
        %v2248 = vunpack.c.l.b16 %v2179
        %v2249 = vunpack.c.h.b16 %v2179
        %v2250 = vpack.c.b16 %v2228, %v2226
        %v2251 = vpack.c.b16 %v2229, %v2227
        %v2252 = vpack.c.b16 %v2232, %v2230
        %v2253 = vpack.c.b16 %v2233, %v2231
        %v2254 = vpack.c.b16 %v2236, %v2234
        %v2255 = vpack.c.b16 %v2237, %v2235
        %v2256 = vpack.c.b16 %v2240, %v2238
        %v2257 = vpack.c.b16 %v2241, %v2239
        %v2258 = vpack.c.b16 %v2244, %v2242
        %v2259 = vpack.c.b16 %v2245, %v2243
        %v2260 = vpack.c.b16 %v2248, %v2246
        %v2261 = vpack.c.b16 %v2249, %v2247
        %v2275 = vsel %vm763, %v2183, 0
        %v2278 = vsel %vm763, %v2185, 0
        %v2281 = vsel %vm763, %v2187, 0
        %v2284 = vsel %vm763, %v2189, 0
        %v2287 = vsel %vm763, %v2191, 0
        %v2290 = vsel %vm763, %v2193, 0
        %v2293 = vsel %vm763, %v2195, 0
        %v2296 = vsel %vm763, %v2197, 0
        %v2299 = vsel %vm763, %v2199, 0
        %v2302 = vsel %vm763, %v2201, 0
        %v2305 = vsel %vm763, %v2203, 0
        %v2308 = vsel %vm763, %v2205, 0
        %v2311 = vsel %vm763, %v2207, 0
        %v2314 = vsel %vm763, %v2209, 0
        %v2317 = vsel %vm763, %v2211, 0
        %v2320 = vsel %vm763, %v2213, 0
        %2322 = vmatprep.subr.bf16.mxu0 %v2251
        %2323 = vmatpush1.bf16.msra.mxu0 %v2250
        %2324 = vmatprep.subr.bf16.mxu0 %v2253
        %2325 = vmatpush1.bf16.msra.mxu0 %v2252
        %2326 = vmatprep.subr.bf16.mxu0 %v2255
        %2327 = vmatpush1.bf16.msra.mxu0 %v2254
        %2328 = vmatprep.subr.bf16.mxu0 %v2257
        %2329 = vmatpush1.bf16.msra.mxu0 %v2256
        %2330 = vmatprep.subr.bf16.mxu0 %v2259
        %2331 = vmatpush1.bf16.msra.mxu0 %v2258
        %2332 = vmatprep.subr.bf16.mxu0 %v2261
        %2333 = vmatpush1.bf16.msra.mxu0 %v2260
        %2334 = vmatprep.subr.bf16.mxu0 0
        %2335 = vmatpush1.bf16.msra.mxu0 0
        %2336 = vmatprep.subr.bf16.mxu0 0
        %2337 = vmatpush1.bf16.msra.mxu0 0
        %2338 = vmatprep.subr.bf16.mxu0 0
        %2339 = vmatpush1.bf16.msra.mxu0 0
        %2340 = vmatprep.subr.bf16.mxu0 0
        %2341 = vmatpush1.bf16.msra.mxu0 0
        %2342 = vmatprep.subr.bf16.mxu0 0
        %2343 = vmatpush1.bf16.msra.mxu0 0
        %2344 = vmatprep.subr.bf16.mxu0 0
        %2345 = vmatpush1.bf16.msra.mxu0 0
        %2346 = vmatprep.subr.bf16.mxu0 0
        %2347 = vmatpush1.bf16.msra.mxu0 0
        %2348 = vmatprep.subr.bf16.mxu0 0
        %2349 = vmatpush1.bf16.msra.mxu0 0
        %2350 = vmatprep.subr.bf16.mxu0 0
        %2351 = vmatpush1.bf16.msra.mxu0 0
        %2352 = vmatprep.subr.bf16.mxu0 0
        %2353 = vmatpush1.bf16.msra.mxu0 0
        %2354 = vmatprep.mubr.bf16.mxu0 0
        %2355 = vmatmul.mubr.bf16.gmra.mrb[0].mxu0 %v2275
        %v2356 = vpop.f32.mrb[0].mxu0
        %v2357 = vadd.f32 0.0, %v2356
        %v2358 = vpop.f32.mrb[0].mxu0
        %v2359 = vadd.f32 0.0, %v2358
        %v2360 = vpop.f32.mrb[0].mxu0
        %v2361 = vadd.f32 0.0, %v2360
        %v2362 = vpop.f32.mrb[0].mxu0
        %v2363 = vadd.f32 0.0, %v2362
        %2364 = vmatprep.mubr.bf16.mxu0 0
        %2365 = vmatmul.mubr.bf16.gmra.mrb[0].mxu0 %v2278
        %v2366 = vpop.f32.mrb[0].mxu0
        %v2367 = vadd.f32 0.0, %v2366
        %v2368 = vpop.f32.mrb[0].mxu0
        %v2369 = vadd.f32 0.0, %v2368
        %v2370 = vpop.f32.mrb[0].mxu0
        %v2371 = vadd.f32 0.0, %v2370
        %v2372 = vpop.f32.mrb[0].mxu0
        %v2373 = vadd.f32 0.0, %v2372
        %2374 = vmatprep.mubr.bf16.mxu0 0
        %2375 = vmatmul.mubr.bf16.gmra.mrb[0].mxu0 %v2281
        %v2376 = vpop.f32.mrb[0].mxu0
        %v2377 = vadd.f32 0.0, %v2376
        %v2378 = vpop.f32.mrb[0].mxu0
        %v2379 = vadd.f32 0.0, %v2378
        %v2380 = vpop.f32.mrb[0].mxu0
        %v2381 = vadd.f32 0.0, %v2380
        %v2382 = vpop.f32.mrb[0].mxu0
        %v2383 = vadd.f32 0.0, %v2382
        %2384 = vmatprep.mubr.bf16.mxu0 0
        %2385 = vmatmul.mubr.bf16.gmra.mrb[0].mxu0 %v2284
        %v2386 = vpop.f32.mrb[0].mxu0
        %v2387 = vadd.f32 0.0, %v2386
        %v2388 = vpop.f32.mrb[0].mxu0
        %v2389 = vadd.f32 0.0, %v2388
        %v2390 = vpop.f32.mrb[0].mxu0
        %v2391 = vadd.f32 0.0, %v2390
        %v2392 = vpop.f32.mrb[0].mxu0
        %v2393 = vadd.f32 0.0, %v2392
        %2394 = vmatprep.mubr.bf16.mxu0 0
        %2395 = vmatmul.mubr.bf16.gmra.mrb[0].mxu0 %v2287
        %v2396 = vpop.f32.mrb[0].mxu0
        %v2397 = vadd.f32 0.0, %v2396
        %v2398 = vpop.f32.mrb[0].mxu0
        %v2399 = vadd.f32 0.0, %v2398
        %v2400 = vpop.f32.mrb[0].mxu0
        %v2401 = vadd.f32 0.0, %v2400
        %v2402 = vpop.f32.mrb[0].mxu0
        %v2403 = vadd.f32 0.0, %v2402
        %2404 = vmatprep.mubr.bf16.mxu0 0
        %2405 = vmatmul.mubr.bf16.gmra.mrb[0].mxu0 %v2290
        %v2406 = vpop.f32.mrb[0].mxu0
        %v2407 = vadd.f32 0.0, %v2406
        %v2408 = vpop.f32.mrb[0].mxu0
        %v2409 = vadd.f32 0.0, %v2408
        %v2410 = vpop.f32.mrb[0].mxu0
        %v2411 = vadd.f32 0.0, %v2410
        %v2412 = vpop.f32.mrb[0].mxu0
        %v2413 = vadd.f32 0.0, %v2412
        %2414 = vmatprep.mubr.bf16.mxu0 0
        %2415 = vmatmul.mubr.bf16.gmra.mrb[0].mxu0 %v2293
        %v2416 = vpop.f32.mrb[0].mxu0
        %v2417 = vadd.f32 0.0, %v2416
        %v2418 = vpop.f32.mrb[0].mxu0
        %v2419 = vadd.f32 0.0, %v2418
        %v2420 = vpop.f32.mrb[0].mxu0
        %v2421 = vadd.f32 0.0, %v2420
        %v2422 = vpop.f32.mrb[0].mxu0
        %v2423 = vadd.f32 0.0, %v2422
        %2424 = vmatprep.mubr.bf16.mxu0 0
        %2425 = vmatmul.mubr.bf16.gmra.mrb[0].mxu0 %v2296
        %v2426 = vpop.f32.mrb[0].mxu0
        %v2427 = vadd.f32 0.0, %v2426
        %v2428 = vpop.f32.mrb[0].mxu0
        %v2429 = vadd.f32 0.0, %v2428
        %v2430 = vpop.f32.mrb[0].mxu0
        %v2431 = vadd.f32 0.0, %v2430
        %v2432 = vpop.f32.mrb[0].mxu0
        %v2433 = vadd.f32 0.0, %v2432
        %2434 = vmatprep.mubr.bf16.mxu0 0
        %2435 = vmatmul.mubr.bf16.gmra.mrb[0].mxu0 %v2299
        %v2436 = vpop.f32.mrb[0].mxu0
        %v2437 = vadd.f32 0.0, %v2436
        %v2438 = vpop.f32.mrb[0].mxu0
        %v2439 = vadd.f32 0.0, %v2438
        %v2440 = vpop.f32.mrb[0].mxu0
        %v2441 = vadd.f32 0.0, %v2440
        %v2442 = vpop.f32.mrb[0].mxu0
        %v2443 = vadd.f32 0.0, %v2442
        %2444 = vmatprep.mubr.bf16.mxu0 0
        %2445 = vmatmul.mubr.bf16.gmra.mrb[0].mxu0 %v2302
        %v2446 = vpop.f32.mrb[0].mxu0
        %v2447 = vadd.f32 0.0, %v2446
        %v2448 = vpop.f32.mrb[0].mxu0
        %v2449 = vadd.f32 0.0, %v2448
        %v2450 = vpop.f32.mrb[0].mxu0
        %v2451 = vadd.f32 0.0, %v2450
        %v2452 = vpop.f32.mrb[0].mxu0
        %v2453 = vadd.f32 0.0, %v2452
        %2454 = vmatprep.mubr.bf16.mxu0 0
        %2455 = vmatmul.mubr.bf16.gmra.mrb[0].mxu0 %v2305
        %v2456 = vpop.f32.mrb[0].mxu0
        %v2457 = vadd.f32 0.0, %v2456
        %v2458 = vpop.f32.mrb[0].mxu0
        %v2459 = vadd.f32 0.0, %v2458
        %v2460 = vpop.f32.mrb[0].mxu0
        %v2461 = vadd.f32 0.0, %v2460
        %v2462 = vpop.f32.mrb[0].mxu0
        %v2463 = vadd.f32 0.0, %v2462
        %2464 = vmatprep.mubr.bf16.mxu0 0
        %2465 = vmatmul.mubr.bf16.gmra.mrb[0].mxu0 %v2308
        %v2466 = vpop.f32.mrb[0].mxu0
        %v2467 = vadd.f32 0.0, %v2466
        %v2468 = vpop.f32.mrb[0].mxu0
        %v2469 = vadd.f32 0.0, %v2468
        %v2470 = vpop.f32.mrb[0].mxu0
        %v2471 = vadd.f32 0.0, %v2470
        %v2472 = vpop.f32.mrb[0].mxu0
        %v2473 = vadd.f32 0.0, %v2472
        %2474 = vmatprep.mubr.bf16.mxu0 0
        %2475 = vmatmul.mubr.bf16.gmra.mrb[0].mxu0 %v2311
        %v2476 = vpop.f32.mrb[0].mxu0
        %v2477 = vadd.f32 0.0, %v2476
        %v2478 = vpop.f32.mrb[0].mxu0
        %v2479 = vadd.f32 0.0, %v2478
        %v2480 = vpop.f32.mrb[0].mxu0
        %v2481 = vadd.f32 0.0, %v2480
        %v2482 = vpop.f32.mrb[0].mxu0
        %v2483 = vadd.f32 0.0, %v2482
        %2484 = vmatprep.mubr.bf16.mxu0 0
        %2485 = vmatmul.mubr.bf16.gmra.mrb[0].mxu0 %v2314
        %v2486 = vpop.f32.mrb[0].mxu0
        %v2487 = vadd.f32 0.0, %v2486
        %v2488 = vpop.f32.mrb[0].mxu0
        %v2489 = vadd.f32 0.0, %v2488
        %v2490 = vpop.f32.mrb[0].mxu0
        %v2491 = vadd.f32 0.0, %v2490
        %v2492 = vpop.f32.mrb[0].mxu0
        %v2493 = vadd.f32 0.0, %v2492
        %2494 = vmatprep.mubr.bf16.mxu0 0
        %2495 = vmatmul.mubr.bf16.gmra.mrb[0].mxu0 %v2317
        %v2496 = vpop.f32.mrb[0].mxu0
        %v2497 = vadd.f32 0.0, %v2496
        %v2498 = vpop.f32.mrb[0].mxu0
        %v2499 = vadd.f32 0.0, %v2498
        %v2500 = vpop.f32.mrb[0].mxu0
        %v2501 = vadd.f32 0.0, %v2500
        %v2502 = vpop.f32.mrb[0].mxu0
        %v2503 = vadd.f32 0.0, %v2502
        %2504 = vmatprep.mubr.bf16.mxu0 0
        %2505 = vmatmul.mubr.bf16.gmra.mrb[0].mxu0 %v2320
        %v2506 = vpop.f32.mrb[0].mxu0
        %v2507 = vadd.f32 0.0, %v2506
        %v2508 = vpop.f32.mrb[0].mxu0
        %v2509 = vadd.f32 0.0, %v2508
        %v2510 = vpop.f32.mrb[0].mxu0
        %v2511 = vadd.f32 0.0, %v2510
        %v2512 = vpop.f32.mrb[0].mxu0
        %v2513 = vadd.f32 0.0, %v2512
        %2514 = vdwg.mxu0
        %v2515 = vadd.f32 %v2103, %v2357
        %v2516 = vadd.f32 %v2104, %v2359
        %v2517 = vadd.f32 %v2105, %v2361
        %v2518 = vadd.f32 %v2106, %v2363
        %v2519 = vadd.f32 %v2107, %v2367
        %v2520 = vadd.f32 %v2108, %v2369
        %v2521 = vadd.f32 %v2109, %v2371
        %v2522 = vadd.f32 %v2110, %v2373
        %v2523 = vadd.f32 %v2111, %v2377
        %v2524 = vadd.f32 %v2112, %v2379
        %v2525 = vadd.f32 %v2113, %v2381
        %v2526 = vadd.f32 %v2114, %v2383
        %v2527 = vadd.f32 %v2115, %v2387
        %v2528 = vadd.f32 %v2116, %v2389
        %v2529 = vadd.f32 %v2117, %v2391
        %v2530 = vadd.f32 %v2118, %v2393
        %v2531 = vadd.f32 %v2119, %v2397
        %v2532 = vadd.f32 %v2120, %v2399
        %v2533 = vadd.f32 %v2121, %v2401
        %v2534 = vadd.f32 %v2122, %v2403
        %v2535 = vadd.f32 %v2123, %v2407
        %v2536 = vadd.f32 %v2124, %v2409
        %v2537 = vadd.f32 %v2125, %v2411
        %v2538 = vadd.f32 %v2126, %v2413
        %v2539 = vadd.f32 %v2127, %v2417
        %v2540 = vadd.f32 %v2128, %v2419
        %v2541 = vadd.f32 %v2129, %v2421
        %v2542 = vadd.f32 %v2130, %v2423
        %v2543 = vadd.f32 %v2131, %v2427
        %v2544 = vadd.f32 %v2132, %v2429
        %v2545 = vadd.f32 %v2133, %v2431
        %v2546 = vadd.f32 %v2134, %v2433
        %v2547 = vadd.f32 %v2135, %v2437
        %v2548 = vadd.f32 %v2136, %v2439
        %v2549 = vadd.f32 %v2137, %v2441
        %v2550 = vadd.f32 %v2138, %v2443
        %v2551 = vadd.f32 %v2139, %v2447
        %v2552 = vadd.f32 %v2140, %v2449
        %v2553 = vadd.f32 %v2141, %v2451
        %v2554 = vadd.f32 %v2142, %v2453
        %v2555 = vadd.f32 %v2143, %v2457
        %v2556 = vadd.f32 %v2144, %v2459
        %v2557 = vadd.f32 %v2145, %v2461
        %v2558 = vadd.f32 %v2146, %v2463
        %v2559 = vadd.f32 %v2147, %v2467
        %v2560 = vadd.f32 %v2148, %v2469
        %v2561 = vadd.f32 %v2149, %v2471
        %v2562 = vadd.f32 %v2150, %v2473
        %v2563 = vadd.f32 %v2151, %v2477
        %v2564 = vadd.f32 %v2152, %v2479
        %v2565 = vadd.f32 %v2153, %v2481
        %v2566 = vadd.f32 %v2154, %v2483
        %v2567 = vadd.f32 %v2155, %v2487
        %v2568 = vadd.f32 %v2156, %v2489
        %v2569 = vadd.f32 %v2157, %v2491
        %v2570 = vadd.f32 %v2158, %v2493
        %v2571 = vadd.f32 %v2159, %v2497
        %v2572 = vadd.f32 %v2160, %v2499
        %v2573 = vadd.f32 %v2161, %v2501
        %v2574 = vadd.f32 %v2162, %v2503
        %v2575 = vadd.f32 %v2163, %v2507
        %v2576 = vadd.f32 %v2164, %v2509
        %v2577 = vadd.f32 %v2165, %v2511
        %v2578 = vadd.f32 %v2166, %v2513
        %v2579 = vld [vmem:[%s2] sm:$0x3]
        %v2581 = vlaneseq
        %v2582 = vshrl.u32 %v2581, 7
        %v2583 = vsub.s32 0, %v2582
        %v2584 = vrot.slane %v2579, %v2583
        %v2585 = vlaneseq
        %v2586 = vshrl.u32 %v2585, 7
        %v2587 = vsub.s32 1, %v2586
        %v2588 = vrot.slane %v2579, %v2587
        %v2591 = vadd.f32 %v2515, %v2584
        %v2592 = vadd.f32 %v2516, %v2588
        %v2593 = vadd.f32 %v2517, %v2584
        %v2594 = vadd.f32 %v2518, %v2588
        %v2595 = vadd.f32 %v2519, %v2584
        %v2596 = vadd.f32 %v2520, %v2588
        %v2597 = vadd.f32 %v2521, %v2584
        %v2598 = vadd.f32 %v2522, %v2588
        %v2599 = vadd.f32 %v2523, %v2584
        %v2600 = vadd.f32 %v2524, %v2588
        %v2601 = vadd.f32 %v2525, %v2584
        %v2602 = vadd.f32 %v2526, %v2588
        %v2603 = vadd.f32 %v2527, %v2584
        %v2604 = vadd.f32 %v2528, %v2588
        %v2605 = vadd.f32 %v2529, %v2584
        %v2606 = vadd.f32 %v2530, %v2588
        %v2607 = vadd.f32 %v2531, %v2584
        %v2608 = vadd.f32 %v2532, %v2588
        %v2609 = vadd.f32 %v2533, %v2584
        %v2610 = vadd.f32 %v2534, %v2588
        %v2611 = vadd.f32 %v2535, %v2584
        %v2612 = vadd.f32 %v2536, %v2588
        %v2613 = vadd.f32 %v2537, %v2584
        %v2614 = vadd.f32 %v2538, %v2588
        %v2615 = vadd.f32 %v2539, %v2584
        %v2616 = vadd.f32 %v2540, %v2588
        %v2617 = vadd.f32 %v2541, %v2584
        %v2618 = vadd.f32 %v2542, %v2588
        %v2619 = vadd.f32 %v2543, %v2584
        %v2620 = vadd.f32 %v2544, %v2588
        %v2621 = vadd.f32 %v2545, %v2584
        %v2622 = vadd.f32 %v2546, %v2588
        %v2623 = vadd.f32 %v2547, %v2584
        %v2624 = vadd.f32 %v2548, %v2588
        %v2625 = vadd.f32 %v2549, %v2584
        %v2626 = vadd.f32 %v2550, %v2588
        %v2627 = vadd.f32 %v2551, %v2584
        %v2628 = vadd.f32 %v2552, %v2588
        %v2629 = vadd.f32 %v2553, %v2584
        %v2630 = vadd.f32 %v2554, %v2588
        %v2631 = vadd.f32 %v2555, %v2584
        %v2632 = vadd.f32 %v2556, %v2588
        %v2633 = vadd.f32 %v2557, %v2584
        %v2634 = vadd.f32 %v2558, %v2588
        %v2635 = vadd.f32 %v2559, %v2584
        %v2636 = vadd.f32 %v2560, %v2588
        %v2637 = vadd.f32 %v2561, %v2584
        %v2638 = vadd.f32 %v2562, %v2588
        %v2639 = vadd.f32 %v2563, %v2584
        %v2640 = vadd.f32 %v2564, %v2588
        %v2641 = vadd.f32 %v2565, %v2584
        %v2642 = vadd.f32 %v2566, %v2588
        %v2643 = vadd.f32 %v2567, %v2584
        %v2644 = vadd.f32 %v2568, %v2588
        %v2645 = vadd.f32 %v2569, %v2584
        %v2646 = vadd.f32 %v2570, %v2588
        %v2647 = vadd.f32 %v2571, %v2584
        %v2648 = vadd.f32 %v2572, %v2588
        %v2649 = vadd.f32 %v2573, %v2584
        %v2650 = vadd.f32 %v2574, %v2588
        %v2651 = vadd.f32 %v2575, %v2584
        %v2652 = vadd.f32 %v2576, %v2588
        %v2653 = vadd.f32 %v2577, %v2584
        %v2654 = vadd.f32 %v2578, %v2588
        %v2655 = vmax.f32 %v2591, 0.0
        %v2656 = vmax.f32 %v2592, 0.0
        %v2657 = vmax.f32 %v2593, 0.0
        %v2658 = vmax.f32 %v2594, 0.0
        %v2659 = vmax.f32 %v2595, 0.0
        %v2660 = vmax.f32 %v2596, 0.0
        %v2661 = vmax.f32 %v2597, 0.0
        %v2662 = vmax.f32 %v2598, 0.0
        %v2663 = vmax.f32 %v2599, 0.0
        %v2664 = vmax.f32 %v2600, 0.0
        %v2665 = vmax.f32 %v2601, 0.0
        %v2666 = vmax.f32 %v2602, 0.0
        %v2667 = vmax.f32 %v2603, 0.0
        %v2668 = vmax.f32 %v2604, 0.0
        %v2669 = vmax.f32 %v2605, 0.0
        %v2670 = vmax.f32 %v2606, 0.0
        %v2671 = vmax.f32 %v2607, 0.0
        %v2672 = vmax.f32 %v2608, 0.0
        %v2673 = vmax.f32 %v2609, 0.0
        %v2674 = vmax.f32 %v2610, 0.0
        %v2675 = vmax.f32 %v2611, 0.0
        %v2676 = vmax.f32 %v2612, 0.0
        %v2677 = vmax.f32 %v2613, 0.0
        %v2678 = vmax.f32 %v2614, 0.0
        %v2679 = vmax.f32 %v2615, 0.0
        %v2680 = vmax.f32 %v2616, 0.0
        %v2681 = vmax.f32 %v2617, 0.0
        %v2682 = vmax.f32 %v2618, 0.0
        %v2683 = vmax.f32 %v2619, 0.0
        %v2684 = vmax.f32 %v2620, 0.0
        %v2685 = vmax.f32 %v2621, 0.0
        %v2686 = vmax.f32 %v2622, 0.0
        %v2687 = vmax.f32 %v2623, 0.0
        %v2688 = vmax.f32 %v2624, 0.0
        %v2689 = vmax.f32 %v2625, 0.0
        %v2690 = vmax.f32 %v2626, 0.0
        %v2691 = vmax.f32 %v2627, 0.0
        %v2692 = vmax.f32 %v2628, 0.0
        %v2693 = vmax.f32 %v2629, 0.0
        %v2694 = vmax.f32 %v2630, 0.0
        %v2695 = vmax.f32 %v2631, 0.0
        %v2696 = vmax.f32 %v2632, 0.0
        %v2697 = vmax.f32 %v2633, 0.0
        %v2698 = vmax.f32 %v2634, 0.0
        %v2699 = vmax.f32 %v2635, 0.0
        %v2700 = vmax.f32 %v2636, 0.0
        %v2701 = vmax.f32 %v2637, 0.0
        %v2702 = vmax.f32 %v2638, 0.0
        %v2703 = vmax.f32 %v2639, 0.0
        %v2704 = vmax.f32 %v2640, 0.0
        %v2705 = vmax.f32 %v2641, 0.0
        %v2706 = vmax.f32 %v2642, 0.0
        %v2707 = vmax.f32 %v2643, 0.0
        %v2708 = vmax.f32 %v2644, 0.0
        %v2709 = vmax.f32 %v2645, 0.0
        %v2710 = vmax.f32 %v2646, 0.0
        %v2711 = vmax.f32 %v2647, 0.0
        %v2712 = vmax.f32 %v2648, 0.0
        %v2713 = vmax.f32 %v2649, 0.0
        %v2714 = vmax.f32 %v2650, 0.0
        %v2715 = vmax.f32 %v2651, 0.0
        %v2716 = vmax.f32 %v2652, 0.0
        %v2717 = vmax.f32 %v2653, 0.0
        %v2718 = vmax.f32 %v2654, 0.0
        %v2719 = vpack.c.bf16 %v2657, %v2655
        %v2720 = vpack.c.bf16 %v2658, %v2656
        %v2721 = vpack.c.bf16 %v2661, %v2659
        %v2722 = vpack.c.bf16 %v2662, %v2660
        %v2723 = vpack.c.bf16 %v2665, %v2663
        %v2724 = vpack.c.bf16 %v2666, %v2664
        %v2725 = vpack.c.bf16 %v2669, %v2667
        %v2726 = vpack.c.bf16 %v2670, %v2668
        %v2727 = vpack.c.bf16 %v2673, %v2671
        %v2728 = vpack.c.bf16 %v2674, %v2672
        %v2729 = vpack.c.bf16 %v2677, %v2675
        %v2730 = vpack.c.bf16 %v2678, %v2676
        %v2731 = vpack.c.bf16 %v2681, %v2679
        %v2732 = vpack.c.bf16 %v2682, %v2680
        %v2733 = vpack.c.bf16 %v2685, %v2683
        %v2734 = vpack.c.bf16 %v2686, %v2684
        %v2735 = vpack.c.bf16 %v2689, %v2687
        %v2736 = vpack.c.bf16 %v2690, %v2688
        %v2737 = vpack.c.bf16 %v2693, %v2691
        %v2738 = vpack.c.bf16 %v2694, %v2692
        %v2739 = vpack.c.bf16 %v2697, %v2695
        %v2740 = vpack.c.bf16 %v2698, %v2696
        %v2741 = vpack.c.bf16 %v2701, %v2699
        %v2742 = vpack.c.bf16 %v2702, %v2700
        %v2743 = vpack.c.bf16 %v2705, %v2703
        %v2744 = vpack.c.bf16 %v2706, %v2704
        %v2745 = vpack.c.bf16 %v2709, %v2707
        %v2746 = vpack.c.bf16 %v2710, %v2708
        %v2747 = vpack.c.bf16 %v2713, %v2711
        %v2748 = vpack.c.bf16 %v2714, %v2712
        %v2749 = vpack.c.bf16 %v2717, %v2715
        %v2750 = vpack.c.bf16 %v2718, %v2716
        %v2751 = vld [vmem:[%s3] sm:$0xf]
        %v2752 = vld [vmem:[%s3 + $0x4] sm:$0xf]
        %v2753 = vld [vmem:[%s3 + $0x8] sm:$0xf]
        %v2754 = vld [vmem:[%s3 + $0xc] sm:$0xf]
        %v2755 = vld [vmem:[%s3 + $0x10] sm:$0xf]
        %v2756 = vld [vmem:[%s3 + $0x14] sm:$0xf]
        %v2757 = vld [vmem:[%s3 + $0x18] sm:$0xf]
        %v2758 = vld [vmem:[%s3 + $0x1c] sm:$0xf]
        %v2759 = vld [vmem:[%s3 + $0x20] sm:$0xf]
        %v2760 = vld [vmem:[%s3 + $0x24] sm:$0xf]
        %v2761 = vld [vmem:[%s3 + $0x28] sm:$0xf]
        %v2762 = vld [vmem:[%s3 + $0x2c] sm:$0xf]
        %v2763 = vld [vmem:[%s3 + $0x30] sm:$0xf]
        %v2764 = vld [vmem:[%s3 + $0x34] sm:$0xf]
        %v2765 = vld [vmem:[%s3 + $0x38] sm:$0xf]
        %v2766 = vld [vmem:[%s3 + $0x3c] sm:$0xf]
        %v2767 = vld [vmem:[%s3 + $0x40] sm:$0xf]
        %v2768 = vld [vmem:[%s3 + $0x44] sm:$0xf]
        %v2769 = vld [vmem:[%s3 + $0x48] sm:$0xf]
        %v2770 = vld [vmem:[%s3 + $0x4c] sm:$0xf]
        %v2771 = vld [vmem:[%s3 + $0x50] sm:$0xf]
        %v2793 = vunpack.c.l.b16 %v2751
        %v2794 = vunpack.c.l.b16 %v2752
        %v2795 = vunpack.c.l.b16 %v2753
        %v2796 = vunpack.c.l.b16 %v2754
        %v2797 = vunpack.c.l.b16 %v2755
        %v2798 = vunpack.c.l.b16 %v2756
        %v2799 = vunpack.c.l.b16 %v2757
        %v2800 = vunpack.c.l.b16 %v2758
        %v2801 = vunpack.c.l.b16 %v2759
        %v2802 = vunpack.c.l.b16 %v2760
        %v2803 = vunpack.c.l.b16 %v2761
        %v2804 = vunpack.c.l.b16 %v2762
        %v2805 = vunpack.c.l.b16 %v2763
        %v2806 = vunpack.c.l.b16 %v2764
        %v2807 = vunpack.c.l.b16 %v2765
        %v2808 = vunpack.c.l.b16 %v2766
        %v2809 = vunpack.c.l.b16 %v2767
        %v2810 = vunpack.c.l.b16 %v2768
        %v2811 = vunpack.c.l.b16 %v2769
        %v2812 = vunpack.c.l.b16 %v2770
        %v2813 = vunpack.c.l.b16 %v2771
        %v2814 = vpack.c.b16 %v2794, %v2793
        %v2815 = vpack.c.b16 %v2796, %v2795
        %v2816 = vpack.c.b16 %v2798, %v2797
        %v2817 = vpack.c.b16 %v2800, %v2799
        %v2818 = vpack.c.b16 %v2802, %v2801
        %v2819 = vpack.c.b16 %v2804, %v2803
        %v2820 = vpack.c.b16 %v2806, %v2805
        %v2821 = vpack.c.b16 %v2808, %v2807
        %v2822 = vpack.c.b16 %v2810, %v2809
        %v2823 = vpack.c.b16 %v2812, %v2811
        %v2824 = vpack.c.b16 %v2813, %v2813
        %vm2835 = vcmask 326656
        %v2837 = vsel %vm2835, %v2720, 0
        %v2840 = vsel %vm2835, %v2722, 0
        %v2843 = vsel %vm2835, %v2724, 0
        %v2846 = vsel %vm2835, %v2726, 0
        %v2849 = vsel %vm2835, %v2728, 0
        %v2852 = vsel %vm2835, %v2730, 0
        %v2855 = vsel %vm2835, %v2732, 0
        %v2858 = vsel %vm2835, %v2734, 0
        %v2861 = vsel %vm2835, %v2736, 0
        %v2864 = vsel %vm2835, %v2738, 0
        %v2867 = vsel %vm2835, %v2740, 0
        %v2870 = vsel %vm2835, %v2742, 0
        %v2873 = vsel %vm2835, %v2744, 0
        %v2876 = vsel %vm2835, %v2746, 0
        %v2879 = vsel %vm2835, %v2748, 0
        %v2882 = vsel %vm2835, %v2750, 0
        %vm2884 = vcmask 1043456
        %v2886 = vsel %vm2884, %v2824, 0
        %2888 = vmatprep.subr.bf16.mxu0 0
        %2889 = vmatpush1.bf16.msra.mxu0 %v2814
        %2890 = vmatprep.subr.bf16.mxu0 0
        %2891 = vmatpush1.bf16.msra.mxu0 %v2815
        %2892 = vmatprep.subr.bf16.mxu0 0
        %2893 = vmatpush1.bf16.msra.mxu0 %v2816
        %2894 = vmatprep.subr.bf16.mxu0 0
        %2895 = vmatpush1.bf16.msra.mxu0 %v2817
        %2896 = vmatprep.subr.bf16.mxu0 0
        %2897 = vmatpush1.bf16.msra.mxu0 %v2818
        %2898 = vmatprep.subr.bf16.mxu0 0
        %2899 = vmatpush1.bf16.msra.mxu0 %v2819
        %2900 = vmatprep.subr.bf16.mxu0 0
        %2901 = vmatpush1.bf16.msra.mxu0 %v2820
        %2902 = vmatprep.subr.bf16.mxu0 0
        %2903 = vmatpush1.bf16.msra.mxu0 %v2821
        %2904 = vmatprep.subr.bf16.mxu0 0
        %2905 = vmatpush1.bf16.msra.mxu0 %v2822
        %2906 = vmatprep.subr.bf16.mxu0 0
        %2907 = vmatpush1.bf16.msra.mxu0 %v2823
        %2908 = vmatprep.subr.bf16.mxu0 0
        %2909 = vmatpush1.bf16.msra.mxu0 %v2886
        %2910 = vmatprep.subr.bf16.mxu0 0
        %2911 = vmatpush1.bf16.msra.mxu0 0
        %2912 = vmatprep.subr.bf16.mxu0 0
        %2913 = vmatpush1.bf16.msra.mxu0 0
        %2914 = vmatprep.subr.bf16.mxu0 0
        %2915 = vmatpush1.bf16.msra.mxu0 0
        %2916 = vmatprep.subr.bf16.mxu0 0
        %2917 = vmatpush1.bf16.msra.mxu0 0
        %2918 = vmatprep.subr.bf16.mxu0 0
        %2919 = vmatpush1.bf16.msra.mxu0 0
        %2920 = vmatprep.mubr.bf16.mxu0 %v2837
        %2921 = vmatmul.mubr.bf16.gmra.mrb[0].mxu0 %v2719
        %v2922 = vpop.f32.mrb[0].mxu0
        %v2923 = vadd.f32 0.0, %v2922
        %v2924 = vpop.f32.mrb[0].mxu0
        %v2925 = vpop.f32.mrb[0].mxu0
        %v2926 = vadd.f32 0.0, %v2925
        %v2927 = vpop.f32.mrb[0].mxu0
        %2928 = vmatprep.mubr.bf16.mxu0 %v2840
        %2929 = vmatmul.mubr.bf16.gmra.mrb[0].mxu0 %v2721
        %v2930 = vpop.f32.mrb[0].mxu0
        %v2931 = vadd.f32 0.0, %v2930
        %v2932 = vpop.f32.mrb[0].mxu0
        %v2933 = vpop.f32.mrb[0].mxu0
        %v2934 = vadd.f32 0.0, %v2933
        %v2935 = vpop.f32.mrb[0].mxu0
        %2936 = vmatprep.mubr.bf16.mxu0 %v2843
        %2937 = vmatmul.mubr.bf16.gmra.mrb[0].mxu0 %v2723
        %v2938 = vpop.f32.mrb[0].mxu0
        %v2939 = vadd.f32 0.0, %v2938
        %v2940 = vpop.f32.mrb[0].mxu0
        %v2941 = vpop.f32.mrb[0].mxu0
        %v2942 = vadd.f32 0.0, %v2941
        %v2943 = vpop.f32.mrb[0].mxu0
        %2944 = vmatprep.mubr.bf16.mxu0 %v2846
        %2945 = vmatmul.mubr.bf16.gmra.mrb[0].mxu0 %v2725
        %v2946 = vpop.f32.mrb[0].mxu0
        %v2947 = vadd.f32 0.0, %v2946
        %v2948 = vpop.f32.mrb[0].mxu0
        %v2949 = vpop.f32.mrb[0].mxu0
        %v2950 = vadd.f32 0.0, %v2949
        %v2951 = vpop.f32.mrb[0].mxu0
        %2952 = vmatprep.mubr.bf16.mxu0 %v2849
        %2953 = vmatmul.mubr.bf16.gmra.mrb[0].mxu0 %v2727
        %v2954 = vpop.f32.mrb[0].mxu0
        %v2955 = vadd.f32 0.0, %v2954
        %v2956 = vpop.f32.mrb[0].mxu0
        %v2957 = vpop.f32.mrb[0].mxu0
        %v2958 = vadd.f32 0.0, %v2957
        %v2959 = vpop.f32.mrb[0].mxu0
        %2960 = vmatprep.mubr.bf16.mxu0 %v2852
        %2961 = vmatmul.mubr.bf16.gmra.mrb[0].mxu0 %v2729
        %v2962 = vpop.f32.mrb[0].mxu0
        %v2963 = vadd.f32 0.0, %v2962
        %v2964 = vpop.f32.mrb[0].mxu0
        %v2965 = vpop.f32.mrb[0].mxu0
        %v2966 = vadd.f32 0.0, %v2965
        %v2967 = vpop.f32.mrb[0].mxu0
        %2968 = vmatprep.mubr.bf16.mxu0 %v2855
        %2969 = vmatmul.mubr.bf16.gmra.mrb[0].mxu0 %v2731
        %v2970 = vpop.f32.mrb[0].mxu0
        %v2971 = vadd.f32 0.0, %v2970
        %v2972 = vpop.f32.mrb[0].mxu0
        %v2973 = vpop.f32.mrb[0].mxu0
        %v2974 = vadd.f32 0.0, %v2973
        %v2975 = vpop.f32.mrb[0].mxu0
        %2976 = vmatprep.mubr.bf16.mxu0 %v2858
        %2977 = vmatmul.mubr.bf16.gmra.mrb[0].mxu0 %v2733
        %v2978 = vpop.f32.mrb[0].mxu0
        %v2979 = vadd.f32 0.0, %v2978
        %v2980 = vpop.f32.mrb[0].mxu0
        %v2981 = vpop.f32.mrb[0].mxu0
        %v2982 = vadd.f32 0.0, %v2981
        %v2983 = vpop.f32.mrb[0].mxu0
        %2984 = vmatprep.mubr.bf16.mxu0 %v2861
        %2985 = vmatmul.mubr.bf16.gmra.mrb[0].mxu0 %v2735
        %v2986 = vpop.f32.mrb[0].mxu0
        %v2987 = vadd.f32 0.0, %v2986
        %v2988 = vpop.f32.mrb[0].mxu0
        %v2989 = vpop.f32.mrb[0].mxu0
        %v2990 = vadd.f32 0.0, %v2989
        %v2991 = vpop.f32.mrb[0].mxu0
        %2992 = vmatprep.mubr.bf16.mxu0 %v2864
        %2993 = vmatmul.mubr.bf16.gmra.mrb[0].mxu0 %v2737
        %v2994 = vpop.f32.mrb[0].mxu0
        %v2995 = vadd.f32 0.0, %v2994
        %v2996 = vpop.f32.mrb[0].mxu0
        %v2997 = vpop.f32.mrb[0].mxu0
        %v2998 = vadd.f32 0.0, %v2997
        %v2999 = vpop.f32.mrb[0].mxu0
        %3000 = vmatprep.mubr.bf16.mxu0 %v2867
        %3001 = vmatmul.mubr.bf16.gmra.mrb[0].mxu0 %v2739
        %v3002 = vpop.f32.mrb[0].mxu0
        %v3003 = vadd.f32 0.0, %v3002
        %v3004 = vpop.f32.mrb[0].mxu0
        %v3005 = vpop.f32.mrb[0].mxu0
        %v3006 = vadd.f32 0.0, %v3005
        %v3007 = vpop.f32.mrb[0].mxu0
        %3008 = vmatprep.mubr.bf16.mxu0 %v2870
        %3009 = vmatmul.mubr.bf16.gmra.mrb[0].mxu0 %v2741
        %v3010 = vpop.f32.mrb[0].mxu0
        %v3011 = vadd.f32 0.0, %v3010
        %v3012 = vpop.f32.mrb[0].mxu0
        %v3013 = vpop.f32.mrb[0].mxu0
        %v3014 = vadd.f32 0.0, %v3013
        %v3015 = vpop.f32.mrb[0].mxu0
        %3016 = vmatprep.mubr.bf16.mxu0 %v2873
        %3017 = vmatmul.mubr.bf16.gmra.mrb[0].mxu0 %v2743
        %v3018 = vpop.f32.mrb[0].mxu0
        %v3019 = vadd.f32 0.0, %v3018
        %v3020 = vpop.f32.mrb[0].mxu0
        %v3021 = vpop.f32.mrb[0].mxu0
        %v3022 = vadd.f32 0.0, %v3021
        %v3023 = vpop.f32.mrb[0].mxu0
        %3024 = vmatprep.mubr.bf16.mxu0 %v2876
        %3025 = vmatmul.mubr.bf16.gmra.mrb[0].mxu0 %v2745
        %v3026 = vpop.f32.mrb[0].mxu0
        %v3027 = vadd.f32 0.0, %v3026
        %v3028 = vpop.f32.mrb[0].mxu0
        %v3029 = vpop.f32.mrb[0].mxu0
        %v3030 = vadd.f32 0.0, %v3029
        %v3031 = vpop.f32.mrb[0].mxu0
        %3032 = vmatprep.mubr.bf16.mxu0 %v2879
        %3033 = vmatmul.mubr.bf16.gmra.mrb[0].mxu0 %v2747
        %v3034 = vpop.f32.mrb[0].mxu0
        %v3035 = vadd.f32 0.0, %v3034
        %v3036 = vpop.f32.mrb[0].mxu0
        %v3037 = vpop.f32.mrb[0].mxu0
        %v3038 = vadd.f32 0.0, %v3037
        %v3039 = vpop.f32.mrb[0].mxu0
        %3040 = vmatprep.mubr.bf16.mxu0 %v2882
        %3041 = vmatmul.mubr.bf16.gmra.mrb[0].mxu0 %v2749
        %v3042 = vpop.f32.mrb[0].mxu0
        %v3043 = vadd.f32 0.0, %v3042
        %v3044 = vpop.f32.mrb[0].mxu0
        %v3045 = vpop.f32.mrb[0].mxu0
        %v3046 = vadd.f32 0.0, %v3045
        %v3047 = vpop.f32.mrb[0].mxu0
        %3048 = vdwg.mxu0
        %v3049 = vld [vmem:[%s4] sm:$0xf]
        %v3050 = vld [vmem:[%s4 + $0x4] sm:$0xf]
        %v3051 = vld [vmem:[%s4 + $0x8] sm:$0xf]
        %v3052 = vld [vmem:[%s4 + $0xc] sm:$0xf]
        %v3053 = vld [vmem:[%s4 + $0x10] sm:$0xf]
        %v3054 = vld [vmem:[%s4 + $0x14] sm:$0xf]
        %v3055 = vld [vmem:[%s4 + $0x18] sm:$0xf]
        %v3056 = vld [vmem:[%s4 + $0x1c] sm:$0xf]
        %v3057 = vld [vmem:[%s4 + $0x20] sm:$0xf]
        %v3058 = vld [vmem:[%s4 + $0x24] sm:$0xf]
        %v3059 = vld [vmem:[%s4 + $0x28] sm:$0xf]
        %v3060 = vld [vmem:[%s4 + $0x2c] sm:$0xf]
        %v3061 = vld [vmem:[%s4 + $0x30] sm:$0xf]
        %v3062 = vld [vmem:[%s4 + $0x34] sm:$0xf]
        %v3063 = vld [vmem:[%s4 + $0x38] sm:$0xf]
        %v3064 = vld [vmem:[%s4 + $0x3c] sm:$0xf]
        %v3065 = vld [vmem:[%s4 + $0x40] sm:$0xf]
        %v3066 = vld [vmem:[%s4 + $0x44] sm:$0xf]
        %v3067 = vld [vmem:[%s4 + $0x48] sm:$0xf]
        %v3068 = vld [vmem:[%s4 + $0x4c] sm:$0xf]
        %v3069 = vld [vmem:[%s4 + $0x50] sm:$0xf]
        %v3091 = vunpack.c.l.b16 %v3049
        %v3092 = vunpack.c.l.b16 %v3050
        %v3093 = vunpack.c.l.b16 %v3051
        %v3094 = vunpack.c.l.b16 %v3052
        %v3095 = vunpack.c.l.b16 %v3053
        %v3096 = vunpack.c.l.b16 %v3054
        %v3097 = vunpack.c.l.b16 %v3055
        %v3098 = vunpack.c.l.b16 %v3056
        %v3099 = vunpack.c.l.b16 %v3057
        %v3100 = vunpack.c.l.b16 %v3058
        %v3101 = vunpack.c.l.b16 %v3059
        %v3102 = vunpack.c.l.b16 %v3060
        %v3103 = vunpack.c.l.b16 %v3061
        %v3104 = vunpack.c.l.b16 %v3062
        %v3105 = vunpack.c.l.b16 %v3063
        %v3106 = vunpack.c.l.b16 %v3064
        %v3107 = vunpack.c.l.b16 %v3065
        %v3108 = vunpack.c.l.b16 %v3066
        %v3109 = vunpack.c.l.b16 %v3067
        %v3110 = vunpack.c.l.b16 %v3068
        %v3111 = vunpack.c.l.b16 %v3069
        %v3112 = vpack.c.b16 %v3092, %v3091
        %v3113 = vpack.c.b16 %v3094, %v3093
        %v3114 = vpack.c.b16 %v3096, %v3095
        %v3115 = vpack.c.b16 %v3098, %v3097
        %v3116 = vpack.c.b16 %v3100, %v3099
        %v3117 = vpack.c.b16 %v3102, %v3101
        %v3118 = vpack.c.b16 %v3104, %v3103
        %v3119 = vpack.c.b16 %v3106, %v3105
        %v3120 = vpack.c.b16 %v3108, %v3107
        %v3121 = vpack.c.b16 %v3110, %v3109
        %v3122 = vpack.c.b16 %v3111, %v3111
        %v3134 = vsel %vm2884, %v3122, 0
        %3136 = vmatprep.subr.bf16.mxu0 0
        %3137 = vmatpush1.bf16.msra.mxu0 %v3112
        %3138 = vmatprep.subr.bf16.mxu0 0
        %3139 = vmatpush1.bf16.msra.mxu0 %v3113
        %3140 = vmatprep.subr.bf16.mxu0 0
        %3141 = vmatpush1.bf16.msra.mxu0 %v3114
        %3142 = vmatprep.subr.bf16.mxu0 0
        %3143 = vmatpush1.bf16.msra.mxu0 %v3115
        %3144 = vmatprep.subr.bf16.mxu0 0
        %3145 = vmatpush1.bf16.msra.mxu0 %v3116
        %3146 = vmatprep.subr.bf16.mxu0 0
        %3147 = vmatpush1.bf16.msra.mxu0 %v3117
        %3148 = vmatprep.subr.bf16.mxu0 0
        %3149 = vmatpush1.bf16.msra.mxu0 %v3118
        %3150 = vmatprep.subr.bf16.mxu0 0
        %3151 = vmatpush1.bf16.msra.mxu0 %v3119
        %3152 = vmatprep.subr.bf16.mxu0 0
        %3153 = vmatpush1.bf16.msra.mxu0 %v3120
        %3154 = vmatprep.subr.bf16.mxu0 0
        %3155 = vmatpush1.bf16.msra.mxu0 %v3121
        %3156 = vmatprep.subr.bf16.mxu0 0
        %3157 = vmatpush1.bf16.msra.mxu0 %v3134
        %3158 = vmatprep.subr.bf16.mxu0 0
        %3159 = vmatpush1.bf16.msra.mxu0 0
        %3160 = vmatprep.subr.bf16.mxu0 0
        %3161 = vmatpush1.bf16.msra.mxu0 0
        %3162 = vmatprep.subr.bf16.mxu0 0
        %3163 = vmatpush1.bf16.msra.mxu0 0
        %3164 = vmatprep.subr.bf16.mxu0 0
        %3165 = vmatpush1.bf16.msra.mxu0 0
        %3166 = vmatprep.subr.bf16.mxu0 0
        %3167 = vmatpush1.bf16.msra.mxu0 0
        %3168 = vmatprep.mubr.bf16.mxu0 %v2837
        %3169 = vmatmul.mubr.bf16.gmra.mrb[0].mxu0 %v2719
        %v3170 = vpop.f32.mrb[0].mxu0
        %v3171 = vadd.f32 0.0, %v3170
        %v3172 = vpop.f32.mrb[0].mxu0
        %v3173 = vpop.f32.mrb[0].mxu0
        %v3174 = vadd.f32 0.0, %v3173
        %v3175 = vpop.f32.mrb[0].mxu0
        %3176 = vmatprep.mubr.bf16.mxu0 %v2840
        %3177 = vmatmul.mubr.bf16.gmra.mrb[0].mxu0 %v2721
        %v3178 = vpop.f32.mrb[0].mxu0
        %v3179 = vadd.f32 0.0, %v3178
        %v3180 = vpop.f32.mrb[0].mxu0
        %v3181 = vpop.f32.mrb[0].mxu0
        %v3182 = vadd.f32 0.0, %v3181
        %v3183 = vpop.f32.mrb[0].mxu0
        %3184 = vmatprep.mubr.bf16.mxu0 %v2843
        %3185 = vmatmul.mubr.bf16.gmra.mrb[0].mxu0 %v2723
        %v3186 = vpop.f32.mrb[0].mxu0
        %v3187 = vadd.f32 0.0, %v3186
        %v3188 = vpop.f32.mrb[0].mxu0
        %v3189 = vpop.f32.mrb[0].mxu0
        %v3190 = vadd.f32 0.0, %v3189
        %v3191 = vpop.f32.mrb[0].mxu0
        %3192 = vmatprep.mubr.bf16.mxu0 %v2846
        %3193 = vmatmul.mubr.bf16.gmra.mrb[0].mxu0 %v2725
        %v3194 = vpop.f32.mrb[0].mxu0
        %v3195 = vadd.f32 0.0, %v3194
        %v3196 = vpop.f32.mrb[0].mxu0
        %v3197 = vpop.f32.mrb[0].mxu0
        %v3198 = vadd.f32 0.0, %v3197
        %v3199 = vpop.f32.mrb[0].mxu0
        %3200 = vmatprep.mubr.bf16.mxu0 %v2849
        %3201 = vmatmul.mubr.bf16.gmra.mrb[0].mxu0 %v2727
        %v3202 = vpop.f32.mrb[0].mxu0
        %v3203 = vadd.f32 0.0, %v3202
        %v3204 = vpop.f32.mrb[0].mxu0
        %v3205 = vpop.f32.mrb[0].mxu0
        %v3206 = vadd.f32 0.0, %v3205
        %v3207 = vpop.f32.mrb[0].mxu0
        %3208 = vmatprep.mubr.bf16.mxu0 %v2852
        %3209 = vmatmul.mubr.bf16.gmra.mrb[0].mxu0 %v2729
        %v3210 = vpop.f32.mrb[0].mxu0
        %v3211 = vadd.f32 0.0, %v3210
        %v3212 = vpop.f32.mrb[0].mxu0
        %v3213 = vpop.f32.mrb[0].mxu0
        %v3214 = vadd.f32 0.0, %v3213
        %v3215 = vpop.f32.mrb[0].mxu0
        %3216 = vmatprep.mubr.bf16.mxu0 %v2855
        %3217 = vmatmul.mubr.bf16.gmra.mrb[0].mxu0 %v2731
        %v3218 = vpop.f32.mrb[0].mxu0
        %v3219 = vadd.f32 0.0, %v3218
        %v3220 = vpop.f32.mrb[0].mxu0
        %v3221 = vpop.f32.mrb[0].mxu0
        %v3222 = vadd.f32 0.0, %v3221
        %v3223 = vpop.f32.mrb[0].mxu0
        %3224 = vmatprep.mubr.bf16.mxu0 %v2858
        %3225 = vmatmul.mubr.bf16.gmra.mrb[0].mxu0 %v2733
        %v3226 = vpop.f32.mrb[0].mxu0
        %v3227 = vadd.f32 0.0, %v3226
        %v3228 = vpop.f32.mrb[0].mxu0
        %v3229 = vpop.f32.mrb[0].mxu0
        %v3230 = vadd.f32 0.0, %v3229
        %v3231 = vpop.f32.mrb[0].mxu0
        %3232 = vmatprep.mubr.bf16.mxu0 %v2861
        %3233 = vmatmul.mubr.bf16.gmra.mrb[0].mxu0 %v2735
        %v3234 = vpop.f32.mrb[0].mxu0
        %v3235 = vadd.f32 0.0, %v3234
        %v3236 = vpop.f32.mrb[0].mxu0
        %v3237 = vpop.f32.mrb[0].mxu0
        %v3238 = vadd.f32 0.0, %v3237
        %v3239 = vpop.f32.mrb[0].mxu0
        %3240 = vmatprep.mubr.bf16.mxu0 %v2864
        %3241 = vmatmul.mubr.bf16.gmra.mrb[0].mxu0 %v2737
        %v3242 = vpop.f32.mrb[0].mxu0
        %v3243 = vadd.f32 0.0, %v3242
        %v3244 = vpop.f32.mrb[0].mxu0
        %v3245 = vpop.f32.mrb[0].mxu0
        %v3246 = vadd.f32 0.0, %v3245
        %v3247 = vpop.f32.mrb[0].mxu0
        %3248 = vmatprep.mubr.bf16.mxu0 %v2867
        %3249 = vmatmul.mubr.bf16.gmra.mrb[0].mxu0 %v2739
        %v3250 = vpop.f32.mrb[0].mxu0
        %v3251 = vadd.f32 0.0, %v3250
        %v3252 = vpop.f32.mrb[0].mxu0
        %v3253 = vpop.f32.mrb[0].mxu0
        %v3254 = vadd.f32 0.0, %v3253
        %v3255 = vpop.f32.mrb[0].mxu0
        %3256 = vmatprep.mubr.bf16.mxu0 %v2870
        %3257 = vmatmul.mubr.bf16.gmra.mrb[0].mxu0 %v2741
        %v3258 = vpop.f32.mrb[0].mxu0
        %v3259 = vadd.f32 0.0, %v3258
        %v3260 = vpop.f32.mrb[0].mxu0
        %v3261 = vpop.f32.mrb[0].mxu0
        %v3262 = vadd.f32 0.0, %v3261
        %v3263 = vpop.f32.mrb[0].mxu0
        %3264 = vmatprep.mubr.bf16.mxu0 %v2873
        %3265 = vmatmul.mubr.bf16.gmra.mrb[0].mxu0 %v2743
        %v3266 = vpop.f32.mrb[0].mxu0
        %v3267 = vadd.f32 0.0, %v3266
        %v3268 = vpop.f32.mrb[0].mxu0
        %v3269 = vpop.f32.mrb[0].mxu0
        %v3270 = vadd.f32 0.0, %v3269
        %v3271 = vpop.f32.mrb[0].mxu0
        %3272 = vmatprep.mubr.bf16.mxu0 %v2876
        %3273 = vmatmul.mubr.bf16.gmra.mrb[0].mxu0 %v2745
        %v3274 = vpop.f32.mrb[0].mxu0
        %v3275 = vadd.f32 0.0, %v3274
        %v3276 = vpop.f32.mrb[0].mxu0
        %v3277 = vpop.f32.mrb[0].mxu0
        %v3278 = vadd.f32 0.0, %v3277
        %v3279 = vpop.f32.mrb[0].mxu0
        %3280 = vmatprep.mubr.bf16.mxu0 %v2879
        %3281 = vmatmul.mubr.bf16.gmra.mrb[0].mxu0 %v2747
        %v3282 = vpop.f32.mrb[0].mxu0
        %v3283 = vadd.f32 0.0, %v3282
        %v3284 = vpop.f32.mrb[0].mxu0
        %v3285 = vpop.f32.mrb[0].mxu0
        %v3286 = vadd.f32 0.0, %v3285
        %v3287 = vpop.f32.mrb[0].mxu0
        %3288 = vmatprep.mubr.bf16.mxu0 %v2882
        %3289 = vmatmul.mubr.bf16.gmra.mrb[0].mxu0 %v2749
        %v3290 = vpop.f32.mrb[0].mxu0
        %v3291 = vadd.f32 0.0, %v3290
        %v3292 = vpop.f32.mrb[0].mxu0
        %v3293 = vpop.f32.mrb[0].mxu0
        %v3294 = vadd.f32 0.0, %v3293
        %v3295 = vpop.f32.mrb[0].mxu0
        %3296 = vdwg.mxu0
        %v3297 = vmax.f32 %v2923, %v3171
        %v3298 = vmax.f32 %v2926, %v3174
        %v3299 = vmax.f32 %v2931, %v3179
        %v3300 = vmax.f32 %v2934, %v3182
        %v3301 = vmax.f32 %v2939, %v3187
        %v3302 = vmax.f32 %v2942, %v3190
        %v3303 = vmax.f32 %v2947, %v3195
        %v3304 = vmax.f32 %v2950, %v3198
        %v3305 = vmax.f32 %v2955, %v3203
        %v3306 = vmax.f32 %v2958, %v3206
        %v3307 = vmax.f32 %v2963, %v3211
        %v3308 = vmax.f32 %v2966, %v3214
        %v3309 = vmax.f32 %v2971, %v3219
        %v3310 = vmax.f32 %v2974, %v3222
        %v3311 = vmax.f32 %v2979, %v3227
        %v3312 = vmax.f32 %v2982, %v3230
        %v3313 = vmax.f32 %v2987, %v3235
        %v3314 = vmax.f32 %v2990, %v3238
        %v3315 = vmax.f32 %v2995, %v3243
        %v3316 = vmax.f32 %v2998, %v3246
        %v3317 = vmax.f32 %v3003, %v3251
        %v3318 = vmax.f32 %v3006, %v3254
        %v3319 = vmax.f32 %v3011, %v3259
        %v3320 = vmax.f32 %v3014, %v3262
        %v3321 = vmax.f32 %v3019, %v3267
        %v3322 = vmax.f32 %v3022, %v3270
        %v3323 = vmax.f32 %v3027, %v3275
        %v3324 = vmax.f32 %v3030, %v3278
        %v3325 = vmax.f32 %v3035, %v3283
        %v3326 = vmax.f32 %v3038, %v3286
        %v3327 = vmax.f32 %v3043, %v3291
        %v3328 = vmax.f32 %v3046, %v3294
        %vm3329 = vcmask 687104
        %3330 = vst.msk [vmem:[#allocation2] sm:$0xff] %vm3329, %v3297
        %3331 = vst.msk [vmem:[#allocation2 + $0x8] sm:$0xff] %vm3329, %v3298
        %3332 = vst.msk [vmem:[#allocation2 + $0x10] sm:$0xff] %vm3329, %v3299
        %3333 = vst.msk [vmem:[#allocation2 + $0x18] sm:$0xff] %vm3329, %v3300
        %3334 = vst.msk [vmem:[#allocation2 + $0x20] sm:$0xff] %vm3329, %v3301
        %3335 = vst.msk [vmem:[#allocation2 + $0x28] sm:$0xff] %vm3329, %v3302
        %3336 = vst.msk [vmem:[#allocation2 + $0x30] sm:$0xff] %vm3329, %v3303
        %3337 = vst.msk [vmem:[#allocation2 + $0x38] sm:$0xff] %vm3329, %v3304
        %3338 = vst.msk [vmem:[#allocation2 + $0x40] sm:$0xff] %vm3329, %v3305
        %3339 = vst.msk [vmem:[#allocation2 + $0x48] sm:$0xff] %vm3329, %v3306
        %3340 = vst.msk [vmem:[#allocation2 + $0x50] sm:$0xff] %vm3329, %v3307
        %3341 = vst.msk [vmem:[#allocation2 + $0x58] sm:$0xff] %vm3329, %v3308
        %3342 = vst.msk [vmem:[#allocation2 + $0x60] sm:$0xff] %vm3329, %v3309
        %3343 = vst.msk [vmem:[#allocation2 + $0x68] sm:$0xff] %vm3329, %v3310
        %3344 = vst.msk [vmem:[#allocation2 + $0x70] sm:$0xff] %vm3329, %v3311
        %3345 = vst.msk [vmem:[#allocation2 + $0x78] sm:$0xff] %vm3329, %v3312
        %3346 = vst.msk [vmem:[#allocation2 + $0x80] sm:$0xff] %vm3329, %v3313
        %3347 = vst.msk [vmem:[#allocation2 + $0x88] sm:$0xff] %vm3329, %v3314
        %3348 = vst.msk [vmem:[#allocation2 + $0x90] sm:$0xff] %vm3329, %v3315
        %3349 = vst.msk [vmem:[#allocation2 + $0x98] sm:$0xff] %vm3329, %v3316
        %3350 = vst.msk [vmem:[#allocation2 + $0xa0] sm:$0xff] %vm3329, %v3317
        %3351 = vst.msk [vmem:[#allocation2 + $0xa8] sm:$0xff] %vm3329, %v3318
        %3352 = vst.msk [vmem:[#allocation2 + $0xb0] sm:$0xff] %vm3329, %v3319
        %3353 = vst.msk [vmem:[#allocation2 + $0xb8] sm:$0xff] %vm3329, %v3320
        %3354 = vst.msk [vmem:[#allocation2 + $0xc0] sm:$0xff] %vm3329, %v3321
        %3355 = vst.msk [vmem:[#allocation2 + $0xc8] sm:$0xff] %vm3329, %v3322
        %3356 = vst.msk [vmem:[#allocation2 + $0xd0] sm:$0xff] %vm3329, %v3323
        %3357 = vst.msk [vmem:[#allocation2 + $0xd8] sm:$0xff] %vm3329, %v3324
        %3358 = vst.msk [vmem:[#allocation2 + $0xe0] sm:$0xff] %vm3329, %v3325
        %3359 = vst.msk [vmem:[#allocation2 + $0xe8] sm:$0xff] %vm3329, %v3326
        %3360 = vst.msk [vmem:[#allocation2 + $0xf0] sm:$0xff] %vm3329, %v3327
        %3361 = vst.msk [vmem:[#allocation2 + $0xf8] sm:$0xff] %vm3329, %v3328
        %v3362 = vld [vmem:[#allocation2] ss:$2 sm:$0xff]
        %s3363 = scalar_lea.vmem [#allocation2], 16
        %v3364 = vld [vmem:[%s3363] ss:$2 sm:$0xff]
        %s3365 = scalar_lea.vmem [#allocation2], 32
        %v3366 = vld [vmem:[%s3365] ss:$2 sm:$0xff]
        %s3367 = scalar_lea.vmem [#allocation2], 48
        %v3368 = vld [vmem:[%s3367] ss:$2 sm:$0xff]
        %s3369 = scalar_lea.vmem [#allocation2], 64
        %v3370 = vld [vmem:[%s3369] ss:$2 sm:$0xff]
        %s3371 = scalar_lea.vmem [#allocation2], 80
        %v3372 = vld [vmem:[%s3371] ss:$2 sm:$0xff]
        %s3373 = scalar_lea.vmem [#allocation2], 96
        %v3374 = vld [vmem:[%s3373] ss:$2 sm:$0xff]
        %s3375 = scalar_lea.vmem [#allocation2], 112
        %v3376 = vld [vmem:[%s3375] ss:$2 sm:$0xff]
        %s3377 = scalar_lea.vmem [#allocation2], 128
        %v3378 = vld [vmem:[%s3377] ss:$2 sm:$0xff]
        %s3379 = scalar_lea.vmem [#allocation2], 144
        %v3380 = vld [vmem:[%s3379] ss:$2 sm:$0xff]
        %s3381 = scalar_lea.vmem [#allocation2], 160
        %v3382 = vld [vmem:[%s3381] ss:$2 sm:$0xff]
        %s3383 = scalar_lea.vmem [#allocation2], 176
        %v3384 = vld [vmem:[%s3383] ss:$2 sm:$0xff]
        %s3385 = scalar_lea.vmem [#allocation2], 192
        %v3386 = vld [vmem:[%s3385] ss:$2 sm:$0xff]
        %s3387 = scalar_lea.vmem [#allocation2], 208
        %v3388 = vld [vmem:[%s3387] ss:$2 sm:$0xff]
        %s3389 = scalar_lea.vmem [#allocation2], 224
        %v3390 = vld [vmem:[%s3389] ss:$2 sm:$0xff]
        %s3391 = scalar_lea.vmem [#allocation2], 240
        %v3392 = vld [vmem:[%s3391] ss:$2 sm:$0xff]
        %s3393 = scalar_lea.vmem [#allocation2], 1
        %v3394 = vld [vmem:[%s3393] ss:$2 sm:$0xff]
        %s3395 = scalar_lea.vmem [#allocation2], 17
        %v3396 = vld [vmem:[%s3395] ss:$2 sm:$0xff]
        %s3397 = scalar_lea.vmem [#allocation2], 33
        %v3398 = vld [vmem:[%s3397] ss:$2 sm:$0xff]
        %s3399 = scalar_lea.vmem [#allocation2], 49
        %v3400 = vld [vmem:[%s3399] ss:$2 sm:$0xff]
        %s3401 = scalar_lea.vmem [#allocation2], 65
        %v3402 = vld [vmem:[%s3401] ss:$2 sm:$0xff]
        %s3403 = scalar_lea.vmem [#allocation2], 81
        %v3404 = vld [vmem:[%s3403] ss:$2 sm:$0xff]
        %s3405 = scalar_lea.vmem [#allocation2], 97
        %v3406 = vld [vmem:[%s3405] ss:$2 sm:$0xff]
        %s3407 = scalar_lea.vmem [#allocation2], 113
        %v3408 = vld [vmem:[%s3407] ss:$2 sm:$0xff]
        %s3409 = scalar_lea.vmem [#allocation2], 129
        %v3410 = vld [vmem:[%s3409] ss:$2 sm:$0xff]
        %s3411 = scalar_lea.vmem [#allocation2], 145
        %v3412 = vld [vmem:[%s3411] ss:$2 sm:$0xff]
        %s3413 = scalar_lea.vmem [#allocation2], 161
        %v3414 = vld [vmem:[%s3413] ss:$2 sm:$0xff]
        %s3415 = scalar_lea.vmem [#allocation2], 177
        %v3416 = vld [vmem:[%s3415] ss:$2 sm:$0xff]
        %s3417 = scalar_lea.vmem [#allocation2], 193
        %v3418 = vld [vmem:[%s3417] ss:$2 sm:$0xff]
        %s3419 = scalar_lea.vmem [#allocation2], 209
        %v3420 = vld [vmem:[%s3419] ss:$2 sm:$0xff]
        %s3421 = scalar_lea.vmem [#allocation2], 225
        %v3422 = vld [vmem:[%s3421] ss:$2 sm:$0xff]
        %s3423 = scalar_lea.vmem [#allocation2], 241
        %v3424 = vld [vmem:[%s3423] ss:$2 sm:$0xff]
        %v3425 = vmax.f32 %v3362, %v3394
        %v3426 = vmax.f32 %v3364, %v3396
        %v3427 = vmax.f32 %v3366, %v3398
        %v3428 = vmax.f32 %v3368, %v3400
        %v3429 = vmax.f32 %v3370, %v3402
        %v3430 = vmax.f32 %v3372, %v3404
        %v3431 = vmax.f32 %v3374, %v3406
        %v3432 = vmax.f32 %v3376, %v3408
        %v3433 = vmax.f32 %v3378, %v3410
        %v3434 = vmax.f32 %v3380, %v3412
        %v3435 = vmax.f32 %v3382, %v3414
        %v3436 = vmax.f32 %v3384, %v3416
        %v3437 = vmax.f32 %v3386, %v3418
        %v3438 = vmax.f32 %v3388, %v3420
        %v3439 = vmax.f32 %v3390, %v3422
        %v3440 = vmax.f32 %v3392, %v3424
        %v3441 = vpack.c.bf16 %v3426, %v3425
        %v3442 = vpack.c.bf16 %v3428, %v3427
        %v3443 = vpack.c.bf16 %v3430, %v3429
        %v3444 = vpack.c.bf16 %v3432, %v3431
        %v3445 = vpack.c.bf16 %v3434, %v3433
        %v3446 = vpack.c.bf16 %v3436, %v3435
        %v3447 = vpack.c.bf16 %v3438, %v3437
        %v3448 = vpack.c.bf16 %v3440, %v3439
        %v3449 = vld [vmem:[%s5] sm:$0xff]
        %v3450 = vld [vmem:[%s5 + $0x8] sm:$0xff]
        %v3451 = vld [vmem:[%s5 + $0x10] sm:$0xff]
        %v3452 = vld [vmem:[%s5 + $0x18] sm:$0xff]
        %v3453 = vld [vmem:[%s5 + $0x20] sm:$0xff]
        %v3454 = vld [vmem:[%s5 + $0x28] sm:$0xff]
        %v3455 = vld [vmem:[%s5 + $0x30] sm:$0xff]
        %v3456 = vld [vmem:[%s5 + $0x38] sm:$0xff]
        %v3457 = vld [vmem:[%s5 + $0x40] sm:$0xff]
        %v3458 = vld [vmem:[%s5 + $0x48] sm:$0xff]
        %v3459 = vld [vmem:[%s5 + $0x50] sm:$0x33]
        %v3460 = vpack.c.bf16 %v3425, %v3425
        %s3461 = scalar_lea.vmem %s5, 88
        %v3462 = vld [vmem:[%s3461] sm:$0xff]
        %v3463 = vld [vmem:[%s3461 + $0x8] sm:$0xff]
        %v3464 = vld [vmem:[%s3461 + $0x10] sm:$0xff]
        %v3465 = vld [vmem:[%s3461 + $0x18] sm:$0xff]
        %v3466 = vld [vmem:[%s3461 + $0x20] sm:$0xff]
        %v3467 = vld [vmem:[%s3461 + $0x28] sm:$0xff]
        %v3468 = vld [vmem:[%s3461 + $0x30] sm:$0xff]
        %v3469 = vld [vmem:[%s3461 + $0x38] sm:$0xff]
        %v3470 = vld [vmem:[%s3461 + $0x40] sm:$0xff]
        %v3471 = vld [vmem:[%s3461 + $0x48] sm:$0xff]
        %v3472 = vld [vmem:[%s3461 + $0x50] sm:$0x33]
        %v3474 = vshrl.u32 %v3441, 16
        %v3476 = vshll.u32 %v3441, 16
        %v3478 = vrot.slane %v3476, 1
        %v3479 = vor.u32 %v3474, %v3478
        %v3481 = vshll.u32 %v3442, 16
        %v3483 = vrot.slane %v3481, 1
        %v3484 = vsel %vm570, %v3479, %v3483
        %v3485 = vshrl.u32 %v3442, 16
        %v3487 = vor.u32 %v3485, %v3483
        %v3489 = vshll.u32 %v3443, 16
        %v3491 = vrot.slane %v3489, 1
        %v3492 = vsel %vm570, %v3487, %v3491
        %v3493 = vshrl.u32 %v3443, 16
        %v3495 = vor.u32 %v3493, %v3491
        %v3497 = vshll.u32 %v3444, 16
        %v3499 = vrot.slane %v3497, 1
        %v3500 = vsel %vm570, %v3495, %v3499
        %v3501 = vshrl.u32 %v3444, 16
        %v3503 = vor.u32 %v3501, %v3499
        %v3505 = vshll.u32 %v3445, 16
        %v3507 = vrot.slane %v3505, 1
        %v3508 = vsel %vm570, %v3503, %v3507
        %v3509 = vshrl.u32 %v3445, 16
        %v3511 = vor.u32 %v3509, %v3507
        %v3513 = vshll.u32 %v3446, 16
        %v3515 = vrot.slane %v3513, 1
        %v3516 = vsel %vm570, %v3511, %v3515
        %v3517 = vshrl.u32 %v3446, 16
        %v3519 = vor.u32 %v3517, %v3515
        %v3521 = vshll.u32 %v3447, 16
        %v3523 = vrot.slane %v3521, 1
        %v3524 = vsel %vm570, %v3519, %v3523
        %v3525 = vshrl.u32 %v3447, 16
        %v3527 = vor.u32 %v3525, %v3523
        %v3529 = vshll.u32 %v3448, 16
        %v3531 = vrot.slane %v3529, 1
        %v3532 = vsel %vm570, %v3527, %v3531
        %v3533 = vshrl.u32 %v3448, 16
        %v3535 = vor.u32 %v3533, %v3531
        %v3537 = vshll.u32 %v3460, 16
        %v3539 = vrot.slane %v3537, 1
        %v3540 = vsel %vm570, %v3535, %v3539
        %v3552 = vunpack.c.l.b16 %v3462
        %v3553 = vunpack.c.h.b16 %v3462
        %v3554 = vunpack.c.l.b16 %v3463
        %v3555 = vunpack.c.h.b16 %v3463
        %v3556 = vunpack.c.l.b16 %v3464
        %v3557 = vunpack.c.h.b16 %v3464
        %v3558 = vunpack.c.l.b16 %v3465
        %v3559 = vunpack.c.h.b16 %v3465
        %v3560 = vunpack.c.l.b16 %v3466
        %v3561 = vunpack.c.h.b16 %v3466
        %v3562 = vunpack.c.l.b16 %v3467
        %v3563 = vunpack.c.h.b16 %v3467
        %v3564 = vunpack.c.l.b16 %v3468
        %v3565 = vunpack.c.h.b16 %v3468
        %v3566 = vunpack.c.l.b16 %v3469
        %v3567 = vunpack.c.h.b16 %v3469
        %v3568 = vunpack.c.l.b16 %v3470
        %v3569 = vunpack.c.h.b16 %v3470
        %v3570 = vunpack.c.l.b16 %v3471
        %v3571 = vunpack.c.h.b16 %v3471
        %v3572 = vunpack.c.l.b16 %v3472
        %v3573 = vunpack.c.h.b16 %v3472
        %v3574 = vpack.c.b16 %v3554, %v3552
        %v3575 = vpack.c.b16 %v3555, %v3553
        %v3576 = vpack.c.b16 %v3558, %v3556
        %v3577 = vpack.c.b16 %v3559, %v3557
        %v3578 = vpack.c.b16 %v3562, %v3560
        %v3579 = vpack.c.b16 %v3563, %v3561
        %v3580 = vpack.c.b16 %v3566, %v3564
        %v3581 = vpack.c.b16 %v3567, %v3565
        %v3582 = vpack.c.b16 %v3570, %v3568
        %v3583 = vpack.c.b16 %v3571, %v3569
        %v3584 = vpack.c.b16 %v3572, %v3572
        %v3585 = vpack.c.b16 %v3573, %v3573
        %v3597 = vsel %vm3329, %v3484, 0
        %v3600 = vsel %vm3329, %v3492, 0
        %v3603 = vsel %vm3329, %v3500, 0
        %v3606 = vsel %vm3329, %v3508, 0
        %v3609 = vsel %vm3329, %v3516, 0
        %v3612 = vsel %vm3329, %v3524, 0
        %v3615 = vsel %vm3329, %v3532, 0
        %v3618 = vsel %vm3329, %v3540, 0
        %vm3620 = vcmask 1041408
        %v3622 = vsel %vm3620, %v3584, 0
        %v3625 = vsel %vm3620, %v3585, 0
        %3627 = vmatprep.subr.bf16.mxu0 %v3575
        %3628 = vmatpush1.bf16.msra.mxu0 %v3574
        %3629 = vmatprep.subr.bf16.mxu0 %v3577
        %3630 = vmatpush1.bf16.msra.mxu0 %v3576
        %3631 = vmatprep.subr.bf16.mxu0 %v3579
        %3632 = vmatpush1.bf16.msra.mxu0 %v3578
        %3633 = vmatprep.subr.bf16.mxu0 %v3581
        %3634 = vmatpush1.bf16.msra.mxu0 %v3580
        %3635 = vmatprep.subr.bf16.mxu0 %v3583
        %3636 = vmatpush1.bf16.msra.mxu0 %v3582
        %3637 = vmatprep.subr.bf16.mxu0 %v3625
        %3638 = vmatpush1.bf16.msra.mxu0 %v3622
        %3639 = vmatprep.subr.bf16.mxu0 0
        %3640 = vmatpush1.bf16.msra.mxu0 0
        %3641 = vmatprep.subr.bf16.mxu0 0
        %3642 = vmatpush1.bf16.msra.mxu0 0
        %3643 = vmatprep.subr.bf16.mxu0 0
        %3644 = vmatpush1.bf16.msra.mxu0 0
        %3645 = vmatprep.subr.bf16.mxu0 0
        %3646 = vmatpush1.bf16.msra.mxu0 0
        %3647 = vmatprep.subr.bf16.mxu0 0
        %3648 = vmatpush1.bf16.msra.mxu0 0
        %3649 = vmatprep.subr.bf16.mxu0 0
        %3650 = vmatpush1.bf16.msra.mxu0 0
        %3651 = vmatprep.subr.bf16.mxu0 0
        %3652 = vmatpush1.bf16.msra.mxu0 0
        %3653 = vmatprep.subr.bf16.mxu0 0
        %3654 = vmatpush1.bf16.msra.mxu0 0
        %3655 = vmatprep.subr.bf16.mxu0 0
        %3656 = vmatpush1.bf16.msra.mxu0 0
        %3657 = vmatprep.subr.bf16.mxu0 0
        %3658 = vmatpush1.bf16.msra.mxu0 0
        %3659 = vmatprep.mubr.bf16.mxu0 0
        %3660 = vmatmul.mubr.bf16.gmra.mrb[0].mxu0 %v3597
        %v3661 = vpop.f32.mrb[0].mxu0
        %v3662 = vadd.f32 0.0, %v3661
        %v3663 = vpop.f32.mrb[0].mxu0
        %v3664 = vadd.f32 0.0, %v3663
        %v3665 = vpop.f32.mrb[0].mxu0
        %v3666 = vadd.f32 0.0, %v3665
        %v3667 = vpop.f32.mrb[0].mxu0
        %v3668 = vadd.f32 0.0, %v3667
        %3669 = vmatprep.mubr.bf16.mxu0 0
        %3670 = vmatmul.mubr.bf16.gmra.mrb[0].mxu0 %v3600
        %v3671 = vpop.f32.mrb[0].mxu0
        %v3672 = vadd.f32 0.0, %v3671
        %v3673 = vpop.f32.mrb[0].mxu0
        %v3674 = vadd.f32 0.0, %v3673
        %v3675 = vpop.f32.mrb[0].mxu0
        %v3676 = vadd.f32 0.0, %v3675
        %v3677 = vpop.f32.mrb[0].mxu0
        %v3678 = vadd.f32 0.0, %v3677
        %3679 = vmatprep.mubr.bf16.mxu0 0
        %3680 = vmatmul.mubr.bf16.gmra.mrb[0].mxu0 %v3603
        %v3681 = vpop.f32.mrb[0].mxu0
        %v3682 = vadd.f32 0.0, %v3681
        %v3683 = vpop.f32.mrb[0].mxu0
        %v3684 = vadd.f32 0.0, %v3683
        %v3685 = vpop.f32.mrb[0].mxu0
        %v3686 = vadd.f32 0.0, %v3685
        %v3687 = vpop.f32.mrb[0].mxu0
        %v3688 = vadd.f32 0.0, %v3687
        %3689 = vmatprep.mubr.bf16.mxu0 0
        %3690 = vmatmul.mubr.bf16.gmra.mrb[0].mxu0 %v3606
        %v3691 = vpop.f32.mrb[0].mxu0
        %v3692 = vadd.f32 0.0, %v3691
        %v3693 = vpop.f32.mrb[0].mxu0
        %v3694 = vadd.f32 0.0, %v3693
        %v3695 = vpop.f32.mrb[0].mxu0
        %v3696 = vadd.f32 0.0, %v3695
        %v3697 = vpop.f32.mrb[0].mxu0
        %v3698 = vadd.f32 0.0, %v3697
        %3699 = vmatprep.mubr.bf16.mxu0 0
        %3700 = vmatmul.mubr.bf16.gmra.mrb[0].mxu0 %v3609
        %v3701 = vpop.f32.mrb[0].mxu0
        %v3702 = vadd.f32 0.0, %v3701
        %v3703 = vpop.f32.mrb[0].mxu0
        %v3704 = vadd.f32 0.0, %v3703
        %v3705 = vpop.f32.mrb[0].mxu0
        %v3706 = vadd.f32 0.0, %v3705
        %v3707 = vpop.f32.mrb[0].mxu0
        %v3708 = vadd.f32 0.0, %v3707
        %3709 = vmatprep.mubr.bf16.mxu0 0
        %3710 = vmatmul.mubr.bf16.gmra.mrb[0].mxu0 %v3612
        %v3711 = vpop.f32.mrb[0].mxu0
        %v3712 = vadd.f32 0.0, %v3711
        %v3713 = vpop.f32.mrb[0].mxu0
        %v3714 = vadd.f32 0.0, %v3713
        %v3715 = vpop.f32.mrb[0].mxu0
        %v3716 = vadd.f32 0.0, %v3715
        %v3717 = vpop.f32.mrb[0].mxu0
        %v3718 = vadd.f32 0.0, %v3717
        %3719 = vmatprep.mubr.bf16.mxu0 0
        %3720 = vmatmul.mubr.bf16.gmra.mrb[0].mxu0 %v3615
        %v3721 = vpop.f32.mrb[0].mxu0
        %v3722 = vadd.f32 0.0, %v3721
        %v3723 = vpop.f32.mrb[0].mxu0
        %v3724 = vadd.f32 0.0, %v3723
        %v3725 = vpop.f32.mrb[0].mxu0
        %v3726 = vadd.f32 0.0, %v3725
        %v3727 = vpop.f32.mrb[0].mxu0
        %v3728 = vadd.f32 0.0, %v3727
        %3729 = vmatprep.mubr.bf16.mxu0 0
        %3730 = vmatmul.mubr.bf16.gmra.mrb[0].mxu0 %v3618
        %v3731 = vpop.f32.mrb[0].mxu0
        %v3732 = vadd.f32 0.0, %v3731
        %v3733 = vpop.f32.mrb[0].mxu0
        %v3734 = vadd.f32 0.0, %v3733
        %v3735 = vpop.f32.mrb[0].mxu0
        %v3736 = vadd.f32 0.0, %v3735
        %v3737 = vpop.f32.mrb[0].mxu0
        %v3738 = vadd.f32 0.0, %v3737
        %3739 = vdwg.mxu0
        %v3751 = vunpack.c.l.b16 %v3449
        %v3752 = vunpack.c.h.b16 %v3449
        %v3753 = vunpack.c.l.b16 %v3450
        %v3754 = vunpack.c.h.b16 %v3450
        %v3755 = vunpack.c.l.b16 %v3451
        %v3756 = vunpack.c.h.b16 %v3451
        %v3757 = vunpack.c.l.b16 %v3452
        %v3758 = vunpack.c.h.b16 %v3452
        %v3759 = vunpack.c.l.b16 %v3453
        %v3760 = vunpack.c.h.b16 %v3453
        %v3761 = vunpack.c.l.b16 %v3454
        %v3762 = vunpack.c.h.b16 %v3454
        %v3763 = vunpack.c.l.b16 %v3455
        %v3764 = vunpack.c.h.b16 %v3455
        %v3765 = vunpack.c.l.b16 %v3456
        %v3766 = vunpack.c.h.b16 %v3456
        %v3767 = vunpack.c.l.b16 %v3457
        %v3768 = vunpack.c.h.b16 %v3457
        %v3769 = vunpack.c.l.b16 %v3458
        %v3770 = vunpack.c.h.b16 %v3458
        %v3771 = vunpack.c.l.b16 %v3459
        %v3772 = vunpack.c.h.b16 %v3459
        %v3773 = vpack.c.b16 %v3753, %v3751
        %v3774 = vpack.c.b16 %v3754, %v3752
        %v3775 = vpack.c.b16 %v3757, %v3755
        %v3776 = vpack.c.b16 %v3758, %v3756
        %v3777 = vpack.c.b16 %v3761, %v3759
        %v3778 = vpack.c.b16 %v3762, %v3760
        %v3779 = vpack.c.b16 %v3765, %v3763
        %v3780 = vpack.c.b16 %v3766, %v3764
        %v3781 = vpack.c.b16 %v3769, %v3767
        %v3782 = vpack.c.b16 %v3770, %v3768
        %v3783 = vpack.c.b16 %v3771, %v3771
        %v3784 = vpack.c.b16 %v3772, %v3772
        %v3795 = vsel %vm3329, %v3441, 0
        %v3797 = vsel %vm3329, %v3442, 0
        %v3799 = vsel %vm3329, %v3443, 0
        %v3801 = vsel %vm3329, %v3444, 0
        %v3803 = vsel %vm3329, %v3445, 0
        %v3805 = vsel %vm3329, %v3446, 0
        %v3807 = vsel %vm3329, %v3447, 0
        %v3809 = vsel %vm3329, %v3448, 0
        %v3812 = vsel %vm3620, %v3783, 0
        %v3815 = vsel %vm3620, %v3784, 0
        %3817 = vmatprep.subr.bf16.mxu0 %v3774
        %3818 = vmatpush1.bf16.msra.mxu0 %v3773
        %3819 = vmatprep.subr.bf16.mxu0 %v3776
        %3820 = vmatpush1.bf16.msra.mxu0 %v3775
        %3821 = vmatprep.subr.bf16.mxu0 %v3778
        %3822 = vmatpush1.bf16.msra.mxu0 %v3777
        %3823 = vmatprep.subr.bf16.mxu0 %v3780
        %3824 = vmatpush1.bf16.msra.mxu0 %v3779
        %3825 = vmatprep.subr.bf16.mxu0 %v3782
        %3826 = vmatpush1.bf16.msra.mxu0 %v3781
        %3827 = vmatprep.subr.bf16.mxu0 %v3815
        %3828 = vmatpush1.bf16.msra.mxu0 %v3812
        %3829 = vmatprep.subr.bf16.mxu0 0
        %3830 = vmatpush1.bf16.msra.mxu0 0
        %3831 = vmatprep.subr.bf16.mxu0 0
        %3832 = vmatpush1.bf16.msra.mxu0 0
        %3833 = vmatprep.subr.bf16.mxu0 0
        %3834 = vmatpush1.bf16.msra.mxu0 0
        %3835 = vmatprep.subr.bf16.mxu0 0
        %3836 = vmatpush1.bf16.msra.mxu0 0
        %3837 = vmatprep.subr.bf16.mxu0 0
        %3838 = vmatpush1.bf16.msra.mxu0 0
        %3839 = vmatprep.subr.bf16.mxu0 0
        %3840 = vmatpush1.bf16.msra.mxu0 0
        %3841 = vmatprep.subr.bf16.mxu0 0
        %3842 = vmatpush1.bf16.msra.mxu0 0
        %3843 = vmatprep.subr.bf16.mxu0 0
        %3844 = vmatpush1.bf16.msra.mxu0 0
        %3845 = vmatprep.subr.bf16.mxu0 0
        %3846 = vmatpush1.bf16.msra.mxu0 0
        %3847 = vmatprep.subr.bf16.mxu0 0
        %3848 = vmatpush1.bf16.msra.mxu0 0
        %3849 = vmatprep.mubr.bf16.mxu0 0
        %3850 = vmatmul.mubr.bf16.gmra.mrb[0].mxu0 %v3795
        %v3851 = vpop.f32.mrb[0].mxu0
        %v3852 = vadd.f32 %v3662, %v3851
        %v3853 = vpop.f32.mrb[0].mxu0
        %v3854 = vadd.f32 %v3664, %v3853
        %v3855 = vpop.f32.mrb[0].mxu0
        %v3856 = vadd.f32 %v3666, %v3855
        %v3857 = vpop.f32.mrb[0].mxu0
        %v3858 = vadd.f32 %v3668, %v3857
        %3859 = vmatprep.mubr.bf16.mxu0 0
        %3860 = vmatmul.mubr.bf16.gmra.mrb[0].mxu0 %v3797
        %v3861 = vpop.f32.mrb[0].mxu0
        %v3862 = vadd.f32 %v3672, %v3861
        %v3863 = vpop.f32.mrb[0].mxu0
        %v3864 = vadd.f32 %v3674, %v3863
        %v3865 = vpop.f32.mrb[0].mxu0
        %v3866 = vadd.f32 %v3676, %v3865
        %v3867 = vpop.f32.mrb[0].mxu0
        %v3868 = vadd.f32 %v3678, %v3867
        %3869 = vmatprep.mubr.bf16.mxu0 0
        %3870 = vmatmul.mubr.bf16.gmra.mrb[0].mxu0 %v3799
        %v3871 = vpop.f32.mrb[0].mxu0
        %v3872 = vadd.f32 %v3682, %v3871
        %v3873 = vpop.f32.mrb[0].mxu0
        %v3874 = vadd.f32 %v3684, %v3873
        %v3875 = vpop.f32.mrb[0].mxu0
        %v3876 = vadd.f32 %v3686, %v3875
        %v3877 = vpop.f32.mrb[0].mxu0
        %v3878 = vadd.f32 %v3688, %v3877
        %3879 = vmatprep.mubr.bf16.mxu0 0
        %3880 = vmatmul.mubr.bf16.gmra.mrb[0].mxu0 %v3801
        %v3881 = vpop.f32.mrb[0].mxu0
        %v3882 = vadd.f32 %v3692, %v3881
        %v3883 = vpop.f32.mrb[0].mxu0
        %v3884 = vadd.f32 %v3694, %v3883
        %v3885 = vpop.f32.mrb[0].mxu0
        %v3886 = vadd.f32 %v3696, %v3885
        %v3887 = vpop.f32.mrb[0].mxu0
        %v3888 = vadd.f32 %v3698, %v3887
        %3889 = vmatprep.mubr.bf16.mxu0 0
        %3890 = vmatmul.mubr.bf16.gmra.mrb[0].mxu0 %v3803
        %v3891 = vpop.f32.mrb[0].mxu0
        %v3892 = vadd.f32 %v3702, %v3891
        %v3893 = vpop.f32.mrb[0].mxu0
        %v3894 = vadd.f32 %v3704, %v3893
        %v3895 = vpop.f32.mrb[0].mxu0
        %v3896 = vadd.f32 %v3706, %v3895
        %v3897 = vpop.f32.mrb[0].mxu0
        %v3898 = vadd.f32 %v3708, %v3897
        %3899 = vmatprep.mubr.bf16.mxu0 0
        %3900 = vmatmul.mubr.bf16.gmra.mrb[0].mxu0 %v3805
        %v3901 = vpop.f32.mrb[0].mxu0
        %v3902 = vadd.f32 %v3712, %v3901
        %v3903 = vpop.f32.mrb[0].mxu0
        %v3904 = vadd.f32 %v3714, %v3903
        %v3905 = vpop.f32.mrb[0].mxu0
        %v3906 = vadd.f32 %v3716, %v3905
        %v3907 = vpop.f32.mrb[0].mxu0
        %v3908 = vadd.f32 %v3718, %v3907
        %3909 = vmatprep.mubr.bf16.mxu0 0
        %3910 = vmatmul.mubr.bf16.gmra.mrb[0].mxu0 %v3807
        %v3911 = vpop.f32.mrb[0].mxu0
        %v3912 = vadd.f32 %v3722, %v3911
        %v3913 = vpop.f32.mrb[0].mxu0
        %v3914 = vadd.f32 %v3724, %v3913
        %v3915 = vpop.f32.mrb[0].mxu0
        %v3916 = vadd.f32 %v3726, %v3915
        %v3917 = vpop.f32.mrb[0].mxu0
        %v3918 = vadd.f32 %v3728, %v3917
        %3919 = vmatprep.mubr.bf16.mxu0 0
        %3920 = vmatmul.mubr.bf16.gmra.mrb[0].mxu0 %v3809
        %v3921 = vpop.f32.mrb[0].mxu0
        %v3922 = vadd.f32 %v3732, %v3921
        %v3923 = vpop.f32.mrb[0].mxu0
        %v3924 = vadd.f32 %v3734, %v3923
        %v3925 = vpop.f32.mrb[0].mxu0
        %v3926 = vadd.f32 %v3736, %v3925
        %v3927 = vpop.f32.mrb[0].mxu0
        %v3928 = vadd.f32 %v3738, %v3927
        %3929 = vdwg.mxu0
        %s3930 = scalar_lea.vmem %s5, 176
        %v3931 = vld [vmem:[%s3930] sm:$0xff]
        %v3932 = vld [vmem:[%s3930 + $0x8] sm:$0xff]
        %v3933 = vld [vmem:[%s3930 + $0x10] sm:$0xff]
        %v3934 = vld [vmem:[%s3930 + $0x18] sm:$0xff]
        %v3935 = vld [vmem:[%s3930 + $0x20] sm:$0xff]
        %v3936 = vld [vmem:[%s3930 + $0x28] sm:$0xff]
        %v3937 = vld [vmem:[%s3930 + $0x30] sm:$0xff]
        %v3938 = vld [vmem:[%s3930 + $0x38] sm:$0xff]
        %v3939 = vld [vmem:[%s3930 + $0x40] sm:$0xff]
        %v3940 = vld [vmem:[%s3930 + $0x48] sm:$0xff]
        %v3941 = vld [vmem:[%s3930 + $0x50] sm:$0x33]
        %v3951 = vrot.slane %v3441, 1
        %v3952 = vrot.slane %v3442, 1
        %v3953 = vsel %vm1320, %v3951, %v3952
        %v3954 = vrot.slane %v3443, 1
        %v3955 = vsel %vm1320, %v3952, %v3954
        %v3956 = vrot.slane %v3444, 1
        %v3957 = vsel %vm1320, %v3954, %v3956
        %v3958 = vrot.slane %v3445, 1
        %v3959 = vsel %vm1320, %v3956, %v3958
        %v3960 = vrot.slane %v3446, 1
        %v3961 = vsel %vm1320, %v3958, %v3960
        %v3962 = vrot.slane %v3447, 1
        %v3963 = vsel %vm1320, %v3960, %v3962
        %v3964 = vrot.slane %v3448, 1
        %v3965 = vsel %vm1320, %v3962, %v3964
        %v3966 = vrot.slane %v3460, 1
        %v3967 = vsel %vm1320, %v3964, %v3966
        %v3979 = vunpack.c.l.b16 %v3931
        %v3980 = vunpack.c.h.b16 %v3931
        %v3981 = vunpack.c.l.b16 %v3932
        %v3982 = vunpack.c.h.b16 %v3932
        %v3983 = vunpack.c.l.b16 %v3933
        %v3984 = vunpack.c.h.b16 %v3933
        %v3985 = vunpack.c.l.b16 %v3934
        %v3986 = vunpack.c.h.b16 %v3934
        %v3987 = vunpack.c.l.b16 %v3935
        %v3988 = vunpack.c.h.b16 %v3935
        %v3989 = vunpack.c.l.b16 %v3936
        %v3990 = vunpack.c.h.b16 %v3936
        %v3991 = vunpack.c.l.b16 %v3937
        %v3992 = vunpack.c.h.b16 %v3937
        %v3993 = vunpack.c.l.b16 %v3938
        %v3994 = vunpack.c.h.b16 %v3938
        %v3995 = vunpack.c.l.b16 %v3939
        %v3996 = vunpack.c.h.b16 %v3939
        %v3997 = vunpack.c.l.b16 %v3940
        %v3998 = vunpack.c.h.b16 %v3940
        %v3999 = vunpack.c.l.b16 %v3941
        %v4000 = vunpack.c.h.b16 %v3941
        %v4001 = vpack.c.b16 %v3981, %v3979
        %v4002 = vpack.c.b16 %v3982, %v3980
        %v4003 = vpack.c.b16 %v3985, %v3983
        %v4004 = vpack.c.b16 %v3986, %v3984
        %v4005 = vpack.c.b16 %v3989, %v3987
        %v4006 = vpack.c.b16 %v3990, %v3988
        %v4007 = vpack.c.b16 %v3993, %v3991
        %v4008 = vpack.c.b16 %v3994, %v3992
        %v4009 = vpack.c.b16 %v3997, %v3995
        %v4010 = vpack.c.b16 %v3998, %v3996
        %v4011 = vpack.c.b16 %v3999, %v3999
        %v4012 = vpack.c.b16 %v4000, %v4000
        %v4024 = vsel %vm3329, %v3953, 0
        %v4027 = vsel %vm3329, %v3955, 0
        %v4030 = vsel %vm3329, %v3957, 0
        %v4033 = vsel %vm3329, %v3959, 0
        %v4036 = vsel %vm3329, %v3961, 0
        %v4039 = vsel %vm3329, %v3963, 0
        %v4042 = vsel %vm3329, %v3965, 0
        %v4045 = vsel %vm3329, %v3967, 0
        %v4048 = vsel %vm3620, %v4011, 0
        %v4051 = vsel %vm3620, %v4012, 0
        %4053 = vmatprep.subr.bf16.mxu0 %v4002
        %4054 = vmatpush1.bf16.msra.mxu0 %v4001
        %4055 = vmatprep.subr.bf16.mxu0 %v4004
        %4056 = vmatpush1.bf16.msra.mxu0 %v4003
        %4057 = vmatprep.subr.bf16.mxu0 %v4006
        %4058 = vmatpush1.bf16.msra.mxu0 %v4005
        %4059 = vmatprep.subr.bf16.mxu0 %v4008
        %4060 = vmatpush1.bf16.msra.mxu0 %v4007
        %4061 = vmatprep.subr.bf16.mxu0 %v4010
        %4062 = vmatpush1.bf16.msra.mxu0 %v4009
        %4063 = vmatprep.subr.bf16.mxu0 %v4051
        %4064 = vmatpush1.bf16.msra.mxu0 %v4048
        %4065 = vmatprep.subr.bf16.mxu0 0
        %4066 = vmatpush1.bf16.msra.mxu0 0
        %4067 = vmatprep.subr.bf16.mxu0 0
        %4068 = vmatpush1.bf16.msra.mxu0 0
        %4069 = vmatprep.subr.bf16.mxu0 0
        %4070 = vmatpush1.bf16.msra.mxu0 0
        %4071 = vmatprep.subr.bf16.mxu0 0
        %4072 = vmatpush1.bf16.msra.mxu0 0
        %4073 = vmatprep.subr.bf16.mxu0 0
        %4074 = vmatpush1.bf16.msra.mxu0 0
        %4075 = vmatprep.subr.bf16.mxu0 0
        %4076 = vmatpush1.bf16.msra.mxu0 0
        %4077 = vmatprep.subr.bf16.mxu0 0
        %4078 = vmatpush1.bf16.msra.mxu0 0
        %4079 = vmatprep.subr.bf16.mxu0 0
        %4080 = vmatpush1.bf16.msra.mxu0 0
        %4081 = vmatprep.subr.bf16.mxu0 0
        %4082 = vmatpush1.bf16.msra.mxu0 0
        %4083 = vmatprep.subr.bf16.mxu0 0
        %4084 = vmatpush1.bf16.msra.mxu0 0
        %4085 = vmatprep.mubr.bf16.mxu0 0
        %4086 = vmatmul.mubr.bf16.gmra.mrb[0].mxu0 %v4024
        %v4087 = vpop.f32.mrb[0].mxu0
        %v4088 = vadd.f32 0.0, %v4087
        %v4089 = vpop.f32.mrb[0].mxu0
        %v4090 = vadd.f32 0.0, %v4089
        %v4091 = vpop.f32.mrb[0].mxu0
        %v4092 = vadd.f32 0.0, %v4091
        %v4093 = vpop.f32.mrb[0].mxu0
        %v4094 = vadd.f32 0.0, %v4093
        %4095 = vmatprep.mubr.bf16.mxu0 0
        %4096 = vmatmul.mubr.bf16.gmra.mrb[0].mxu0 %v4027
        %v4097 = vpop.f32.mrb[0].mxu0
        %v4098 = vadd.f32 0.0, %v4097
        %v4099 = vpop.f32.mrb[0].mxu0
        %v4100 = vadd.f32 0.0, %v4099
        %v4101 = vpop.f32.mrb[0].mxu0
        %v4102 = vadd.f32 0.0, %v4101
        %v4103 = vpop.f32.mrb[0].mxu0
        %v4104 = vadd.f32 0.0, %v4103
        %4105 = vmatprep.mubr.bf16.mxu0 0
        %4106 = vmatmul.mubr.bf16.gmra.mrb[0].mxu0 %v4030
        %v4107 = vpop.f32.mrb[0].mxu0
        %v4108 = vadd.f32 0.0, %v4107
        %v4109 = vpop.f32.mrb[0].mxu0
        %v4110 = vadd.f32 0.0, %v4109
        %v4111 = vpop.f32.mrb[0].mxu0
        %v4112 = vadd.f32 0.0, %v4111
        %v4113 = vpop.f32.mrb[0].mxu0
        %v4114 = vadd.f32 0.0, %v4113
        %4115 = vmatprep.mubr.bf16.mxu0 0
        %4116 = vmatmul.mubr.bf16.gmra.mrb[0].mxu0 %v4033
        %v4117 = vpop.f32.mrb[0].mxu0
        %v4118 = vadd.f32 0.0, %v4117
        %v4119 = vpop.f32.mrb[0].mxu0
        %v4120 = vadd.f32 0.0, %v4119
        %v4121 = vpop.f32.mrb[0].mxu0
        %v4122 = vadd.f32 0.0, %v4121
        %v4123 = vpop.f32.mrb[0].mxu0
        %v4124 = vadd.f32 0.0, %v4123
        %4125 = vmatprep.mubr.bf16.mxu0 0
        %4126 = vmatmul.mubr.bf16.gmra.mrb[0].mxu0 %v4036
        %v4127 = vpop.f32.mrb[0].mxu0
        %v4128 = vadd.f32 0.0, %v4127
        %v4129 = vpop.f32.mrb[0].mxu0
        %v4130 = vadd.f32 0.0, %v4129
        %v4131 = vpop.f32.mrb[0].mxu0
        %v4132 = vadd.f32 0.0, %v4131
        %v4133 = vpop.f32.mrb[0].mxu0
        %v4134 = vadd.f32 0.0, %v4133
        %4135 = vmatprep.mubr.bf16.mxu0 0
        %4136 = vmatmul.mubr.bf16.gmra.mrb[0].mxu0 %v4039
        %v4137 = vpop.f32.mrb[0].mxu0
        %v4138 = vadd.f32 0.0, %v4137
        %v4139 = vpop.f32.mrb[0].mxu0
        %v4140 = vadd.f32 0.0, %v4139
        %v4141 = vpop.f32.mrb[0].mxu0
        %v4142 = vadd.f32 0.0, %v4141
        %v4143 = vpop.f32.mrb[0].mxu0
        %v4144 = vadd.f32 0.0, %v4143
        %4145 = vmatprep.mubr.bf16.mxu0 0
        %4146 = vmatmul.mubr.bf16.gmra.mrb[0].mxu0 %v4042
        %v4147 = vpop.f32.mrb[0].mxu0
        %v4148 = vadd.f32 0.0, %v4147
        %v4149 = vpop.f32.mrb[0].mxu0
        %v4150 = vadd.f32 0.0, %v4149
        %v4151 = vpop.f32.mrb[0].mxu0
        %v4152 = vadd.f32 0.0, %v4151
        %v4153 = vpop.f32.mrb[0].mxu0
        %v4154 = vadd.f32 0.0, %v4153
        %4155 = vmatprep.mubr.bf16.mxu0 0
        %4156 = vmatmul.mubr.bf16.gmra.mrb[0].mxu0 %v4045
        %v4157 = vpop.f32.mrb[0].mxu0
        %v4158 = vadd.f32 0.0, %v4157
        %v4159 = vpop.f32.mrb[0].mxu0
        %v4160 = vadd.f32 0.0, %v4159
        %v4161 = vpop.f32.mrb[0].mxu0
        %v4162 = vadd.f32 0.0, %v4161
        %v4163 = vpop.f32.mrb[0].mxu0
        %v4164 = vadd.f32 0.0, %v4163
        %4165 = vdwg.mxu0
        %v4166 = vadd.f32 %v3852, %v4088
        %v4167 = vadd.f32 %v3854, %v4090
        %v4168 = vadd.f32 %v3856, %v4092
        %v4169 = vadd.f32 %v3858, %v4094
        %v4170 = vadd.f32 %v3862, %v4098
        %v4171 = vadd.f32 %v3864, %v4100
        %v4172 = vadd.f32 %v3866, %v4102
        %v4173 = vadd.f32 %v3868, %v4104
        %v4174 = vadd.f32 %v3872, %v4108
        %v4175 = vadd.f32 %v3874, %v4110
        %v4176 = vadd.f32 %v3876, %v4112
        %v4177 = vadd.f32 %v3878, %v4114
        %v4178 = vadd.f32 %v3882, %v4118
        %v4179 = vadd.f32 %v3884, %v4120
        %v4180 = vadd.f32 %v3886, %v4122
        %v4181 = vadd.f32 %v3888, %v4124
        %v4182 = vadd.f32 %v3892, %v4128
        %v4183 = vadd.f32 %v3894, %v4130
        %v4184 = vadd.f32 %v3896, %v4132
        %v4185 = vadd.f32 %v3898, %v4134
        %v4186 = vadd.f32 %v3902, %v4138
        %v4187 = vadd.f32 %v3904, %v4140
        %v4188 = vadd.f32 %v3906, %v4142
        %v4189 = vadd.f32 %v3908, %v4144
        %v4190 = vadd.f32 %v3912, %v4148
        %v4191 = vadd.f32 %v3914, %v4150
        %v4192 = vadd.f32 %v3916, %v4152
        %v4193 = vadd.f32 %v3918, %v4154
        %v4194 = vadd.f32 %v3922, %v4158
        %v4195 = vadd.f32 %v3924, %v4160
        %v4196 = vadd.f32 %v3926, %v4162
        %v4197 = vadd.f32 %v3928, %v4164
        %s4198 = scalar_lea.vmem %s5, 264
        %v4199 = vld [vmem:[%s4198] sm:$0xff]
        %v4200 = vld [vmem:[%s4198 + $0x8] sm:$0xff]
        %v4201 = vld [vmem:[%s4198 + $0x10] sm:$0xff]
        %v4202 = vld [vmem:[%s4198 + $0x18] sm:$0xff]
        %v4203 = vld [vmem:[%s4198 + $0x20] sm:$0xff]
        %v4204 = vld [vmem:[%s4198 + $0x28] sm:$0xff]
        %v4205 = vld [vmem:[%s4198 + $0x30] sm:$0xff]
        %v4206 = vld [vmem:[%s4198 + $0x38] sm:$0xff]
        %v4207 = vld [vmem:[%s4198 + $0x40] sm:$0xff]
        %v4208 = vld [vmem:[%s4198 + $0x48] sm:$0xff]
        %v4209 = vld [vmem:[%s4198 + $0x50] sm:$0x33]
        %v4210 = vrot.slane %v3474, 1
        %v4211 = vrot.slane %v3476, 2
        %v4212 = vor.u32 %v4210, %v4211
        %v4213 = vrot.slane %v3485, 1
        %v4214 = vrot.slane %v3481, 2
        %v4215 = vor.u32 %v4213, %v4214
        %v4216 = vsel %vm1732, %v4212, %v4215
        %v4217 = vrot.slane %v3493, 1
        %v4218 = vrot.slane %v3489, 2
        %v4219 = vor.u32 %v4217, %v4218
        %v4220 = vsel %vm1732, %v4215, %v4219
        %v4221 = vrot.slane %v3501, 1
        %v4222 = vrot.slane %v3497, 2
        %v4223 = vor.u32 %v4221, %v4222
        %v4224 = vsel %vm1732, %v4219, %v4223
        %v4225 = vrot.slane %v3509, 1
        %v4226 = vrot.slane %v3505, 2
        %v4227 = vor.u32 %v4225, %v4226
        %v4228 = vsel %vm1732, %v4223, %v4227
        %v4229 = vrot.slane %v3517, 1
        %v4230 = vrot.slane %v3513, 2
        %v4231 = vor.u32 %v4229, %v4230
        %v4232 = vsel %vm1732, %v4227, %v4231
        %v4233 = vrot.slane %v3525, 1
        %v4234 = vrot.slane %v3521, 2
        %v4235 = vor.u32 %v4233, %v4234
        %v4236 = vsel %vm1732, %v4231, %v4235
        %v4237 = vrot.slane %v3533, 1
        %v4238 = vrot.slane %v3529, 2
        %v4239 = vor.u32 %v4237, %v4238
        %v4240 = vsel %vm1732, %v4235, %v4239
        %v4241 = vshrl.u32 %v3460, 16
        %v4243 = vrot.slane %v4241, 1
        %v4244 = vrot.slane %v3537, 2
        %v4245 = vor.u32 %v4243, %v4244
        %v4246 = vsel %vm1732, %v4239, %v4245
        %v4258 = vunpack.c.l.b16 %v4199
        %v4259 = vunpack.c.h.b16 %v4199
        %v4260 = vunpack.c.l.b16 %v4200
        %v4261 = vunpack.c.h.b16 %v4200
        %v4262 = vunpack.c.l.b16 %v4201
        %v4263 = vunpack.c.h.b16 %v4201
        %v4264 = vunpack.c.l.b16 %v4202
        %v4265 = vunpack.c.h.b16 %v4202
        %v4266 = vunpack.c.l.b16 %v4203
        %v4267 = vunpack.c.h.b16 %v4203
        %v4268 = vunpack.c.l.b16 %v4204
        %v4269 = vunpack.c.h.b16 %v4204
        %v4270 = vunpack.c.l.b16 %v4205
        %v4271 = vunpack.c.h.b16 %v4205
        %v4272 = vunpack.c.l.b16 %v4206
        %v4273 = vunpack.c.h.b16 %v4206
        %v4274 = vunpack.c.l.b16 %v4207
        %v4275 = vunpack.c.h.b16 %v4207
        %v4276 = vunpack.c.l.b16 %v4208
        %v4277 = vunpack.c.h.b16 %v4208
        %v4278 = vunpack.c.l.b16 %v4209
        %v4279 = vunpack.c.h.b16 %v4209
        %v4280 = vpack.c.b16 %v4260, %v4258
        %v4281 = vpack.c.b16 %v4261, %v4259
        %v4282 = vpack.c.b16 %v4264, %v4262
        %v4283 = vpack.c.b16 %v4265, %v4263
        %v4284 = vpack.c.b16 %v4268, %v4266
        %v4285 = vpack.c.b16 %v4269, %v4267
        %v4286 = vpack.c.b16 %v4272, %v4270
        %v4287 = vpack.c.b16 %v4273, %v4271
        %v4288 = vpack.c.b16 %v4276, %v4274
        %v4289 = vpack.c.b16 %v4277, %v4275
        %v4290 = vpack.c.b16 %v4278, %v4278
        %v4291 = vpack.c.b16 %v4279, %v4279
        %v4303 = vsel %vm3329, %v4216, 0
        %v4306 = vsel %vm3329, %v4220, 0
        %v4309 = vsel %vm3329, %v4224, 0
        %v4312 = vsel %vm3329, %v4228, 0
        %v4315 = vsel %vm3329, %v4232, 0
        %v4318 = vsel %vm3329, %v4236, 0
        %v4321 = vsel %vm3329, %v4240, 0
        %v4324 = vsel %vm3329, %v4246, 0
        %v4327 = vsel %vm3620, %v4290, 0
        %v4330 = vsel %vm3620, %v4291, 0
        %4332 = vmatprep.subr.bf16.mxu0 %v4281
        %4333 = vmatpush1.bf16.msra.mxu0 %v4280
        %4334 = vmatprep.subr.bf16.mxu0 %v4283
        %4335 = vmatpush1.bf16.msra.mxu0 %v4282
        %4336 = vmatprep.subr.bf16.mxu0 %v4285
        %4337 = vmatpush1.bf16.msra.mxu0 %v4284
        %4338 = vmatprep.subr.bf16.mxu0 %v4287
        %4339 = vmatpush1.bf16.msra.mxu0 %v4286
        %4340 = vmatprep.subr.bf16.mxu0 %v4289
        %4341 = vmatpush1.bf16.msra.mxu0 %v4288
        %4342 = vmatprep.subr.bf16.mxu0 %v4330
        %4343 = vmatpush1.bf16.msra.mxu0 %v4327
        %4344 = vmatprep.subr.bf16.mxu0 0
        %4345 = vmatpush1.bf16.msra.mxu0 0
        %4346 = vmatprep.subr.bf16.mxu0 0
        %4347 = vmatpush1.bf16.msra.mxu0 0
        %4348 = vmatprep.subr.bf16.mxu0 0
        %4349 = vmatpush1.bf16.msra.mxu0 0
        %4350 = vmatprep.subr.bf16.mxu0 0
        %4351 = vmatpush1.bf16.msra.mxu0 0
        %4352 = vmatprep.subr.bf16.mxu0 0
        %4353 = vmatpush1.bf16.msra.mxu0 0
        %4354 = vmatprep.subr.bf16.mxu0 0
        %4355 = vmatpush1.bf16.msra.mxu0 0
        %4356 = vmatprep.subr.bf16.mxu0 0
        %4357 = vmatpush1.bf16.msra.mxu0 0
        %4358 = vmatprep.subr.bf16.mxu0 0
        %4359 = vmatpush1.bf16.msra.mxu0 0
        %4360 = vmatprep.subr.bf16.mxu0 0
        %4361 = vmatpush1.bf16.msra.mxu0 0
        %4362 = vmatprep.subr.bf16.mxu0 0
        %4363 = vmatpush1.bf16.msra.mxu0 0
        %4364 = vmatprep.mubr.bf16.mxu0 0
        %4365 = vmatmul.mubr.bf16.gmra.mrb[0].mxu0 %v4303
        %v4366 = vpop.f32.mrb[0].mxu0
        %v4367 = vadd.f32 0.0, %v4366
        %v4368 = vpop.f32.mrb[0].mxu0
        %v4369 = vadd.f32 0.0, %v4368
        %v4370 = vpop.f32.mrb[0].mxu0
        %v4371 = vadd.f32 0.0, %v4370
        %v4372 = vpop.f32.mrb[0].mxu0
        %v4373 = vadd.f32 0.0, %v4372
        %4374 = vmatprep.mubr.bf16.mxu0 0
        %4375 = vmatmul.mubr.bf16.gmra.mrb[0].mxu0 %v4306
        %v4376 = vpop.f32.mrb[0].mxu0
        %v4377 = vadd.f32 0.0, %v4376
        %v4378 = vpop.f32.mrb[0].mxu0
        %v4379 = vadd.f32 0.0, %v4378
        %v4380 = vpop.f32.mrb[0].mxu0
        %v4381 = vadd.f32 0.0, %v4380
        %v4382 = vpop.f32.mrb[0].mxu0
        %v4383 = vadd.f32 0.0, %v4382
        %4384 = vmatprep.mubr.bf16.mxu0 0
        %4385 = vmatmul.mubr.bf16.gmra.mrb[0].mxu0 %v4309
        %v4386 = vpop.f32.mrb[0].mxu0
        %v4387 = vadd.f32 0.0, %v4386
        %v4388 = vpop.f32.mrb[0].mxu0
        %v4389 = vadd.f32 0.0, %v4388
        %v4390 = vpop.f32.mrb[0].mxu0
        %v4391 = vadd.f32 0.0, %v4390
        %v4392 = vpop.f32.mrb[0].mxu0
        %v4393 = vadd.f32 0.0, %v4392
        %4394 = vmatprep.mubr.bf16.mxu0 0
        %4395 = vmatmul.mubr.bf16.gmra.mrb[0].mxu0 %v4312
        %v4396 = vpop.f32.mrb[0].mxu0
        %v4397 = vadd.f32 0.0, %v4396
        %v4398 = vpop.f32.mrb[0].mxu0
        %v4399 = vadd.f32 0.0, %v4398
        %v4400 = vpop.f32.mrb[0].mxu0
        %v4401 = vadd.f32 0.0, %v4400
        %v4402 = vpop.f32.mrb[0].mxu0
        %v4403 = vadd.f32 0.0, %v4402
        %4404 = vmatprep.mubr.bf16.mxu0 0
        %4405 = vmatmul.mubr.bf16.gmra.mrb[0].mxu0 %v4315
        %v4406 = vpop.f32.mrb[0].mxu0
        %v4407 = vadd.f32 0.0, %v4406
        %v4408 = vpop.f32.mrb[0].mxu0
        %v4409 = vadd.f32 0.0, %v4408
        %v4410 = vpop.f32.mrb[0].mxu0
        %v4411 = vadd.f32 0.0, %v4410
        %v4412 = vpop.f32.mrb[0].mxu0
        %v4413 = vadd.f32 0.0, %v4412
        %4414 = vmatprep.mubr.bf16.mxu0 0
        %4415 = vmatmul.mubr.bf16.gmra.mrb[0].mxu0 %v4318
        %v4416 = vpop.f32.mrb[0].mxu0
        %v4417 = vadd.f32 0.0, %v4416
        %v4418 = vpop.f32.mrb[0].mxu0
        %v4419 = vadd.f32 0.0, %v4418
        %v4420 = vpop.f32.mrb[0].mxu0
        %v4421 = vadd.f32 0.0, %v4420
        %v4422 = vpop.f32.mrb[0].mxu0
        %v4423 = vadd.f32 0.0, %v4422
        %4424 = vmatprep.mubr.bf16.mxu0 0
        %4425 = vmatmul.mubr.bf16.gmra.mrb[0].mxu0 %v4321
        %v4426 = vpop.f32.mrb[0].mxu0
        %v4427 = vadd.f32 0.0, %v4426
        %v4428 = vpop.f32.mrb[0].mxu0
        %v4429 = vadd.f32 0.0, %v4428
        %v4430 = vpop.f32.mrb[0].mxu0
        %v4431 = vadd.f32 0.0, %v4430
        %v4432 = vpop.f32.mrb[0].mxu0
        %v4433 = vadd.f32 0.0, %v4432
        %4434 = vmatprep.mubr.bf16.mxu0 0
        %4435 = vmatmul.mubr.bf16.gmra.mrb[0].mxu0 %v4324
        %v4436 = vpop.f32.mrb[0].mxu0
        %v4437 = vadd.f32 0.0, %v4436
        %v4438 = vpop.f32.mrb[0].mxu0
        %v4439 = vadd.f32 0.0, %v4438
        %v4440 = vpop.f32.mrb[0].mxu0
        %v4441 = vadd.f32 0.0, %v4440
        %v4442 = vpop.f32.mrb[0].mxu0
        %v4443 = vadd.f32 0.0, %v4442
        %4444 = vdwg.mxu0
        %v4445 = vadd.f32 %v4166, %v4367
        %v4446 = vadd.f32 %v4167, %v4369
        %v4447 = vadd.f32 %v4168, %v4371
        %v4448 = vadd.f32 %v4169, %v4373
        %v4449 = vadd.f32 %v4170, %v4377
        %v4450 = vadd.f32 %v4171, %v4379
        %v4451 = vadd.f32 %v4172, %v4381
        %v4452 = vadd.f32 %v4173, %v4383
        %v4453 = vadd.f32 %v4174, %v4387
        %v4454 = vadd.f32 %v4175, %v4389
        %v4455 = vadd.f32 %v4176, %v4391
        %v4456 = vadd.f32 %v4177, %v4393
        %v4457 = vadd.f32 %v4178, %v4397
        %v4458 = vadd.f32 %v4179, %v4399
        %v4459 = vadd.f32 %v4180, %v4401
        %v4460 = vadd.f32 %v4181, %v4403
        %v4461 = vadd.f32 %v4182, %v4407
        %v4462 = vadd.f32 %v4183, %v4409
        %v4463 = vadd.f32 %v4184, %v4411
        %v4464 = vadd.f32 %v4185, %v4413
        %v4465 = vadd.f32 %v4186, %v4417
        %v4466 = vadd.f32 %v4187, %v4419
        %v4467 = vadd.f32 %v4188, %v4421
        %v4468 = vadd.f32 %v4189, %v4423
        %v4469 = vadd.f32 %v4190, %v4427
        %v4470 = vadd.f32 %v4191, %v4429
        %v4471 = vadd.f32 %v4192, %v4431
        %v4472 = vadd.f32 %v4193, %v4433
        %v4473 = vadd.f32 %v4194, %v4437
        %v4474 = vadd.f32 %v4195, %v4439
        %v4475 = vadd.f32 %v4196, %v4441
        %v4476 = vadd.f32 %v4197, %v4443
        %s4477 = scalar_lea.vmem %s5, 352
        %v4478 = vld [vmem:[%s4477] sm:$0xff]
        %v4479 = vld [vmem:[%s4477 + $0x8] sm:$0xff]
        %v4480 = vld [vmem:[%s4477 + $0x10] sm:$0xff]
        %v4481 = vld [vmem:[%s4477 + $0x18] sm:$0xff]
        %v4482 = vld [vmem:[%s4477 + $0x20] sm:$0xff]
        %v4483 = vld [vmem:[%s4477 + $0x28] sm:$0xff]
        %v4484 = vld [vmem:[%s4477 + $0x30] sm:$0xff]
        %v4485 = vld [vmem:[%s4477 + $0x38] sm:$0xff]
        %v4486 = vld [vmem:[%s4477 + $0x40] sm:$0xff]
        %v4487 = vld [vmem:[%s4477 + $0x48] sm:$0xff]
        %v4488 = vld [vmem:[%s4477 + $0x50] sm:$0x33]
        %v4489 = vrot.slane %v3441, 2
        %v4490 = vrot.slane %v3442, 2
        %v4491 = vsel %vm2180, %v4489, %v4490
        %v4492 = vrot.slane %v3443, 2
        %v4493 = vsel %vm2180, %v4490, %v4492
        %v4494 = vrot.slane %v3444, 2
        %v4495 = vsel %vm2180, %v4492, %v4494
        %v4496 = vrot.slane %v3445, 2
        %v4497 = vsel %vm2180, %v4494, %v4496
        %v4498 = vrot.slane %v3446, 2
        %v4499 = vsel %vm2180, %v4496, %v4498
        %v4500 = vrot.slane %v3447, 2
        %v4501 = vsel %vm2180, %v4498, %v4500
        %v4502 = vrot.slane %v3448, 2
        %v4503 = vsel %vm2180, %v4500, %v4502
        %v4504 = vrot.slane %v3460, 2
        %v4505 = vsel %vm2180, %v4502, %v4504
        %v4517 = vunpack.c.l.b16 %v4478
        %v4518 = vunpack.c.h.b16 %v4478
        %v4519 = vunpack.c.l.b16 %v4479
        %v4520 = vunpack.c.h.b16 %v4479
        %v4521 = vunpack.c.l.b16 %v4480
        %v4522 = vunpack.c.h.b16 %v4480
        %v4523 = vunpack.c.l.b16 %v4481
        %v4524 = vunpack.c.h.b16 %v4481
        %v4525 = vunpack.c.l.b16 %v4482
        %v4526 = vunpack.c.h.b16 %v4482
        %v4527 = vunpack.c.l.b16 %v4483
        %v4528 = vunpack.c.h.b16 %v4483
        %v4529 = vunpack.c.l.b16 %v4484
        %v4530 = vunpack.c.h.b16 %v4484
        %v4531 = vunpack.c.l.b16 %v4485
        %v4532 = vunpack.c.h.b16 %v4485
        %v4533 = vunpack.c.l.b16 %v4486
        %v4534 = vunpack.c.h.b16 %v4486
        %v4535 = vunpack.c.l.b16 %v4487
        %v4536 = vunpack.c.h.b16 %v4487
        %v4537 = vunpack.c.l.b16 %v4488
        %v4538 = vunpack.c.h.b16 %v4488
        %v4539 = vpack.c.b16 %v4519, %v4517
        %v4540 = vpack.c.b16 %v4520, %v4518
        %v4541 = vpack.c.b16 %v4523, %v4521
        %v4542 = vpack.c.b16 %v4524, %v4522
        %v4543 = vpack.c.b16 %v4527, %v4525
        %v4544 = vpack.c.b16 %v4528, %v4526
        %v4545 = vpack.c.b16 %v4531, %v4529
        %v4546 = vpack.c.b16 %v4532, %v4530
        %v4547 = vpack.c.b16 %v4535, %v4533
        %v4548 = vpack.c.b16 %v4536, %v4534
        %v4549 = vpack.c.b16 %v4537, %v4537
        %v4550 = vpack.c.b16 %v4538, %v4538
        %v4562 = vsel %vm3329, %v4491, 0
        %v4565 = vsel %vm3329, %v4493, 0
        %v4568 = vsel %vm3329, %v4495, 0
        %v4571 = vsel %vm3329, %v4497, 0
        %v4574 = vsel %vm3329, %v4499, 0
        %v4577 = vsel %vm3329, %v4501, 0
        %v4580 = vsel %vm3329, %v4503, 0
        %v4583 = vsel %vm3329, %v4505, 0
        %v4586 = vsel %vm3620, %v4549, 0
        %v4589 = vsel %vm3620, %v4550, 0
        %4591 = vmatprep.subr.bf16.mxu0 %v4540
        %4592 = vmatpush1.bf16.msra.mxu0 %v4539
        %4593 = vmatprep.subr.bf16.mxu0 %v4542
        %4594 = vmatpush1.bf16.msra.mxu0 %v4541
        %4595 = vmatprep.subr.bf16.mxu0 %v4544
        %4596 = vmatpush1.bf16.msra.mxu0 %v4543
        %4597 = vmatprep.subr.bf16.mxu0 %v4546
        %4598 = vmatpush1.bf16.msra.mxu0 %v4545
        %4599 = vmatprep.subr.bf16.mxu0 %v4548
        %4600 = vmatpush1.bf16.msra.mxu0 %v4547
        %4601 = vmatprep.subr.bf16.mxu0 %v4589
        %4602 = vmatpush1.bf16.msra.mxu0 %v4586
        %4603 = vmatprep.subr.bf16.mxu0 0
        %4604 = vmatpush1.bf16.msra.mxu0 0
        %4605 = vmatprep.subr.bf16.mxu0 0
        %4606 = vmatpush1.bf16.msra.mxu0 0
        %4607 = vmatprep.subr.bf16.mxu0 0
        %4608 = vmatpush1.bf16.msra.mxu0 0
        %4609 = vmatprep.subr.bf16.mxu0 0
        %4610 = vmatpush1.bf16.msra.mxu0 0
        %4611 = vmatprep.subr.bf16.mxu0 0
        %4612 = vmatpush1.bf16.msra.mxu0 0
        %4613 = vmatprep.subr.bf16.mxu0 0
        %4614 = vmatpush1.bf16.msra.mxu0 0
        %4615 = vmatprep.subr.bf16.mxu0 0
        %4616 = vmatpush1.bf16.msra.mxu0 0
        %4617 = vmatprep.subr.bf16.mxu0 0
        %4618 = vmatpush1.bf16.msra.mxu0 0
        %4619 = vmatprep.subr.bf16.mxu0 0
        %4620 = vmatpush1.bf16.msra.mxu0 0
        %4621 = vmatprep.subr.bf16.mxu0 0
        %4622 = vmatpush1.bf16.msra.mxu0 0
        %4623 = vmatprep.mubr.bf16.mxu0 0
        %4624 = vmatmul.mubr.bf16.gmra.mrb[0].mxu0 %v4562
        %v4625 = vpop.f32.mrb[0].mxu0
        %v4626 = vadd.f32 0.0, %v4625
        %v4627 = vpop.f32.mrb[0].mxu0
        %v4628 = vadd.f32 0.0, %v4627
        %v4629 = vpop.f32.mrb[0].mxu0
        %v4630 = vadd.f32 0.0, %v4629
        %v4631 = vpop.f32.mrb[0].mxu0
        %v4632 = vadd.f32 0.0, %v4631
        %4633 = vmatprep.mubr.bf16.mxu0 0
        %4634 = vmatmul.mubr.bf16.gmra.mrb[0].mxu0 %v4565
        %v4635 = vpop.f32.mrb[0].mxu0
        %v4636 = vadd.f32 0.0, %v4635
        %v4637 = vpop.f32.mrb[0].mxu0
        %v4638 = vadd.f32 0.0, %v4637
        %v4639 = vpop.f32.mrb[0].mxu0
        %v4640 = vadd.f32 0.0, %v4639
        %v4641 = vpop.f32.mrb[0].mxu0
        %v4642 = vadd.f32 0.0, %v4641
        %4643 = vmatprep.mubr.bf16.mxu0 0
        %4644 = vmatmul.mubr.bf16.gmra.mrb[0].mxu0 %v4568
        %v4645 = vpop.f32.mrb[0].mxu0
        %v4646 = vadd.f32 0.0, %v4645
        %v4647 = vpop.f32.mrb[0].mxu0
        %v4648 = vadd.f32 0.0, %v4647
        %v4649 = vpop.f32.mrb[0].mxu0
        %v4650 = vadd.f32 0.0, %v4649
        %v4651 = vpop.f32.mrb[0].mxu0
        %v4652 = vadd.f32 0.0, %v4651
        %4653 = vmatprep.mubr.bf16.mxu0 0
        %4654 = vmatmul.mubr.bf16.gmra.mrb[0].mxu0 %v4571
        %v4655 = vpop.f32.mrb[0].mxu0
        %v4656 = vadd.f32 0.0, %v4655
        %v4657 = vpop.f32.mrb[0].mxu0
        %v4658 = vadd.f32 0.0, %v4657
        %v4659 = vpop.f32.mrb[0].mxu0
        %v4660 = vadd.f32 0.0, %v4659
        %v4661 = vpop.f32.mrb[0].mxu0
        %v4662 = vadd.f32 0.0, %v4661
        %4663 = vmatprep.mubr.bf16.mxu0 0
        %4664 = vmatmul.mubr.bf16.gmra.mrb[0].mxu0 %v4574
        %v4665 = vpop.f32.mrb[0].mxu0
        %v4666 = vadd.f32 0.0, %v4665
        %v4667 = vpop.f32.mrb[0].mxu0
        %v4668 = vadd.f32 0.0, %v4667
        %v4669 = vpop.f32.mrb[0].mxu0
        %v4670 = vadd.f32 0.0, %v4669
        %v4671 = vpop.f32.mrb[0].mxu0
        %v4672 = vadd.f32 0.0, %v4671
        %4673 = vmatprep.mubr.bf16.mxu0 0
        %4674 = vmatmul.mubr.bf16.gmra.mrb[0].mxu0 %v4577
        %v4675 = vpop.f32.mrb[0].mxu0
        %v4676 = vadd.f32 0.0, %v4675
        %v4677 = vpop.f32.mrb[0].mxu0
        %v4678 = vadd.f32 0.0, %v4677
        %v4679 = vpop.f32.mrb[0].mxu0
        %v4680 = vadd.f32 0.0, %v4679
        %v4681 = vpop.f32.mrb[0].mxu0
        %v4682 = vadd.f32 0.0, %v4681
        %4683 = vmatprep.mubr.bf16.mxu0 0
        %4684 = vmatmul.mubr.bf16.gmra.mrb[0].mxu0 %v4580
        %v4685 = vpop.f32.mrb[0].mxu0
        %v4686 = vadd.f32 0.0, %v4685
        %v4687 = vpop.f32.mrb[0].mxu0
        %v4688 = vadd.f32 0.0, %v4687
        %v4689 = vpop.f32.mrb[0].mxu0
        %v4690 = vadd.f32 0.0, %v4689
        %v4691 = vpop.f32.mrb[0].mxu0
        %v4692 = vadd.f32 0.0, %v4691
        %4693 = vmatprep.mubr.bf16.mxu0 0
        %4694 = vmatmul.mubr.bf16.gmra.mrb[0].mxu0 %v4583
        %v4695 = vpop.f32.mrb[0].mxu0
        %v4696 = vadd.f32 0.0, %v4695
        %v4697 = vpop.f32.mrb[0].mxu0
        %v4698 = vadd.f32 0.0, %v4697
        %v4699 = vpop.f32.mrb[0].mxu0
        %v4700 = vadd.f32 0.0, %v4699
        %v4701 = vpop.f32.mrb[0].mxu0
        %v4702 = vadd.f32 0.0, %v4701
        %4703 = vdwg.mxu0
        %v4704 = vadd.f32 %v4445, %v4626
        %v4705 = vadd.f32 %v4446, %v4628
        %v4706 = vadd.f32 %v4447, %v4630
        %v4707 = vadd.f32 %v4448, %v4632
        %v4708 = vadd.f32 %v4449, %v4636
        %v4709 = vadd.f32 %v4450, %v4638
        %v4710 = vadd.f32 %v4451, %v4640
        %v4711 = vadd.f32 %v4452, %v4642
        %v4712 = vadd.f32 %v4453, %v4646
        %v4713 = vadd.f32 %v4454, %v4648
        %v4714 = vadd.f32 %v4455, %v4650
        %v4715 = vadd.f32 %v4456, %v4652
        %v4716 = vadd.f32 %v4457, %v4656
        %v4717 = vadd.f32 %v4458, %v4658
        %v4718 = vadd.f32 %v4459, %v4660
        %v4719 = vadd.f32 %v4460, %v4662
        %v4720 = vadd.f32 %v4461, %v4666
        %v4721 = vadd.f32 %v4462, %v4668
        %v4722 = vadd.f32 %v4463, %v4670
        %v4723 = vadd.f32 %v4464, %v4672
        %v4724 = vadd.f32 %v4465, %v4676
        %v4725 = vadd.f32 %v4466, %v4678
        %v4726 = vadd.f32 %v4467, %v4680
        %v4727 = vadd.f32 %v4468, %v4682
        %v4728 = vadd.f32 %v4469, %v4686
        %v4729 = vadd.f32 %v4470, %v4688
        %v4730 = vadd.f32 %v4471, %v4690
        %v4731 = vadd.f32 %v4472, %v4692
        %v4732 = vadd.f32 %v4473, %v4696
        %v4733 = vadd.f32 %v4474, %v4698
        %v4734 = vadd.f32 %v4475, %v4700
        %v4735 = vadd.f32 %v4476, %v4702
        %v4736 = vld [vmem:[%s6] sm:$0x3]
        %v4738 = vlaneseq
        %v4739 = vshrl.u32 %v4738, 7
        %v4740 = vsub.s32 0, %v4739
        %v4741 = vrot.slane %v4736, %v4740
        %v4742 = vlaneseq
        %v4743 = vshrl.u32 %v4742, 7
        %v4744 = vsub.s32 1, %v4743
        %v4745 = vrot.slane %v4736, %v4744
        %v4748 = vadd.f32 %v4704, %v4741
        %v4749 = vadd.f32 %v4705, %v4745
        %v4750 = vadd.f32 %v4706, %v4741
        %v4751 = vadd.f32 %v4707, %v4745
        %v4752 = vadd.f32 %v4708, %v4741
        %v4753 = vadd.f32 %v4709, %v4745
        %v4754 = vadd.f32 %v4710, %v4741
        %v4755 = vadd.f32 %v4711, %v4745
        %v4756 = vadd.f32 %v4712, %v4741
        %v4757 = vadd.f32 %v4713, %v4745
        %v4758 = vadd.f32 %v4714, %v4741
        %v4759 = vadd.f32 %v4715, %v4745
        %v4760 = vadd.f32 %v4716, %v4741
        %v4761 = vadd.f32 %v4717, %v4745
        %v4762 = vadd.f32 %v4718, %v4741
        %v4763 = vadd.f32 %v4719, %v4745
        %v4764 = vadd.f32 %v4720, %v4741
        %v4765 = vadd.f32 %v4721, %v4745
        %v4766 = vadd.f32 %v4722, %v4741
        %v4767 = vadd.f32 %v4723, %v4745
        %v4768 = vadd.f32 %v4724, %v4741
        %v4769 = vadd.f32 %v4725, %v4745
        %v4770 = vadd.f32 %v4726, %v4741
        %v4771 = vadd.f32 %v4727, %v4745
        %v4772 = vadd.f32 %v4728, %v4741
        %v4773 = vadd.f32 %v4729, %v4745
        %v4774 = vadd.f32 %v4730, %v4741
        %v4775 = vadd.f32 %v4731, %v4745
        %v4776 = vadd.f32 %v4732, %v4741
        %v4777 = vadd.f32 %v4733, %v4745
        %v4778 = vadd.f32 %v4734, %v4741
        %v4779 = vadd.f32 %v4735, %v4745
        %v4780 = vmax.f32 %v4748, 0.0
        %v4781 = vmax.f32 %v4749, 0.0
        %v4782 = vmax.f32 %v4750, 0.0
        %v4783 = vmax.f32 %v4751, 0.0
        %v4784 = vmax.f32 %v4752, 0.0
        %v4785 = vmax.f32 %v4753, 0.0
        %v4786 = vmax.f32 %v4754, 0.0
        %v4787 = vmax.f32 %v4755, 0.0
        %v4788 = vmax.f32 %v4756, 0.0
        %v4789 = vmax.f32 %v4757, 0.0
        %v4790 = vmax.f32 %v4758, 0.0
        %v4791 = vmax.f32 %v4759, 0.0
        %v4792 = vmax.f32 %v4760, 0.0
        %v4793 = vmax.f32 %v4761, 0.0
        %v4794 = vmax.f32 %v4762, 0.0
        %v4795 = vmax.f32 %v4763, 0.0
        %v4796 = vmax.f32 %v4764, 0.0
        %v4797 = vmax.f32 %v4765, 0.0
        %v4798 = vmax.f32 %v4766, 0.0
        %v4799 = vmax.f32 %v4767, 0.0
        %v4800 = vmax.f32 %v4768, 0.0
        %v4801 = vmax.f32 %v4769, 0.0
        %v4802 = vmax.f32 %v4770, 0.0
        %v4803 = vmax.f32 %v4771, 0.0
        %v4804 = vmax.f32 %v4772, 0.0
        %v4805 = vmax.f32 %v4773, 0.0
        %v4806 = vmax.f32 %v4774, 0.0
        %v4807 = vmax.f32 %v4775, 0.0
        %v4808 = vmax.f32 %v4776, 0.0
        %v4809 = vmax.f32 %v4777, 0.0
        %v4810 = vmax.f32 %v4778, 0.0
        %v4811 = vmax.f32 %v4779, 0.0
        %v4812 = vpack.c.bf16 %v4782, %v4780
        %v4813 = vpack.c.bf16 %v4783, %v4781
        %v4814 = vpack.c.bf16 %v4786, %v4784
        %v4815 = vpack.c.bf16 %v4787, %v4785
        %v4816 = vpack.c.bf16 %v4790, %v4788
        %v4817 = vpack.c.bf16 %v4791, %v4789
        %v4818 = vpack.c.bf16 %v4794, %v4792
        %v4819 = vpack.c.bf16 %v4795, %v4793
        %v4820 = vpack.c.bf16 %v4798, %v4796
        %v4821 = vpack.c.bf16 %v4799, %v4797
        %v4822 = vpack.c.bf16 %v4802, %v4800
        %v4823 = vpack.c.bf16 %v4803, %v4801
        %v4824 = vpack.c.bf16 %v4806, %v4804
        %v4825 = vpack.c.bf16 %v4807, %v4805
        %v4826 = vpack.c.bf16 %v4810, %v4808
        %v4827 = vpack.c.bf16 %v4811, %v4809
        %v4828 = vld [vmem:[%s7] sm:$0xf]
        %v4829 = vld [vmem:[%s7 + $0x4] sm:$0xf]
        %v4830 = vld [vmem:[%s7 + $0x8] sm:$0xf]
        %v4831 = vld [vmem:[%s7 + $0xc] sm:$0xf]
        %v4832 = vld [vmem:[%s7 + $0x10] sm:$0xf]
        %v4833 = vld [vmem:[%s7 + $0x14] sm:$0xf]
        %v4834 = vld [vmem:[%s7 + $0x18] sm:$0xf]
        %v4835 = vld [vmem:[%s7 + $0x1c] sm:$0xf]
        %v4836 = vld [vmem:[%s7 + $0x20] sm:$0xf]
        %v4837 = vld [vmem:[%s7 + $0x24] sm:$0xf]
        %v4838 = vld [vmem:[%s7 + $0x28] sm:$0xf]
        %v4839 = vld [vmem:[%s7 + $0x2c] sm:$0xf]
        %v4840 = vld [vmem:[%s7 + $0x30] sm:$0xf]
        %v4841 = vld [vmem:[%s7 + $0x34] sm:$0xf]
        %v4842 = vld [vmem:[%s7 + $0x38] sm:$0xf]
        %v4843 = vld [vmem:[%s7 + $0x3c] sm:$0xf]
        %v4844 = vld [vmem:[%s7 + $0x40] sm:$0xf]
        %v4845 = vld [vmem:[%s7 + $0x44] sm:$0xf]
        %v4846 = vld [vmem:[%s7 + $0x48] sm:$0xf]
        %v4847 = vld [vmem:[%s7 + $0x4c] sm:$0xf]
        %v4868 = vunpack.c.l.b16 %v4828
        %v4869 = vunpack.c.l.b16 %v4829
        %v4870 = vunpack.c.l.b16 %v4830
        %v4871 = vunpack.c.l.b16 %v4831
        %v4872 = vunpack.c.l.b16 %v4832
        %v4873 = vunpack.c.l.b16 %v4833
        %v4874 = vunpack.c.l.b16 %v4834
        %v4875 = vunpack.c.l.b16 %v4835
        %v4876 = vunpack.c.l.b16 %v4836
        %v4877 = vunpack.c.l.b16 %v4837
        %v4878 = vunpack.c.l.b16 %v4838
        %v4879 = vunpack.c.l.b16 %v4839
        %v4880 = vunpack.c.l.b16 %v4840
        %v4881 = vunpack.c.l.b16 %v4841
        %v4882 = vunpack.c.l.b16 %v4842
        %v4883 = vunpack.c.l.b16 %v4843
        %v4884 = vunpack.c.l.b16 %v4844
        %v4885 = vunpack.c.l.b16 %v4845
        %v4886 = vunpack.c.l.b16 %v4846
        %v4887 = vunpack.c.l.b16 %v4847
        %v4888 = vpack.c.b16 %v4869, %v4868
        %v4889 = vpack.c.b16 %v4871, %v4870
        %v4890 = vpack.c.b16 %v4873, %v4872
        %v4891 = vpack.c.b16 %v4875, %v4874
        %v4892 = vpack.c.b16 %v4877, %v4876
        %v4893 = vpack.c.b16 %v4879, %v4878
        %v4894 = vpack.c.b16 %v4881, %v4880
        %v4895 = vpack.c.b16 %v4883, %v4882
        %v4896 = vpack.c.b16 %v4885, %v4884
        %v4897 = vpack.c.b16 %v4887, %v4886
        %vm4908 = vcmask 261120
        %v4910 = vsel %vm4908, %v4813, 0
        %v4913 = vsel %vm4908, %v4815, 0
        %v4916 = vsel %vm4908, %v4817, 0
        %v4919 = vsel %vm4908, %v4819, 0
        %v4922 = vsel %vm4908, %v4821, 0
        %v4925 = vsel %vm4908, %v4823, 0
        %v4928 = vsel %vm4908, %v4825, 0
        %v4931 = vsel %vm4908, %v4827, 0
        %4933 = vmatprep.subr.bf16.mxu0 0
        %4934 = vmatpush1.bf16.msra.mxu0 %v4888
        %4935 = vmatprep.subr.bf16.mxu0 0
        %4936 = vmatpush1.bf16.msra.mxu0 %v4889
        %4937 = vmatprep.subr.bf16.mxu0 0
        %4938 = vmatpush1.bf16.msra.mxu0 %v4890
        %4939 = vmatprep.subr.bf16.mxu0 0
        %4940 = vmatpush1.bf16.msra.mxu0 %v4891
        %4941 = vmatprep.subr.bf16.mxu0 0
        %4942 = vmatpush1.bf16.msra.mxu0 %v4892
        %4943 = vmatprep.subr.bf16.mxu0 0
        %4944 = vmatpush1.bf16.msra.mxu0 %v4893
        %4945 = vmatprep.subr.bf16.mxu0 0
        %4946 = vmatpush1.bf16.msra.mxu0 %v4894
        %4947 = vmatprep.subr.bf16.mxu0 0
        %4948 = vmatpush1.bf16.msra.mxu0 %v4895
        %4949 = vmatprep.subr.bf16.mxu0 0
        %4950 = vmatpush1.bf16.msra.mxu0 %v4896
        %4951 = vmatprep.subr.bf16.mxu0 0
        %4952 = vmatpush1.bf16.msra.mxu0 %v4897
        %4953 = vmatprep.subr.bf16.mxu0 0
        %4954 = vmatpush1.bf16.msra.mxu0 0
        %4955 = vmatprep.subr.bf16.mxu0 0
        %4956 = vmatpush1.bf16.msra.mxu0 0
        %4957 = vmatprep.subr.bf16.mxu0 0
        %4958 = vmatpush1.bf16.msra.mxu0 0
        %4959 = vmatprep.subr.bf16.mxu0 0
        %4960 = vmatpush1.bf16.msra.mxu0 0
        %4961 = vmatprep.subr.bf16.mxu0 0
        %4962 = vmatpush1.bf16.msra.mxu0 0
        %4963 = vmatprep.subr.bf16.mxu0 0
        %4964 = vmatpush1.bf16.msra.mxu0 0
        %4965 = vmatprep.mubr.bf16.mxu0 %v4910
        %4966 = vmatmul.mubr.bf16.gmra.mrb[0].mxu0 %v4812
        %v4967 = vpop.f32.mrb[0].mxu0
        %v4968 = vadd.f32 0.0, %v4967
        %v4969 = vpop.f32.mrb[0].mxu0
        %v4970 = vpop.f32.mrb[0].mxu0
        %v4971 = vadd.f32 0.0, %v4970
        %v4972 = vpop.f32.mrb[0].mxu0
        %4973 = vmatprep.mubr.bf16.mxu0 %v4913
        %4974 = vmatmul.mubr.bf16.gmra.mrb[0].mxu0 %v4814
        %v4975 = vpop.f32.mrb[0].mxu0
        %v4976 = vadd.f32 0.0, %v4975
        %v4977 = vpop.f32.mrb[0].mxu0
        %v4978 = vpop.f32.mrb[0].mxu0
        %v4979 = vadd.f32 0.0, %v4978
        %v4980 = vpop.f32.mrb[0].mxu0
        %4981 = vmatprep.mubr.bf16.mxu0 %v4916
        %4982 = vmatmul.mubr.bf16.gmra.mrb[0].mxu0 %v4816
        %v4983 = vpop.f32.mrb[0].mxu0
        %v4984 = vadd.f32 0.0, %v4983
        %v4985 = vpop.f32.mrb[0].mxu0
        %v4986 = vpop.f32.mrb[0].mxu0
        %v4987 = vadd.f32 0.0, %v4986
        %v4988 = vpop.f32.mrb[0].mxu0
        %4989 = vmatprep.mubr.bf16.mxu0 %v4919
        %4990 = vmatmul.mubr.bf16.gmra.mrb[0].mxu0 %v4818
        %v4991 = vpop.f32.mrb[0].mxu0
        %v4992 = vadd.f32 0.0, %v4991
        %v4993 = vpop.f32.mrb[0].mxu0
        %v4994 = vpop.f32.mrb[0].mxu0
        %v4995 = vadd.f32 0.0, %v4994
        %v4996 = vpop.f32.mrb[0].mxu0
        %4997 = vmatprep.mubr.bf16.mxu0 %v4922
        %4998 = vmatmul.mubr.bf16.gmra.mrb[0].mxu0 %v4820
        %v4999 = vpop.f32.mrb[0].mxu0
        %v5000 = vadd.f32 0.0, %v4999
        %v5001 = vpop.f32.mrb[0].mxu0
        %v5002 = vpop.f32.mrb[0].mxu0
        %v5003 = vadd.f32 0.0, %v5002
        %v5004 = vpop.f32.mrb[0].mxu0
        %5005 = vmatprep.mubr.bf16.mxu0 %v4925
        %5006 = vmatmul.mubr.bf16.gmra.mrb[0].mxu0 %v4822
        %v5007 = vpop.f32.mrb[0].mxu0
        %v5008 = vadd.f32 0.0, %v5007
        %v5009 = vpop.f32.mrb[0].mxu0
        %v5010 = vpop.f32.mrb[0].mxu0
        %v5011 = vadd.f32 0.0, %v5010
        %v5012 = vpop.f32.mrb[0].mxu0
        %5013 = vmatprep.mubr.bf16.mxu0 %v4928
        %5014 = vmatmul.mubr.bf16.gmra.mrb[0].mxu0 %v4824
        %v5015 = vpop.f32.mrb[0].mxu0
        %v5016 = vadd.f32 0.0, %v5015
        %v5017 = vpop.f32.mrb[0].mxu0
        %v5018 = vpop.f32.mrb[0].mxu0
        %v5019 = vadd.f32 0.0, %v5018
        %v5020 = vpop.f32.mrb[0].mxu0
        %5021 = vmatprep.mubr.bf16.mxu0 %v4931
        %5022 = vmatmul.mubr.bf16.gmra.mrb[0].mxu0 %v4826
        %v5023 = vpop.f32.mrb[0].mxu0
        %v5024 = vadd.f32 0.0, %v5023
        %v5025 = vpop.f32.mrb[0].mxu0
        %v5026 = vpop.f32.mrb[0].mxu0
        %v5027 = vadd.f32 0.0, %v5026
        %v5028 = vpop.f32.mrb[0].mxu0
        %5029 = vdwg.mxu0
        %v5030 = vld [vmem:[%s8] sm:$0xf]
        %v5031 = vld [vmem:[%s8 + $0x4] sm:$0xf]
        %v5032 = vld [vmem:[%s8 + $0x8] sm:$0xf]
        %v5033 = vld [vmem:[%s8 + $0xc] sm:$0xf]
        %v5034 = vld [vmem:[%s8 + $0x10] sm:$0xf]
        %v5035 = vld [vmem:[%s8 + $0x14] sm:$0xf]
        %v5036 = vld [vmem:[%s8 + $0x18] sm:$0xf]
        %v5037 = vld [vmem:[%s8 + $0x1c] sm:$0xf]
        %v5038 = vld [vmem:[%s8 + $0x20] sm:$0xf]
        %v5039 = vld [vmem:[%s8 + $0x24] sm:$0xf]
        %v5040 = vld [vmem:[%s8 + $0x28] sm:$0xf]
        %v5041 = vld [vmem:[%s8 + $0x2c] sm:$0xf]
        %v5042 = vld [vmem:[%s8 + $0x30] sm:$0xf]
        %v5043 = vld [vmem:[%s8 + $0x34] sm:$0xf]
        %v5044 = vld [vmem:[%s8 + $0x38] sm:$0xf]
        %v5045 = vld [vmem:[%s8 + $0x3c] sm:$0xf]
        %v5046 = vld [vmem:[%s8 + $0x40] sm:$0xf]
        %v5047 = vld [vmem:[%s8 + $0x44] sm:$0xf]
        %v5048 = vld [vmem:[%s8 + $0x48] sm:$0xf]
        %v5049 = vld [vmem:[%s8 + $0x4c] sm:$0xf]
        %v5070 = vunpack.c.l.b16 %v5030
        %v5071 = vunpack.c.l.b16 %v5031
        %v5072 = vunpack.c.l.b16 %v5032
        %v5073 = vunpack.c.l.b16 %v5033
        %v5074 = vunpack.c.l.b16 %v5034
        %v5075 = vunpack.c.l.b16 %v5035
        %v5076 = vunpack.c.l.b16 %v5036
        %v5077 = vunpack.c.l.b16 %v5037
        %v5078 = vunpack.c.l.b16 %v5038
        %v5079 = vunpack.c.l.b16 %v5039
        %v5080 = vunpack.c.l.b16 %v5040
        %v5081 = vunpack.c.l.b16 %v5041
        %v5082 = vunpack.c.l.b16 %v5042
        %v5083 = vunpack.c.l.b16 %v5043
        %v5084 = vunpack.c.l.b16 %v5044
        %v5085 = vunpack.c.l.b16 %v5045
        %v5086 = vunpack.c.l.b16 %v5046
        %v5087 = vunpack.c.l.b16 %v5047
        %v5088 = vunpack.c.l.b16 %v5048
        %v5089 = vunpack.c.l.b16 %v5049
        %v5090 = vpack.c.b16 %v5071, %v5070
        %v5091 = vpack.c.b16 %v5073, %v5072
        %v5092 = vpack.c.b16 %v5075, %v5074
        %v5093 = vpack.c.b16 %v5077, %v5076
        %v5094 = vpack.c.b16 %v5079, %v5078
        %v5095 = vpack.c.b16 %v5081, %v5080
        %v5096 = vpack.c.b16 %v5083, %v5082
        %v5097 = vpack.c.b16 %v5085, %v5084
        %v5098 = vpack.c.b16 %v5087, %v5086
        %v5099 = vpack.c.b16 %v5089, %v5088
        %5110 = vmatprep.subr.bf16.mxu0 0
        %5111 = vmatpush1.bf16.msra.mxu0 %v5090
        %5112 = vmatprep.subr.bf16.mxu0 0
        %5113 = vmatpush1.bf16.msra.mxu0 %v5091
        %5114 = vmatprep.subr.bf16.mxu0 0
        %5115 = vmatpush1.bf16.msra.mxu0 %v5092
        %5116 = vmatprep.subr.bf16.mxu0 0
        %5117 = vmatpush1.bf16.msra.mxu0 %v5093
        %5118 = vmatprep.subr.bf16.mxu0 0
        %5119 = vmatpush1.bf16.msra.mxu0 %v5094
        %5120 = vmatprep.subr.bf16.mxu0 0
        %5121 = vmatpush1.bf16.msra.mxu0 %v5095
        %5122 = vmatprep.subr.bf16.mxu0 0
        %5123 = vmatpush1.bf16.msra.mxu0 %v5096
        %5124 = vmatprep.subr.bf16.mxu0 0
        %5125 = vmatpush1.bf16.msra.mxu0 %v5097
        %5126 = vmatprep.subr.bf16.mxu0 0
        %5127 = vmatpush1.bf16.msra.mxu0 %v5098
        %5128 = vmatprep.subr.bf16.mxu0 0
        %5129 = vmatpush1.bf16.msra.mxu0 %v5099
        %5130 = vmatprep.subr.bf16.mxu0 0
        %5131 = vmatpush1.bf16.msra.mxu0 0
        %5132 = vmatprep.subr.bf16.mxu0 0
        %5133 = vmatpush1.bf16.msra.mxu0 0
        %5134 = vmatprep.subr.bf16.mxu0 0
        %5135 = vmatpush1.bf16.msra.mxu0 0
        %5136 = vmatprep.subr.bf16.mxu0 0
        %5137 = vmatpush1.bf16.msra.mxu0 0
        %5138 = vmatprep.subr.bf16.mxu0 0
        %5139 = vmatpush1.bf16.msra.mxu0 0
        %5140 = vmatprep.subr.bf16.mxu0 0
        %5141 = vmatpush1.bf16.msra.mxu0 0
        %5142 = vmatprep.mubr.bf16.mxu0 %v4910
        %5143 = vmatmul.mubr.bf16.gmra.mrb[0].mxu0 %v4812
        %v5144 = vpop.f32.mrb[0].mxu0
        %v5145 = vadd.f32 0.0, %v5144
        %v5146 = vpop.f32.mrb[0].mxu0
        %v5147 = vpop.f32.mrb[0].mxu0
        %v5148 = vadd.f32 0.0, %v5147
        %v5149 = vpop.f32.mrb[0].mxu0
        %5150 = vmatprep.mubr.bf16.mxu0 %v4913
        %5151 = vmatmul.mubr.bf16.gmra.mrb[0].mxu0 %v4814
        %v5152 = vpop.f32.mrb[0].mxu0
        %v5153 = vadd.f32 0.0, %v5152
        %v5154 = vpop.f32.mrb[0].mxu0
        %v5155 = vpop.f32.mrb[0].mxu0
        %v5156 = vadd.f32 0.0, %v5155
        %v5157 = vpop.f32.mrb[0].mxu0
        %5158 = vmatprep.mubr.bf16.mxu0 %v4916
        %5159 = vmatmul.mubr.bf16.gmra.mrb[0].mxu0 %v4816
        %v5160 = vpop.f32.mrb[0].mxu0
        %v5161 = vadd.f32 0.0, %v5160
        %v5162 = vpop.f32.mrb[0].mxu0
        %v5163 = vpop.f32.mrb[0].mxu0
        %v5164 = vadd.f32 0.0, %v5163
        %v5165 = vpop.f32.mrb[0].mxu0
        %5166 = vmatprep.mubr.bf16.mxu0 %v4919
        %5167 = vmatmul.mubr.bf16.gmra.mrb[0].mxu0 %v4818
        %v5168 = vpop.f32.mrb[0].mxu0
        %v5169 = vadd.f32 0.0, %v5168
        %v5170 = vpop.f32.mrb[0].mxu0
        %v5171 = vpop.f32.mrb[0].mxu0
        %v5172 = vadd.f32 0.0, %v5171
        %v5173 = vpop.f32.mrb[0].mxu0
        %5174 = vmatprep.mubr.bf16.mxu0 %v4922
        %5175 = vmatmul.mubr.bf16.gmra.mrb[0].mxu0 %v4820
        %v5176 = vpop.f32.mrb[0].mxu0
        %v5177 = vadd.f32 0.0, %v5176
        %v5178 = vpop.f32.mrb[0].mxu0
        %v5179 = vpop.f32.mrb[0].mxu0
        %v5180 = vadd.f32 0.0, %v5179
        %v5181 = vpop.f32.mrb[0].mxu0
        %5182 = vmatprep.mubr.bf16.mxu0 %v4925
        %5183 = vmatmul.mubr.bf16.gmra.mrb[0].mxu0 %v4822
        %v5184 = vpop.f32.mrb[0].mxu0
        %v5185 = vadd.f32 0.0, %v5184
        %v5186 = vpop.f32.mrb[0].mxu0
        %v5187 = vpop.f32.mrb[0].mxu0
        %v5188 = vadd.f32 0.0, %v5187
        %v5189 = vpop.f32.mrb[0].mxu0
        %5190 = vmatprep.mubr.bf16.mxu0 %v4928
        %5191 = vmatmul.mubr.bf16.gmra.mrb[0].mxu0 %v4824
        %v5192 = vpop.f32.mrb[0].mxu0
        %v5193 = vadd.f32 0.0, %v5192
        %v5194 = vpop.f32.mrb[0].mxu0
        %v5195 = vpop.f32.mrb[0].mxu0
        %v5196 = vadd.f32 0.0, %v5195
        %v5197 = vpop.f32.mrb[0].mxu0
        %5198 = vmatprep.mubr.bf16.mxu0 %v4931
        %5199 = vmatmul.mubr.bf16.gmra.mrb[0].mxu0 %v4826
        %v5200 = vpop.f32.mrb[0].mxu0
        %v5201 = vadd.f32 0.0, %v5200
        %v5202 = vpop.f32.mrb[0].mxu0
        %v5203 = vpop.f32.mrb[0].mxu0
        %v5204 = vadd.f32 0.0, %v5203
        %v5205 = vpop.f32.mrb[0].mxu0
        %5206 = vdwg.mxu0
        %v5207 = vmax.f32 %v4968, %v5145
        %v5208 = vmax.f32 %v4971, %v5148
        %v5209 = vmax.f32 %v4976, %v5153
        %v5210 = vmax.f32 %v4979, %v5156
        %v5211 = vmax.f32 %v4984, %v5161
        %v5212 = vmax.f32 %v4987, %v5164
        %v5213 = vmax.f32 %v4992, %v5169
        %v5214 = vmax.f32 %v4995, %v5172
        %v5215 = vmax.f32 %v5000, %v5177
        %v5216 = vmax.f32 %v5003, %v5180
        %v5217 = vmax.f32 %v5008, %v5185
        %v5218 = vmax.f32 %v5011, %v5188
        %v5219 = vmax.f32 %v5016, %v5193
        %v5220 = vmax.f32 %v5019, %v5196
        %v5221 = vmax.f32 %v5024, %v5201
        %v5222 = vmax.f32 %v5027, %v5204
        %vm5223 = vcmask 654336
        %5224 = vst.msk [vmem:[#allocation3] sm:$0xff] %vm5223, %v5207
        %5225 = vst.msk [vmem:[#allocation3 + $0x8] sm:$0xff] %vm5223, %v5208
        %5226 = vst.msk [vmem:[#allocation3 + $0x10] sm:$0xff] %vm5223, %v5209
        %5227 = vst.msk [vmem:[#allocation3 + $0x18] sm:$0xff] %vm5223, %v5210
        %5228 = vst.msk [vmem:[#allocation3 + $0x20] sm:$0xff] %vm5223, %v5211
        %5229 = vst.msk [vmem:[#allocation3 + $0x28] sm:$0xff] %vm5223, %v5212
        %5230 = vst.msk [vmem:[#allocation3 + $0x30] sm:$0xff] %vm5223, %v5213
        %5231 = vst.msk [vmem:[#allocation3 + $0x38] sm:$0xff] %vm5223, %v5214
        %5232 = vst.msk [vmem:[#allocation3 + $0x40] sm:$0xff] %vm5223, %v5215
        %5233 = vst.msk [vmem:[#allocation3 + $0x48] sm:$0xff] %vm5223, %v5216
        %5234 = vst.msk [vmem:[#allocation3 + $0x50] sm:$0xff] %vm5223, %v5217
        %5235 = vst.msk [vmem:[#allocation3 + $0x58] sm:$0xff] %vm5223, %v5218
        %5236 = vst.msk [vmem:[#allocation3 + $0x60] sm:$0xff] %vm5223, %v5219
        %5237 = vst.msk [vmem:[#allocation3 + $0x68] sm:$0xff] %vm5223, %v5220
        %5238 = vst.msk [vmem:[#allocation3 + $0x70] sm:$0xff] %vm5223, %v5221
        %5239 = vst.msk [vmem:[#allocation3 + $0x78] sm:$0xff] %vm5223, %v5222
        %v5240 = vld [vmem:[#allocation3] ss:$16 sm:$0x3]
        %v5241 = vld [vmem:[#allocation3] ss:$16 sm:$0xc]
        %v5242 = vor.u32 %v5240, %v5241
        %v5243 = vld [vmem:[#allocation3] ss:$16 sm:$0x30]
        %v5244 = vor.u32 %v5242, %v5243
        %v5245 = vld [vmem:[#allocation3] ss:$16 sm:$0xc0]
        %v5246 = vor.u32 %v5244, %v5245
        %s5247 = scalar_lea.vmem [#allocation3], 1
        %v5248 = vld [vmem:[%s5247] ss:$16 sm:$0x3]
        %v5249 = vld [vmem:[%s5247] ss:$16 sm:$0xc]
        %v5250 = vor.u32 %v5248, %v5249
        %v5251 = vld [vmem:[%s5247] ss:$16 sm:$0x30]
        %v5252 = vor.u32 %v5250, %v5251
        %v5253 = vld [vmem:[%s5247] ss:$16 sm:$0xc0]
        %v5254 = vor.u32 %v5252, %v5253
        %v5255 = vmax.f32 %v5246, %v5254
        %v5256 = vpack.c.bf16 %v5255, %v5255
        %v5257 = vld [vmem:[%s9] sm:$0xf]
        %v5258 = vld [vmem:[%s9 + $0x4] sm:$0xf]
        %v5259 = vld [vmem:[%s9 + $0x8] sm:$0xf]
        %v5260 = vld [vmem:[%s9 + $0xc] sm:$0xf]
        %v5261 = vld [vmem:[%s9 + $0x10] sm:$0xf]
        %v5262 = vld [vmem:[%s9 + $0x14] sm:$0xf]
        %v5263 = vld [vmem:[%s9 + $0x18] sm:$0xf]
        %v5264 = vld [vmem:[%s9 + $0x1c] sm:$0xf]
        %v5265 = vld [vmem:[%s9 + $0x20] sm:$0xf]
        %v5266 = vld [vmem:[%s9 + $0x24] sm:$0xf]
        %s5267 = scalar_lea.vmem [#allocation3], 2
        %v5268 = vld [vmem:[%s5267] ss:$16 sm:$0x3]
        %v5269 = vld [vmem:[%s5267] ss:$16 sm:$0xc]
        %v5270 = vor.u32 %v5268, %v5269
        %v5271 = vld [vmem:[%s5267] ss:$16 sm:$0x30]
        %v5272 = vor.u32 %v5270, %v5271
        %v5273 = vld [vmem:[%s5267] ss:$16 sm:$0xc0]
        %v5274 = vor.u32 %v5272, %v5273
        %s5275 = scalar_lea.vmem [#allocation3], 3
        %v5276 = vld [vmem:[%s5275] ss:$16 sm:$0x3]
        %v5277 = vld [vmem:[%s5275] ss:$16 sm:$0xc]
        %v5278 = vor.u32 %v5276, %v5277
        %v5279 = vld [vmem:[%s5275] ss:$16 sm:$0x30]
        %v5280 = vor.u32 %v5278, %v5279
        %v5281 = vld [vmem:[%s5275] ss:$16 sm:$0xc0]
        %v5282 = vor.u32 %v5280, %v5281
        %v5283 = vmax.f32 %v5274, %v5282
        %v5284 = vpack.c.bf16 %v5283, %v5283
        %s5285 = scalar_lea.vmem %s9, 40
        %v5286 = vld [vmem:[%s5285] sm:$0xf]
        %v5287 = vld [vmem:[%s5285 + $0x4] sm:$0xf]
        %v5288 = vld [vmem:[%s5285 + $0x8] sm:$0xf]
        %v5289 = vld [vmem:[%s5285 + $0xc] sm:$0xf]
        %v5290 = vld [vmem:[%s5285 + $0x10] sm:$0xf]
        %v5291 = vld [vmem:[%s5285 + $0x14] sm:$0xf]
        %v5292 = vld [vmem:[%s5285 + $0x18] sm:$0xf]
        %v5293 = vld [vmem:[%s5285 + $0x1c] sm:$0xf]
        %v5294 = vld [vmem:[%s5285 + $0x20] sm:$0xf]
        %v5295 = vld [vmem:[%s5285 + $0x24] sm:$0xf]
        %v5306 = vunpack.c.l.b16 %v5286
        %v5307 = vunpack.c.l.b16 %v5287
        %v5308 = vunpack.c.l.b16 %v5288
        %v5309 = vunpack.c.l.b16 %v5289
        %v5310 = vunpack.c.l.b16 %v5290
        %v5311 = vunpack.c.l.b16 %v5291
        %v5312 = vunpack.c.l.b16 %v5292
        %v5313 = vunpack.c.l.b16 %v5293
        %v5314 = vunpack.c.l.b16 %v5294
        %v5315 = vunpack.c.l.b16 %v5295
        %v5316 = vpack.c.b16 %v5307, %v5306
        %v5317 = vpack.c.b16 %v5309, %v5308
        %v5318 = vpack.c.b16 %v5311, %v5310
        %v5319 = vpack.c.b16 %v5313, %v5312
        %v5320 = vpack.c.b16 %v5315, %v5314
        %v5327 = vsel %vm5223, %v5284, 0
        %5329 = vmatprep.subr.bf16.mxu0 0
        %5330 = vmatpush1.bf16.msra.mxu0 %v5316
        %5331 = vmatprep.subr.bf16.mxu0 0
        %5332 = vmatpush1.bf16.msra.mxu0 %v5317
        %5333 = vmatprep.subr.bf16.mxu0 0
        %5334 = vmatpush1.bf16.msra.mxu0 %v5318
        %5335 = vmatprep.subr.bf16.mxu0 0
        %5336 = vmatpush1.bf16.msra.mxu0 %v5319
        %5337 = vmatprep.subr.bf16.mxu0 0
        %5338 = vmatpush1.bf16.msra.mxu0 %v5320
        %5339 = vmatprep.subr.bf16.mxu0 0
        %5340 = vmatpush1.bf16.msra.mxu0 0
        %5341 = vmatprep.subr.bf16.mxu0 0
        %5342 = vmatpush1.bf16.msra.mxu0 0
        %5343 = vmatprep.subr.bf16.mxu0 0
        %5344 = vmatpush1.bf16.msra.mxu0 0
        %5345 = vmatprep.subr.bf16.mxu0 0
        %5346 = vmatpush1.bf16.msra.mxu0 0
        %5347 = vmatprep.subr.bf16.mxu0 0
        %5348 = vmatpush1.bf16.msra.mxu0 0
        %5349 = vmatprep.subr.bf16.mxu0 0
        %5350 = vmatpush1.bf16.msra.mxu0 0
        %5351 = vmatprep.subr.bf16.mxu0 0
        %5352 = vmatpush1.bf16.msra.mxu0 0
        %5353 = vmatprep.subr.bf16.mxu0 0
        %5354 = vmatpush1.bf16.msra.mxu0 0
        %5355 = vmatprep.subr.bf16.mxu0 0
        %5356 = vmatpush1.bf16.msra.mxu0 0
        %5357 = vmatprep.subr.bf16.mxu0 0
        %5358 = vmatpush1.bf16.msra.mxu0 0
        %5359 = vmatprep.subr.bf16.mxu0 0
        %5360 = vmatpush1.bf16.msra.mxu0 0
        %5361 = vmatprep.mubr.bf16.mxu0 0
        %5362 = vmatmul.mubr.bf16.gmra.mrb[0].mxu0 %v5327
        %v5363 = vpop.f32.mrb[0].mxu0
        %v5364 = vadd.f32 0.0, %v5363
        %v5365 = vpop.f32.mrb[0].mxu0
        %v5366 = vpop.f32.mrb[0].mxu0
        %v5367 = vpop.f32.mrb[0].mxu0
        %5368 = vdwg.mxu0
        %v5379 = vunpack.c.l.b16 %v5257
        %v5380 = vunpack.c.l.b16 %v5258
        %v5381 = vunpack.c.l.b16 %v5259
        %v5382 = vunpack.c.l.b16 %v5260
        %v5383 = vunpack.c.l.b16 %v5261
        %v5384 = vunpack.c.l.b16 %v5262
        %v5385 = vunpack.c.l.b16 %v5263
        %v5386 = vunpack.c.l.b16 %v5264
        %v5387 = vunpack.c.l.b16 %v5265
        %v5388 = vunpack.c.l.b16 %v5266
        %v5389 = vpack.c.b16 %v5380, %v5379
        %v5390 = vpack.c.b16 %v5382, %v5381
        %v5391 = vpack.c.b16 %v5384, %v5383
        %v5392 = vpack.c.b16 %v5386, %v5385
        %v5393 = vpack.c.b16 %v5388, %v5387
        %v5400 = vsel %vm5223, %v5256, 0
        %5402 = vmatprep.subr.bf16.mxu0 0
        %5403 = vmatpush1.bf16.msra.mxu0 %v5389
        %5404 = vmatprep.subr.bf16.mxu0 0
        %5405 = vmatpush1.bf16.msra.mxu0 %v5390
        %5406 = vmatprep.subr.bf16.mxu0 0
        %5407 = vmatpush1.bf16.msra.mxu0 %v5391
        %5408 = vmatprep.subr.bf16.mxu0 0
        %5409 = vmatpush1.bf16.msra.mxu0 %v5392
        %5410 = vmatprep.subr.bf16.mxu0 0
        %5411 = vmatpush1.bf16.msra.mxu0 %v5393
        %5412 = vmatprep.subr.bf16.mxu0 0
        %5413 = vmatpush1.bf16.msra.mxu0 0
        %5414 = vmatprep.subr.bf16.mxu0 0
        %5415 = vmatpush1.bf16.msra.mxu0 0
        %5416 = vmatprep.subr.bf16.mxu0 0
        %5417 = vmatpush1.bf16.msra.mxu0 0
        %5418 = vmatprep.subr.bf16.mxu0 0
        %5419 = vmatpush1.bf16.msra.mxu0 0
        %5420 = vmatprep.subr.bf16.mxu0 0
        %5421 = vmatpush1.bf16.msra.mxu0 0
        %5422 = vmatprep.subr.bf16.mxu0 0
        %5423 = vmatpush1.bf16.msra.mxu0 0
        %5424 = vmatprep.subr.bf16.mxu0 0
        %5425 = vmatpush1.bf16.msra.mxu0 0
        %5426 = vmatprep.subr.bf16.mxu0 0
        %5427 = vmatpush1.bf16.msra.mxu0 0
        %5428 = vmatprep.subr.bf16.mxu0 0
        %5429 = vmatpush1.bf16.msra.mxu0 0
        %5430 = vmatprep.subr.bf16.mxu0 0
        %5431 = vmatpush1.bf16.msra.mxu0 0
        %5432 = vmatprep.subr.bf16.mxu0 0
        %5433 = vmatpush1.bf16.msra.mxu0 0
        %5434 = vmatprep.mubr.bf16.mxu0 0
        %5435 = vmatmul.mubr.bf16.gmra.mrb[0].mxu0 %v5400
        %v5436 = vpop.f32.mrb[0].mxu0
        %v5437 = vadd.f32 %v5364, %v5436
        %v5438 = vpop.f32.mrb[0].mxu0
        %v5439 = vpop.f32.mrb[0].mxu0
        %v5440 = vpop.f32.mrb[0].mxu0
        %5441 = vdwg.mxu0
        %s5442 = scalar_lea.vmem [#allocation3], 4
        %v5443 = vld [vmem:[%s5442] ss:$16 sm:$0x3]
        %v5444 = vld [vmem:[%s5442] ss:$16 sm:$0xc]
        %v5445 = vor.u32 %v5443, %v5444
        %v5446 = vld [vmem:[%s5442] ss:$16 sm:$0x30]
        %v5447 = vor.u32 %v5445, %v5446
        %v5448 = vld [vmem:[%s5442] ss:$16 sm:$0xc0]
        %v5449 = vor.u32 %v5447, %v5448
        %s5450 = scalar_lea.vmem [#allocation3], 5
        %v5451 = vld [vmem:[%s5450] ss:$16 sm:$0x3]
        %v5452 = vld [vmem:[%s5450] ss:$16 sm:$0xc]
        %v5453 = vor.u32 %v5451, %v5452
        %v5454 = vld [vmem:[%s5450] ss:$16 sm:$0x30]
        %v5455 = vor.u32 %v5453, %v5454
        %v5456 = vld [vmem:[%s5450] ss:$16 sm:$0xc0]
        %v5457 = vor.u32 %v5455, %v5456
        %v5458 = vmax.f32 %v5449, %v5457
        %v5459 = vpack.c.bf16 %v5458, %v5458
        %s5460 = scalar_lea.vmem %s9, 80
        %v5461 = vld [vmem:[%s5460] sm:$0xf]
        %v5462 = vld [vmem:[%s5460 + $0x4] sm:$0xf]
        %v5463 = vld [vmem:[%s5460 + $0x8] sm:$0xf]
        %v5464 = vld [vmem:[%s5460 + $0xc] sm:$0xf]
        %v5465 = vld [vmem:[%s5460 + $0x10] sm:$0xf]
        %v5466 = vld [vmem:[%s5460 + $0x14] sm:$0xf]
        %v5467 = vld [vmem:[%s5460 + $0x18] sm:$0xf]
        %v5468 = vld [vmem:[%s5460 + $0x1c] sm:$0xf]
        %v5469 = vld [vmem:[%s5460 + $0x20] sm:$0xf]
        %v5470 = vld [vmem:[%s5460 + $0x24] sm:$0xf]
        %v5481 = vunpack.c.l.b16 %v5461
        %v5482 = vunpack.c.l.b16 %v5462
        %v5483 = vunpack.c.l.b16 %v5463
        %v5484 = vunpack.c.l.b16 %v5464
        %v5485 = vunpack.c.l.b16 %v5465
        %v5486 = vunpack.c.l.b16 %v5466
        %v5487 = vunpack.c.l.b16 %v5467
        %v5488 = vunpack.c.l.b16 %v5468
        %v5489 = vunpack.c.l.b16 %v5469
        %v5490 = vunpack.c.l.b16 %v5470
        %v5491 = vpack.c.b16 %v5482, %v5481
        %v5492 = vpack.c.b16 %v5484, %v5483
        %v5493 = vpack.c.b16 %v5486, %v5485
        %v5494 = vpack.c.b16 %v5488, %v5487
        %v5495 = vpack.c.b16 %v5490, %v5489
        %v5502 = vsel %vm5223, %v5459, 0
        %5504 = vmatprep.subr.bf16.mxu0 0
        %5505 = vmatpush1.bf16.msra.mxu0 %v5491
        %5506 = vmatprep.subr.bf16.mxu0 0
        %5507 = vmatpush1.bf16.msra.mxu0 %v5492
        %5508 = vmatprep.subr.bf16.mxu0 0
        %5509 = vmatpush1.bf16.msra.mxu0 %v5493
        %5510 = vmatprep.subr.bf16.mxu0 0
        %5511 = vmatpush1.bf16.msra.mxu0 %v5494
        %5512 = vmatprep.subr.bf16.mxu0 0
        %5513 = vmatpush1.bf16.msra.mxu0 %v5495
        %5514 = vmatprep.subr.bf16.mxu0 0
        %5515 = vmatpush1.bf16.msra.mxu0 0
        %5516 = vmatprep.subr.bf16.mxu0 0
        %5517 = vmatpush1.bf16.msra.mxu0 0
        %5518 = vmatprep.subr.bf16.mxu0 0
        %5519 = vmatpush1.bf16.msra.mxu0 0
        %5520 = vmatprep.subr.bf16.mxu0 0
        %5521 = vmatpush1.bf16.msra.mxu0 0
        %5522 = vmatprep.subr.bf16.mxu0 0
        %5523 = vmatpush1.bf16.msra.mxu0 0
        %5524 = vmatprep.subr.bf16.mxu0 0
        %5525 = vmatpush1.bf16.msra.mxu0 0
        %5526 = vmatprep.subr.bf16.mxu0 0
        %5527 = vmatpush1.bf16.msra.mxu0 0
        %5528 = vmatprep.subr.bf16.mxu0 0
        %5529 = vmatpush1.bf16.msra.mxu0 0
        %5530 = vmatprep.subr.bf16.mxu0 0
        %5531 = vmatpush1.bf16.msra.mxu0 0
        %5532 = vmatprep.subr.bf16.mxu0 0
        %5533 = vmatpush1.bf16.msra.mxu0 0
        %5534 = vmatprep.subr.bf16.mxu0 0
        %5535 = vmatpush1.bf16.msra.mxu0 0
        %5536 = vmatprep.mubr.bf16.mxu0 0
        %5537 = vmatmul.mubr.bf16.gmra.mrb[0].mxu0 %v5502
        %v5538 = vpop.f32.mrb[0].mxu0
        %v5539 = vadd.f32 0.0, %v5538
        %v5540 = vpop.f32.mrb[0].mxu0
        %v5541 = vpop.f32.mrb[0].mxu0
        %v5542 = vpop.f32.mrb[0].mxu0
        %5543 = vdwg.mxu0
        %v5544 = vadd.f32 %v5437, %v5539
        %s5545 = scalar_lea.vmem [#allocation3], 6
        %v5546 = vld [vmem:[%s5545] ss:$16 sm:$0x3]
        %v5547 = vld [vmem:[%s5545] ss:$16 sm:$0xc]
        %v5548 = vor.u32 %v5546, %v5547
        %v5549 = vld [vmem:[%s5545] ss:$16 sm:$0x30]
        %v5550 = vor.u32 %v5548, %v5549
        %v5551 = vld [vmem:[%s5545] ss:$16 sm:$0xc0]
        %v5552 = vor.u32 %v5550, %v5551
        %s5553 = scalar_lea.vmem [#allocation3], 7
        %v5554 = vld [vmem:[%s5553] ss:$16 sm:$0x3]
        %v5555 = vld [vmem:[%s5553] ss:$16 sm:$0xc]
        %v5556 = vor.u32 %v5554, %v5555
        %v5557 = vld [vmem:[%s5553] ss:$16 sm:$0x30]
        %v5558 = vor.u32 %v5556, %v5557
        %v5559 = vld [vmem:[%s5553] ss:$16 sm:$0xc0]
        %v5560 = vor.u32 %v5558, %v5559
        %v5561 = vmax.f32 %v5552, %v5560
        %v5562 = vpack.c.bf16 %v5561, %v5561
        %s5563 = scalar_lea.vmem %s9, 120
        %v5564 = vld [vmem:[%s5563] sm:$0xf]
        %v5565 = vld [vmem:[%s5563 + $0x4] sm:$0xf]
        %v5566 = vld [vmem:[%s5563 + $0x8] sm:$0xf]
        %v5567 = vld [vmem:[%s5563 + $0xc] sm:$0xf]
        %v5568 = vld [vmem:[%s5563 + $0x10] sm:$0xf]
        %v5569 = vld [vmem:[%s5563 + $0x14] sm:$0xf]
        %v5570 = vld [vmem:[%s5563 + $0x18] sm:$0xf]
        %v5571 = vld [vmem:[%s5563 + $0x1c] sm:$0xf]
        %v5572 = vld [vmem:[%s5563 + $0x20] sm:$0xf]
        %v5573 = vld [vmem:[%s5563 + $0x24] sm:$0xf]
        %v5584 = vunpack.c.l.b16 %v5564
        %v5585 = vunpack.c.l.b16 %v5565
        %v5586 = vunpack.c.l.b16 %v5566
        %v5587 = vunpack.c.l.b16 %v5567
        %v5588 = vunpack.c.l.b16 %v5568
        %v5589 = vunpack.c.l.b16 %v5569
        %v5590 = vunpack.c.l.b16 %v5570
        %v5591 = vunpack.c.l.b16 %v5571
        %v5592 = vunpack.c.l.b16 %v5572
        %v5593 = vunpack.c.l.b16 %v5573
        %v5594 = vpack.c.b16 %v5585, %v5584
        %v5595 = vpack.c.b16 %v5587, %v5586
        %v5596 = vpack.c.b16 %v5589, %v5588
        %v5597 = vpack.c.b16 %v5591, %v5590
        %v5598 = vpack.c.b16 %v5593, %v5592
        %v5605 = vsel %vm5223, %v5562, 0
        %5607 = vmatprep.subr.bf16.mxu0 0
        %5608 = vmatpush1.bf16.msra.mxu0 %v5594
        %5609 = vmatprep.subr.bf16.mxu0 0
        %5610 = vmatpush1.bf16.msra.mxu0 %v5595
        %5611 = vmatprep.subr.bf16.mxu0 0
        %5612 = vmatpush1.bf16.msra.mxu0 %v5596
        %5613 = vmatprep.subr.bf16.mxu0 0
        %5614 = vmatpush1.bf16.msra.mxu0 %v5597
        %5615 = vmatprep.subr.bf16.mxu0 0
        %5616 = vmatpush1.bf16.msra.mxu0 %v5598
        %5617 = vmatprep.subr.bf16.mxu0 0
        %5618 = vmatpush1.bf16.msra.mxu0 0
        %5619 = vmatprep.subr.bf16.mxu0 0
        %5620 = vmatpush1.bf16.msra.mxu0 0
        %5621 = vmatprep.subr.bf16.mxu0 0
        %5622 = vmatpush1.bf16.msra.mxu0 0
        %5623 = vmatprep.subr.bf16.mxu0 0
        %5624 = vmatpush1.bf16.msra.mxu0 0
        %5625 = vmatprep.subr.bf16.mxu0 0
        %5626 = vmatpush1.bf16.msra.mxu0 0
        %5627 = vmatprep.subr.bf16.mxu0 0
        %5628 = vmatpush1.bf16.msra.mxu0 0
        %5629 = vmatprep.subr.bf16.mxu0 0
        %5630 = vmatpush1.bf16.msra.mxu0 0
        %5631 = vmatprep.subr.bf16.mxu0 0
        %5632 = vmatpush1.bf16.msra.mxu0 0
        %5633 = vmatprep.subr.bf16.mxu0 0
        %5634 = vmatpush1.bf16.msra.mxu0 0
        %5635 = vmatprep.subr.bf16.mxu0 0
        %5636 = vmatpush1.bf16.msra.mxu0 0
        %5637 = vmatprep.subr.bf16.mxu0 0
        %5638 = vmatpush1.bf16.msra.mxu0 0
        %5639 = vmatprep.mubr.bf16.mxu0 0
        %5640 = vmatmul.mubr.bf16.gmra.mrb[0].mxu0 %v5605
        %v5641 = vpop.f32.mrb[0].mxu0
        %v5642 = vadd.f32 0.0, %v5641
        %v5643 = vpop.f32.mrb[0].mxu0
        %v5644 = vpop.f32.mrb[0].mxu0
        %v5645 = vpop.f32.mrb[0].mxu0
        %5646 = vdwg.mxu0
        %v5647 = vadd.f32 %v5544, %v5642
        %s5648 = scalar_lea.vmem [#allocation3], 8
        %v5649 = vld [vmem:[%s5648] ss:$16 sm:$0x3]
        %v5650 = vld [vmem:[%s5648] ss:$16 sm:$0xc]
        %v5651 = vor.u32 %v5649, %v5650
        %v5652 = vld [vmem:[%s5648] ss:$16 sm:$0x30]
        %v5653 = vor.u32 %v5651, %v5652
        %v5654 = vld [vmem:[%s5648] ss:$16 sm:$0xc0]
        %v5655 = vor.u32 %v5653, %v5654
        %s5656 = scalar_lea.vmem [#allocation3], 9
        %v5657 = vld [vmem:[%s5656] ss:$16 sm:$0x3]
        %v5658 = vld [vmem:[%s5656] ss:$16 sm:$0xc]
        %v5659 = vor.u32 %v5657, %v5658
        %v5660 = vld [vmem:[%s5656] ss:$16 sm:$0x30]
        %v5661 = vor.u32 %v5659, %v5660
        %v5662 = vld [vmem:[%s5656] ss:$16 sm:$0xc0]
        %v5663 = vor.u32 %v5661, %v5662
        %v5664 = vmax.f32 %v5655, %v5663
        %v5665 = vpack.c.bf16 %v5664, %v5664
        %s5666 = scalar_lea.vmem %s9, 160
        %v5667 = vld [vmem:[%s5666] sm:$0xf]
        %v5668 = vld [vmem:[%s5666 + $0x4] sm:$0xf]
        %v5669 = vld [vmem:[%s5666 + $0x8] sm:$0xf]
        %v5670 = vld [vmem:[%s5666 + $0xc] sm:$0xf]
        %v5671 = vld [vmem:[%s5666 + $0x10] sm:$0xf]
        %v5672 = vld [vmem:[%s5666 + $0x14] sm:$0xf]
        %v5673 = vld [vmem:[%s5666 + $0x18] sm:$0xf]
        %v5674 = vld [vmem:[%s5666 + $0x1c] sm:$0xf]
        %v5675 = vld [vmem:[%s5666 + $0x20] sm:$0xf]
        %v5676 = vld [vmem:[%s5666 + $0x24] sm:$0xf]
        %v5687 = vunpack.c.l.b16 %v5667
        %v5688 = vunpack.c.l.b16 %v5668
        %v5689 = vunpack.c.l.b16 %v5669
        %v5690 = vunpack.c.l.b16 %v5670
        %v5691 = vunpack.c.l.b16 %v5671
        %v5692 = vunpack.c.l.b16 %v5672
        %v5693 = vunpack.c.l.b16 %v5673
        %v5694 = vunpack.c.l.b16 %v5674
        %v5695 = vunpack.c.l.b16 %v5675
        %v5696 = vunpack.c.l.b16 %v5676
        %v5697 = vpack.c.b16 %v5688, %v5687
        %v5698 = vpack.c.b16 %v5690, %v5689
        %v5699 = vpack.c.b16 %v5692, %v5691
        %v5700 = vpack.c.b16 %v5694, %v5693
        %v5701 = vpack.c.b16 %v5696, %v5695
        %v5708 = vsel %vm5223, %v5665, 0
        %5710 = vmatprep.subr.bf16.mxu0 0
        %5711 = vmatpush1.bf16.msra.mxu0 %v5697
        %5712 = vmatprep.subr.bf16.mxu0 0
        %5713 = vmatpush1.bf16.msra.mxu0 %v5698
        %5714 = vmatprep.subr.bf16.mxu0 0
        %5715 = vmatpush1.bf16.msra.mxu0 %v5699
        %5716 = vmatprep.subr.bf16.mxu0 0
        %5717 = vmatpush1.bf16.msra.mxu0 %v5700
        %5718 = vmatprep.subr.bf16.mxu0 0
        %5719 = vmatpush1.bf16.msra.mxu0 %v5701
        %5720 = vmatprep.subr.bf16.mxu0 0
        %5721 = vmatpush1.bf16.msra.mxu0 0
        %5722 = vmatprep.subr.bf16.mxu0 0
        %5723 = vmatpush1.bf16.msra.mxu0 0
        %5724 = vmatprep.subr.bf16.mxu0 0
        %5725 = vmatpush1.bf16.msra.mxu0 0
        %5726 = vmatprep.subr.bf16.mxu0 0
        %5727 = vmatpush1.bf16.msra.mxu0 0
        %5728 = vmatprep.subr.bf16.mxu0 0
        %5729 = vmatpush1.bf16.msra.mxu0 0
        %5730 = vmatprep.subr.bf16.mxu0 0
        %5731 = vmatpush1.bf16.msra.mxu0 0
        %5732 = vmatprep.subr.bf16.mxu0 0
        %5733 = vmatpush1.bf16.msra.mxu0 0
        %5734 = vmatprep.subr.bf16.mxu0 0
        %5735 = vmatpush1.bf16.msra.mxu0 0
        %5736 = vmatprep.subr.bf16.mxu0 0
        %5737 = vmatpush1.bf16.msra.mxu0 0
        %5738 = vmatprep.subr.bf16.mxu0 0
        %5739 = vmatpush1.bf16.msra.mxu0 0
        %5740 = vmatprep.subr.bf16.mxu0 0
        %5741 = vmatpush1.bf16.msra.mxu0 0
        %5742 = vmatprep.mubr.bf16.mxu0 0
        %5743 = vmatmul.mubr.bf16.gmra.mrb[0].mxu0 %v5708
        %v5744 = vpop.f32.mrb[0].mxu0
        %v5745 = vadd.f32 0.0, %v5744
        %v5746 = vpop.f32.mrb[0].mxu0
        %v5747 = vpop.f32.mrb[0].mxu0
        %v5748 = vpop.f32.mrb[0].mxu0
        %5749 = vdwg.mxu0
        %v5750 = vadd.f32 %v5647, %v5745
        %v5751 = vld [vmem:[%s10] sm:$0x1]
        %v5753 = vlaneseq
        %v5754 = vshrl.u32 %v5753, 7
        %v5755 = vsub.s32 0, %v5754
        %v5756 = vrot.slane %v5751, %v5755
        %v5758 = vadd.f32 %v5750, %v5756
        %v5759 = vmax.f32 %v5758, 0.0
        %v5760 = vpack.c.bf16 %v5759, %v5759
        %v5761 = vld [vmem:[%s11] sm:$0xf]
        %v5762 = vld [vmem:[%s11 + $0x4] sm:$0xf]
        %v5763 = vld [vmem:[%s11 + $0x8] sm:$0xf]
        %v5764 = vld [vmem:[%s11 + $0xc] sm:$0xf]
        %v5765 = vld [vmem:[%s11 + $0x10] sm:$0xf]
        %v5766 = vld [vmem:[%s11 + $0x14] sm:$0xf]
        %v5767 = vld [vmem:[%s11 + $0x18] sm:$0xf]
        %v5768 = vld [vmem:[%s11 + $0x1c] sm:$0xf]
        %v5769 = vld [vmem:[%s11 + $0x20] sm:$0xf]
        %v5770 = vld [vmem:[%s11 + $0x24] sm:$0xf]
        %v5771 = vld [vmem:[%s11 + $0x28] sm:$0xf]
        %v5772 = vld [vmem:[%s11 + $0x2c] sm:$0xf]
        %v5773 = vld [vmem:[%s11 + $0x30] sm:$0xf]
        %v5774 = vld [vmem:[%s11 + $0x34] sm:$0xf]
        %v5775 = vld [vmem:[%s11 + $0x38] sm:$0xf]
        %v5776 = vld [vmem:[%s12] sm:$0x1]
        %v5778 = vlaneseq
        %v5779 = vshrl.u32 %v5778, 7
        %v5780 = vsub.s32 0, %v5779
        %v5781 = vrot.slane %v5776, %v5780
        %v5798 = vunpack.c.l.b16 %v5761
        %v5799 = vunpack.c.l.b16 %v5762
        %v5800 = vunpack.c.l.b16 %v5763
        %v5801 = vunpack.c.l.b16 %v5764
        %v5802 = vunpack.c.l.b16 %v5765
        %v5803 = vunpack.c.l.b16 %v5766
        %v5804 = vunpack.c.l.b16 %v5767
        %v5805 = vunpack.c.l.b16 %v5768
        %v5806 = vunpack.c.l.b16 %v5769
        %v5807 = vunpack.c.l.b16 %v5770
        %v5808 = vunpack.c.l.b16 %v5771
        %v5809 = vunpack.c.l.b16 %v5772
        %v5810 = vunpack.c.l.b16 %v5773
        %v5811 = vunpack.c.l.b16 %v5774
        %v5812 = vunpack.c.l.b16 %v5775
        %v5813 = vpack.c.b16 %v5799, %v5798
        %v5814 = vpack.c.b16 %v5801, %v5800
        %v5815 = vpack.c.b16 %v5803, %v5802
        %v5816 = vpack.c.b16 %v5805, %v5804
        %v5817 = vpack.c.b16 %v5807, %v5806
        %v5818 = vpack.c.b16 %v5809, %v5808
        %v5819 = vpack.c.b16 %v5811, %v5810
        %v5820 = vpack.c.b16 %v5812, %v5812
        %vm5828 = vcmask 982016
        %v5830 = vsel %vm5828, %v5760, 0
        %v5833 = vsel %vm2884, %v5820, 0
        %5835 = vmatprep.subr.bf16.mxu0 0
        %5836 = vmatpush1.bf16.msra.mxu0 %v5813
        %5837 = vmatprep.subr.bf16.mxu0 0
        %5838 = vmatpush1.bf16.msra.mxu0 %v5814
        %5839 = vmatprep.subr.bf16.mxu0 0
        %5840 = vmatpush1.bf16.msra.mxu0 %v5815
        %5841 = vmatprep.subr.bf16.mxu0 0
        %5842 = vmatpush1.bf16.msra.mxu0 %v5816
        %5843 = vmatprep.subr.bf16.mxu0 0
        %5844 = vmatpush1.bf16.msra.mxu0 %v5817
        %5845 = vmatprep.subr.bf16.mxu0 0
        %5846 = vmatpush1.bf16.msra.mxu0 %v5818
        %5847 = vmatprep.subr.bf16.mxu0 0
        %5848 = vmatpush1.bf16.msra.mxu0 %v5819
        %5849 = vmatprep.subr.bf16.mxu0 0
        %5850 = vmatpush1.bf16.msra.mxu0 %v5833
        %5851 = vmatprep.subr.bf16.mxu0 0
        %5852 = vmatpush1.bf16.msra.mxu0 0
        %5853 = vmatprep.subr.bf16.mxu0 0
        %5854 = vmatpush1.bf16.msra.mxu0 0
        %5855 = vmatprep.subr.bf16.mxu0 0
        %5856 = vmatpush1.bf16.msra.mxu0 0
        %5857 = vmatprep.subr.bf16.mxu0 0
        %5858 = vmatpush1.bf16.msra.mxu0 0
        %5859 = vmatprep.subr.bf16.mxu0 0
        %5860 = vmatpush1.bf16.msra.mxu0 0
        %5861 = vmatprep.subr.bf16.mxu0 0
        %5862 = vmatpush1.bf16.msra.mxu0 0
        %5863 = vmatprep.subr.bf16.mxu0 0
        %5864 = vmatpush1.bf16.msra.mxu0 0
        %5865 = vmatprep.subr.bf16.mxu0 0
        %5866 = vmatpush1.bf16.msra.mxu0 0
        %5867 = vmatprep.mubr.bf16.mxu0 0
        %5868 = vmatmul.mubr.bf16.gmra.mrb[0].mxu0 %v5830
        %v5869 = vpop.f32.mrb[0].mxu0
        %v5870 = vadd.f32 %v5781, %v5869
        %v5871 = vpop.f32.mrb[0].mxu0
        %v5872 = vpop.f32.mrb[0].mxu0
        %v5873 = vpop.f32.mrb[0].mxu0
        %5874 = vdwg.mxu0
        %v5875 = vmax.f32 %v5870, 0.0
        %v5876 = vpack.c.bf16 %v5875, %v5875
        %v5877 = vld [vmem:[%s13] sm:$0xf]
        %v5878 = vld [vmem:[%s13 + $0x4] sm:$0xf]
        %v5879 = vld [vmem:[%s13 + $0x8] sm:$0xf]
        %v5880 = vld [vmem:[%s13 + $0xc] sm:$0xf]
        %v5881 = vld [vmem:[%s13 + $0x10] sm:$0xf]
        %v5882 = vld [vmem:[%s13 + $0x14] sm:$0xf]
        %v5883 = vld [vmem:[%s13 + $0x18] sm:$0xf]
        %v5884 = vld [vmem:[%s13 + $0x1c] sm:$0xf]
        %v5885 = vld [vmem:[%s13 + $0x20] sm:$0xf]
        %v5886 = vld [vmem:[%s13 + $0x24] sm:$0xf]
        %v5887 = vld [vmem:[%s13 + $0x28] sm:$0x3]
        %v5888 = vld [vmem:[%s14] sm:$0x1]
        %v5890 = vlaneseq
        %v5891 = vshrl.u32 %v5890, 7
        %v5892 = vsub.s32 0, %v5891
        %v5893 = vrot.slane %v5888, %v5892
        %v5906 = vunpack.c.l.b16 %v5877
        %v5907 = vunpack.c.l.b16 %v5878
        %v5908 = vunpack.c.l.b16 %v5879
        %v5909 = vunpack.c.l.b16 %v5880
        %v5910 = vunpack.c.l.b16 %v5881
        %v5911 = vunpack.c.l.b16 %v5882
        %v5912 = vunpack.c.l.b16 %v5883
        %v5913 = vunpack.c.l.b16 %v5884
        %v5914 = vunpack.c.l.b16 %v5885
        %v5915 = vunpack.c.l.b16 %v5886
        %v5916 = vunpack.c.l.b16 %v5887
        %v5917 = vpack.c.b16 %v5907, %v5906
        %v5918 = vpack.c.b16 %v5909, %v5908
        %v5919 = vpack.c.b16 %v5911, %v5910
        %v5920 = vpack.c.b16 %v5913, %v5912
        %v5921 = vpack.c.b16 %v5915, %v5914
        %v5922 = vpack.c.b16 %v5916, %v5916
        %v5929 = vsel %vm3329, %v5876, 0
        %v5932 = vsel %vm3620, %v5922, 0
        %5934 = vmatprep.subr.bf16.mxu0 0
        %5935 = vmatpush1.bf16.msra.mxu0 %v5917
        %5936 = vmatprep.subr.bf16.mxu0 0
        %5937 = vmatpush1.bf16.msra.mxu0 %v5918
        %5938 = vmatprep.subr.bf16.mxu0 0
        %5939 = vmatpush1.bf16.msra.mxu0 %v5919
        %5940 = vmatprep.subr.bf16.mxu0 0
        %5941 = vmatpush1.bf16.msra.mxu0 %v5920
        %5942 = vmatprep.subr.bf16.mxu0 0
        %5943 = vmatpush1.bf16.msra.mxu0 %v5921
        %5944 = vmatprep.subr.bf16.mxu0 0
        %5945 = vmatpush1.bf16.msra.mxu0 %v5932
        %5946 = vmatprep.subr.bf16.mxu0 0
        %5947 = vmatpush1.bf16.msra.mxu0 0
        %5948 = vmatprep.subr.bf16.mxu0 0
        %5949 = vmatpush1.bf16.msra.mxu0 0
        %5950 = vmatprep.subr.bf16.mxu0 0
        %5951 = vmatpush1.bf16.msra.mxu0 0
        %5952 = vmatprep.subr.bf16.mxu0 0
        %5953 = vmatpush1.bf16.msra.mxu0 0
        %5954 = vmatprep.subr.bf16.mxu0 0
        %5955 = vmatpush1.bf16.msra.mxu0 0
        %5956 = vmatprep.subr.bf16.mxu0 0
        %5957 = vmatpush1.bf16.msra.mxu0 0
        %5958 = vmatprep.subr.bf16.mxu0 0
        %5959 = vmatpush1.bf16.msra.mxu0 0
        %5960 = vmatprep.subr.bf16.mxu0 0
        %5961 = vmatpush1.bf16.msra.mxu0 0
        %5962 = vmatprep.subr.bf16.mxu0 0
        %5963 = vmatpush1.bf16.msra.mxu0 0
        %5964 = vmatprep.subr.bf16.mxu0 0
        %5965 = vmatpush1.bf16.msra.mxu0 0
        %5966 = vmatprep.mubr.bf16.mxu0 0
        %5967 = vmatmul.mubr.bf16.gmra.mrb[0].mxu0 %v5929
        %v5968 = vpop.f32.mrb[0].mxu0
        %v5969 = vadd.f32 %v5893, %v5968
        %v5970 = vpop.f32.mrb[0].mxu0
        %v5971 = vpop.f32.mrb[0].mxu0
        %v5972 = vpop.f32.mrb[0].mxu0
        %5973 = vdwg.mxu0
        %5974 = vst [vmem:[%s488] sm:$0xff] %v5969
        %s5975 = sand.u32 %s357, 1
        %s5976 = scalar_lea.sflag [#allocation5], %s5975
        %s5977 = sand.u32 %s357, 1
        %s5978 = smul.addr %s5977, 8
        %s5979 = scalar_lea.vmem [#allocation4], %s5978
        // Predicated region
        $region81: #{net_forward.1} parent=79 // pred_check
          %p5980 = pneg %p367
        $region82: #{net_forward.1} parent=79 // pred_check_branch
          %5982 = sbr.rel (%p5980) target = $region84
        $region83: #{net_forward.1} parent=79 // pred_region
          %s5984 = ssub.s32 128, 128
          %5985 = vsyncadd %s5976, %s5984
          %s5986 = smul.addr %s29, 128
          %s5987 = scalar_lea.hbm %s15, %s5986
          %s5989 = sshll.u32 %s5979, 4
          %s5990 = int_to_ptr.vmem [resolvable:$true] %s5989
          %5992 = dma.vmem_to_hbm [thread:$0]  %s5990, 128, %s5987, %s5976
        $region84: #{net_forward.1} parent=79 // pred_fallthru
          _
      $region80: #{net_forward.1} parent=5 // pred_fallthru
        _
      %p5993 = scmp.le.s32.totalorder 2, %s24
      // Predicated region
      $region85: #{net_forward.1} parent=5 // pred_check
        %p5994 = pneg %p5993
      $region86: #{net_forward.1} parent=5 // pred_check_branch
        %5996 = sbr.rel (%p5994) target = $region88
      $region87: #{net_forward.1} parent=5 // pred_region
        %s5997 = ssub.s32 %s24, 2
        // Predicated region
        $region89: #{net_forward.1} parent=87 // pred_check
          %p5998 = pneg %p373
        $region90: #{net_forward.1} parent=87 // pred_check_branch
          %6000 = sbr.rel (%p5998) target = $region92
        $region91: #{net_forward.1} parent=87 // pred_region
          %s6001 = sand.u32 %s358, 1
          %s6002 = scalar_lea.sflag [#allocation5], %s6001
          %s6003 = sand.u32 %s358, 1
          %s6004 = smul.addr %s6003, 8
          %s6005 = scalar_lea.vmem [#allocation4], %s6004
          %6006 = dma.done %s6002, 128
        $region92: #{net_forward.1} parent=87 // pred_fallthru
          _
      $region88: #{net_forward.1} parent=5 // pred_fallthru
        _
    $region6: #{net_forward.1} parent=1 // loop_footer
      %s28 = sadd.s32 1, %s24
    $region7: #{net_forward.1} parent=1 // loop_footer_branch
      %23 = sbr.rel target = $region3
    $region8: #{net_forward.1} parent=1 // loop_exit
      _
    %6007 = vsyncpa [#allocation5], 1
    %s6008 = scalar_lea.sflag [#allocation5], 1
    %6009 = vsyncpa %s6008, 1

</llo_original>
